<compile_context>
chip_gen: v6e
topology: v6e:2x2x1
jax: 0.10.0
libtpu: 0.0.40
codegen_flags: <defaults>
</compile_context>

<pallas_src>
import functools
import math

import jax
import jax.numpy as jnp
from jax import lax
from jax.experimental import pallas as pl
from jax.experimental.pallas import tpu as pltpu


def _attentive_transformer_kernel(x_ref, w_ref, gamma_ref, beta_ref, prior_ref,
                                  o_ref, *, eps, chunk_rows, c_out_real):
    """One merged block of ghost-batch chunks: Linear -> GhostBN -> prior* -> softmax."""
    rows, c_pad = o_ref.shape
    k_chunks = rows // chunk_rows          # static

    # MXU matmul in the (bf16) input dtype, f32 accumulation.
    h = jnp.dot(x_ref[...], w_ref[...], preferred_element_type=jnp.float32)

    # GhostBatchNorm1d (training-mode forward): biased batch statistics per
    # virtual-batch chunk of `chunk_rows` rows. One-pass mean / mean-of-squares.
    hc = h.reshape(k_chunks, chunk_rows, c_pad)
    mean = jnp.mean(hc, axis=1, keepdims=True)                              # (k,1,C)
    var = jnp.maximum(jnp.mean(hc * hc, axis=1, keepdims=True) - mean * mean, 0.0)
    # Fold BN into one per-(chunk, column) scale/shift: y = h*scale + shift.
    scale = gamma_ref[...].astype(jnp.float32) * lax.rsqrt(var + eps)       # (k,1,C)
    shift = beta_ref[...].astype(jnp.float32) - mean * scale
    y = (hc * scale + shift).reshape(rows, c_pad)

    # prior * y, then numerically-stable softmax over the real feature lanes.
    t = prior_ref[...].astype(jnp.float32) * y
    if c_out_real != c_pad:
        lane = lax.broadcasted_iota(jnp.int32, (rows, c_pad), 1)
        t = jnp.where(lane < c_out_real, t, jnp.float32(-1e30))
    t = t - jnp.max(t, axis=-1, keepdims=True)
    e = jnp.exp(t)
    p = e * pl.reciprocal(jnp.sum(e, axis=-1, keepdims=True), approx=True)
    o_ref[...] = p.astype(o_ref.dtype)


def _pick_chunks_per_step(num_chunks, chunk_rows):
    """Merge ghost-batch chunks per grid step (amortize ~0.35us/step), capping the
    block at ~2048 rows and keeping >=2 grid steps for 2-TC sharding on v7x."""
    if num_chunks == 1:
        return 1
    best = 1
    for k in range(1, num_chunks // 2 + 1):
        if num_chunks % k == 0 and k * chunk_rows <= 2048:
            best = k
    return best


def attentive_transformer(x, w_t, gamma, beta, prior, *,
                          virtual_batch_size=512, eps=1e-5,
                          compute_dtype=jnp.bfloat16, out_dtype=None,
                          chunks_per_step=None):
    """Fused AttentiveTransformer forward.

    x:     [N, C_in]
    w_t:   [C_in, C_out]  -- Linear weight pre-transposed (PyTorch stores [C_out, C_in]).
    gamma: [C_out], beta: [C_out]  -- BatchNorm1d affine parameters.
    prior: [N, C_out]
    returns softmax(prior * GhostBN(x @ W^T), axis=-1), shape [N, C_out].
    """
    n, c_in = x.shape
    c_out = w_t.shape[1]
    assert w_t.shape == (c_in, c_out)
    assert prior.shape == (n, c_out)
    assert gamma.shape == (c_out,) and beta.shape == (c_out,)

    out_dtype = x.dtype if out_dtype is None else out_dtype

    # Narrow the memory-bound tensors (keeps matmul on the fast bf16 MXU path);
    # BN statistics / softmax stay f32 inside the kernel.
    if compute_dtype is not None:
        x = x.astype(compute_dtype)
        w_t = w_t.astype(compute_dtype)
        prior = prior.astype(compute_dtype)
    gamma = gamma.astype(jnp.float32)
    beta = beta.astype(jnp.float32)

    # torch.chunk(x, ceil(N/vbs)) -> equal chunks of ceil(N / num_chunks) rows.
    num_chunks = max(1, math.ceil(n / virtual_batch_size))
    chunk = math.ceil(n / num_chunks)
    assert n == num_chunks * chunk, (
        f"batch (N={n}) must split into equal ghost-batch chunks for "
        f"virtual_batch_size={virtual_batch_size}")
    # TODO(synk): ragged last ghost-batch chunk (N not an exact multiple) is not handled.
    if num_chunks > 1:
        assert chunk % 8 == 0, "per-chunk rows must be sublane-aligned when tiled"

    if chunks_per_step is None:
        chunks_per_step = _pick_chunks_per_step(num_chunks, chunk)
    assert num_chunks % chunks_per_step == 0
    block_rows = chunks_per_step * chunk
    grid_steps = num_chunks // chunks_per_step

    # Pad the attention width to 128 lanes (lane-dense vst; padding is masked
    # out of the softmax in-kernel and sliced off below).
    c_pad = ((c_out + 127) // 128) * 128
    if c_pad != c_out:
        pad = c_pad - c_out
        w_t = jnp.pad(w_t, ((0, 0), (0, pad)))
        prior = jnp.pad(prior, ((0, 0), (0, pad)))
        gamma = jnp.pad(gamma, (0, pad))
        beta = jnp.pad(beta, (0, pad))

    gamma2 = gamma.reshape(1, c_pad)
    beta2 = beta.reshape(1, c_pad)

    kernel = functools.partial(_attentive_transformer_kernel, eps=eps,
                               chunk_rows=chunk, c_out_real=c_out)

    in_bytes = x.dtype.itemsize
    out_bytes = jnp.dtype(out_dtype).itemsize
    cost = pl.CostEstimate(
        flops=2 * n * c_in * c_pad + 8 * n * c_pad,
        transcendentals=n * c_pad + n + num_chunks * c_pad,   # exp + rcp + rsqrt
        bytes_accessed=(n * c_in + c_in * c_pad + n * c_pad) * in_bytes
                       + 2 * c_pad * 4 + n * c_pad * out_bytes,
    )

    out = pl.pallas_call(
        kernel,
        out_shape=jax.ShapeDtypeStruct((n, c_pad), out_dtype),
        grid_spec=pltpu.PrefetchScalarGridSpec(
            num_scalar_prefetch=0,
            grid=(grid_steps,),
            in_specs=[
                pl.BlockSpec((block_rows, c_in), lambda i: (i, 0)),   # x tile
                pl.BlockSpec((c_in, c_pad), lambda i: (0, 0)),        # W^T: VMEM-resident
                pl.BlockSpec((1, c_pad), lambda i: (0, 0)),           # gamma
                pl.BlockSpec((1, c_pad), lambda i: (0, 0)),           # beta
                pl.BlockSpec((block_rows, c_pad), lambda i: (i, 0)),  # prior tile
            ],
            out_specs=pl.BlockSpec((block_rows, c_pad), lambda i: (i, 0)),
        ),
        compiler_params=pltpu.CompilerParams(
            dimension_semantics=("parallel",)),
        cost_estimate=cost,
    )(x, w_t, gamma2, beta2, prior)

    if c_pad != c_out:
        out = out[:, :c_out]
    return out


def reference_attentive_transformer(x, w_t, gamma, beta, prior, *,
                                    virtual_batch_size=512, eps=1e-5):
    """Pure-JAX reference mirroring the PyTorch forward (training-mode BN), f32."""
    h = jnp.dot(x.astype(jnp.float32), w_t.astype(jnp.float32))
    n = h.shape[0]
    num_chunks = max(1, math.ceil(n / virtual_batch_size))
    chunk = math.ceil(n / num_chunks)
    outs = []
    for start in range(0, n, chunk):
        hc = h[start:start + chunk]
        mean = jnp.mean(hc, axis=0, keepdims=True)
        var = jnp.mean(jnp.square(hc - mean), axis=0, keepdims=True)
        outs.append((hc - mean) * lax.rsqrt(var + eps)
                    * gamma.astype(jnp.float32) + beta.astype(jnp.float32))
    y = jnp.concatenate(outs, axis=0)
    t = prior.astype(jnp.float32) * y
    t = t - jnp.max(t, axis=-1, keepdims=True)
    e = jnp.exp(t)
    return e / jnp.sum(e, axis=-1, keepdims=True)


def _init_linear_weight(key, out_features, in_features):
    """Kaiming-uniform-like init matching torch.nn.Linear's 1/sqrt(fan_in) bound."""
    bound = 1.0 / math.sqrt(in_features)
    return jax.random.uniform(key, (out_features, in_features), dtype=jnp.float32,
                              minval=-bound, maxval=bound)


if __name__ == "__main__":
    # Tabular shapes: 2048 rows -> 4 ghost-batch chunks of 512 (GhostBN default),
    # merged 2 chunks per grid step (grid of 2 parallel steps). Attention width
    # 64 < 128 exercises the lane-padding + softmax-mask path.
    batch = 2048
    in_channels = 64
    out_channels = 64
    vbs = 512  # GhostBatchNorm1d default inside AttentiveTransformer

    key = jax.random.PRNGKey(0)
    kx, kw, kp, kg, kb = jax.random.split(key, 5)

    # Ship bf16 to HBM for the memory-bound tensors; BN affine params stay f32.
    x = jax.random.normal(kx, (batch, in_channels), dtype=jnp.float32).astype(jnp.bfloat16)
    w = _init_linear_weight(kw, out_channels, in_channels).astype(jnp.bfloat16)  # [out, in]
    prior = jax.random.uniform(kp, (batch, out_channels), dtype=jnp.float32,
                               minval=0.5, maxval=1.5).astype(jnp.bfloat16)
    gamma = 1.0 + 0.1 * jax.random.normal(kg, (out_channels,), dtype=jnp.float32)
    beta = 0.1 * jax.random.normal(kb, (out_channels,), dtype=jnp.float32)

    # Export-time transpose to the kernel's [C_in, C_out] layout (done once).
    w_t = jnp.transpose(w)

    out = attentive_transformer(x, w_t, gamma, beta, prior, virtual_batch_size=vbs)
    out = jax.block_until_ready(out)
    assert out.shape == (batch, out_channels)
    assert out.dtype == jnp.bfloat16

    ref = reference_attentive_transformer(x, w_t, gamma, beta, prior,
                                          virtual_batch_size=vbs)
    out_f32 = out.astype(jnp.float32)
    assert jnp.allclose(out_f32, ref, atol=1e-2, rtol=1e-2), "mismatch vs reference"
    # Softmax rows should sum to ~1 (bf16 output + approx reciprocal).
    assert jnp.allclose(jnp.sum(out_f32, axis=-1), 1.0, atol=2e-2)

    print("KERNEL_OK")
</pallas_src>

<mosaic_0001>
module attributes {stable_mosaic.version = 11 : i64} {
  func.func @_attentive_transformer_kernel(%arg0: i32, %arg1: memref<1024x64xbf16, #tpu.memory_space<vmem>>, %arg2: memref<64x128xbf16, #tpu.memory_space<vmem>>, %arg3: memref<1x128xf32, #tpu.memory_space<vmem>>, %arg4: memref<1x128xf32, #tpu.memory_space<vmem>>, %arg5: memref<1024x128xbf16, #tpu.memory_space<vmem>>, %arg6: memref<1024x128xbf16, #tpu.memory_space<vmem>>) attributes {dimension_semantics = [#tpu.dimension_semantics<parallel>], iteration_bounds = array<i64: 2>, scalar_prefetch = 0 : i64, scratch_operands = 0 : i64, tpu.core_type = #tpu.core_type<tc>, window_params = [{transform_indices = @transform_0, window_bounds = array<i64: 1024, 64>}, {pipeline_mode = #tpu.pipeline_mode<synchronous>, transform_indices = @transform_1, window_bounds = array<i64: 64, 128>}, {pipeline_mode = #tpu.pipeline_mode<synchronous>, transform_indices = @transform_2, window_bounds = array<i64: 1, 128>}, {pipeline_mode = #tpu.pipeline_mode<synchronous>, transform_indices = @transform_3, window_bounds = array<i64: 1, 128>}, {transform_indices = @transform_4, window_bounds = array<i64: 1024, 128>}, {transform_indices = @transform_5, window_bounds = array<i64: 1024, 128>}]} {
    %c0 = arith.constant 0 : index
    %c0_0 = arith.constant 0 : index
    %0 = vector.load %arg1[%c0, %c0_0] : memref<1024x64xbf16, #tpu.memory_space<vmem>>, vector<1024x64xbf16>
    %c0_1 = arith.constant 0 : index
    %c0_2 = arith.constant 0 : index
    %1 = vector.load %arg2[%c0_1, %c0_2] : memref<64x128xbf16, #tpu.memory_space<vmem>>, vector<64x128xbf16>
    %cst = arith.constant dense<0.000000e+00> : vector<1024x128xf32>
    %2 = tpu.matmul %0, %1, %cst {dimension_numbers = #tpu.dot_dimension_numbers<[1], [0], [0], [1], [0, 0, 1, 1], [], []>} : vector<1024x64xbf16>, vector<64x128xbf16>, vector<1024x128xf32> -> vector<1024x128xf32>
    %3 = vector.shape_cast %2 : vector<1024x128xf32> to vector<2x512x128xf32>
    %cst_3 = arith.constant dense<0.000000e+00> : vector<2x128xf32>
    %4 = vector.multi_reduction <add>, %3, %cst_3 [1] : vector<2x512x128xf32> to vector<2x128xf32>
    %5 = vector.shape_cast %4 : vector<2x128xf32> to vector<2x1x128xf32>
    %cst_4 = arith.constant 5.120000e+02 : f32
    %6 = vector.broadcast %cst_4 : f32 to vector<2x1x128xf32>
    %7 = arith.divf %5, %6 : vector<2x1x128xf32>
    %8 = arith.mulf %3, %3 : vector<2x512x128xf32>
    %cst_5 = arith.constant dense<0.000000e+00> : vector<2x128xf32>
    %9 = vector.multi_reduction <add>, %8, %cst_5 [1] : vector<2x512x128xf32> to vector<2x128xf32>
    %10 = vector.shape_cast %9 : vector<2x128xf32> to vector<2x1x128xf32>
    %cst_6 = arith.constant 5.120000e+02 : f32
    %11 = vector.broadcast %cst_6 : f32 to vector<2x1x128xf32>
    %12 = arith.divf %10, %11 : vector<2x1x128xf32>
    %13 = arith.mulf %7, %7 : vector<2x1x128xf32>
    %14 = arith.subf %12, %13 : vector<2x1x128xf32>
    %cst_7 = arith.constant 0.000000e+00 : f32
    %15 = vector.broadcast %cst_7 : f32 to vector<2x1x128xf32>
    %16 = arith.maximumf %14, %15 : vector<2x1x128xf32>
    %c0_8 = arith.constant 0 : index
    %c0_9 = arith.constant 0 : index
    %17 = vector.load %arg3[%c0_8, %c0_9] : memref<1x128xf32, #tpu.memory_space<vmem>>, vector<1x128xf32>
    %cst_10 = arith.constant 9.99999974E-6 : f32
    %18 = vector.broadcast %cst_10 : f32 to vector<2x1x128xf32>
    %19 = arith.addf %16, %18 : vector<2x1x128xf32>
    %20 = math.rsqrt %19 : vector<2x1x128xf32>
    %21 = vector.shape_cast %17 : vector<1x128xf32> to vector<1x1x128xf32>
    %22 = vector.broadcast %21 : vector<1x1x128xf32> to vector<2x1x128xf32>
    %23 = arith.mulf %22, %20 : vector<2x1x128xf32>
    %c0_11 = arith.constant 0 : index
    %c0_12 = arith.constant 0 : index
    %24 = vector.load %arg4[%c0_11, %c0_12] : memref<1x128xf32, #tpu.memory_space<vmem>>, vector<1x128xf32>
    %25 = arith.mulf %7, %23 : vector<2x1x128xf32>
    %26 = vector.shape_cast %24 : vector<1x128xf32> to vector<1x1x128xf32>
    %27 = vector.broadcast %26 : vector<1x1x128xf32> to vector<2x1x128xf32>
    %28 = arith.subf %27, %25 : vector<2x1x128xf32>
    %29 = vector.broadcast %23 : vector<2x1x128xf32> to vector<2x512x128xf32>
    %30 = arith.mulf %3, %29 : vector<2x512x128xf32>
    %31 = vector.broadcast %28 : vector<2x1x128xf32> to vector<2x512x128xf32>
    %32 = arith.addf %30, %31 : vector<2x512x128xf32>
    %33 = vector.shape_cast %32 : vector<2x512x128xf32> to vector<1024x128xf32>
    %c0_13 = arith.constant 0 : index
    %c0_14 = arith.constant 0 : index
    %34 = vector.load %arg5[%c0_13, %c0_14] : memref<1024x128xbf16, #tpu.memory_space<vmem>>, vector<1024x128xbf16>
    %35 = arith.extf %34 : vector<1024x128xbf16> to vector<1024x128xf32>
    %36 = arith.mulf %35, %33 : vector<1024x128xf32>
    %37 = tpu.iota {dimensions = array<i32: 1>} : vector<1024x128xi32>
    %c64_i32 = arith.constant 64 : i32
    %38 = vector.broadcast %c64_i32 : i32 to vector<1024x128xi32>
    %39 = arith.cmpi slt, %37, %38 : vector<1024x128xi32>
    %cst_15 = arith.constant -1.000000e+30 : f32
    %40 = vector.broadcast %cst_15 : f32 to vector<1024x128xf32>
    %41 = arith.select %39, %36, %40 : vector<1024x128xi1>, vector<1024x128xf32>
    %cst_16 = arith.constant dense<0xFF800000> : vector<1024xf32>
    %42 = vector.multi_reduction <maximumf>, %41, %cst_16 [1] : vector<1024x128xf32> to vector<1024xf32>
    %43 = vector.shape_cast %42 : vector<1024xf32> to vector<1024x1xf32>
    %44 = vector.broadcast %43 : vector<1024x1xf32> to vector<1024x128xf32>
    %45 = arith.subf %41, %44 : vector<1024x128xf32>
    %46 = math.exp %45 : vector<1024x128xf32>
    %cst_17 = arith.constant dense<0.000000e+00> : vector<1024xf32>
    %47 = vector.multi_reduction <add>, %46, %cst_17 [1] : vector<1024x128xf32> to vector<1024xf32>
    %48 = vector.shape_cast %47 : vector<1024xf32> to vector<1024x1xf32>
    %49 = tpu.reciprocal %48 {approx = true} : vector<1024x1xf32> -> vector<1024x1xf32>
    %50 = vector.broadcast %49 : vector<1024x1xf32> to vector<1024x128xf32>
    %51 = arith.mulf %46, %50 : vector<1024x128xf32>
    %52 = arith.truncf %51 : vector<1024x128xf32> to vector<1024x128xbf16>
    %c0_18 = arith.constant 0 : index
    %c0_19 = arith.constant 0 : index
    %53 = vector.load %arg6[%c0_18, %c0_19] : memref<1024x128xbf16, #tpu.memory_space<vmem>>, vector<1024x128xbf16>
    tpu.vector_store %arg6[%c0_18, %c0_19], %52 {strides = array<i32>} : memref<1024x128xbf16, #tpu.memory_space<vmem>>, vector<1024x128xbf16>,
    return
  }
  func.func @transform_0(%arg0: i32) -> (i32, i32) {
    %c0_i32 = arith.constant 0 : i32
    %c0_i32_0 = arith.constant 0 : i32
    return %arg0, %c0_i32 : i32, i32
  }
  func.func @transform_1(%arg0: i32) -> (i32, i32) {
    %c0_i32 = arith.constant 0 : i32
    %c0_i32_0 = arith.constant 0 : i32
    %c0_i32_1 = arith.constant 0 : i32
    return %c0_i32, %c0_i32_0 : i32, i32
  }
  func.func @transform_2(%arg0: i32) -> (i32, i32) {
    %c0_i32 = arith.constant 0 : i32
    %c0_i32_0 = arith.constant 0 : i32
    %c0_i32_1 = arith.constant 0 : i32
    return %c0_i32, %c0_i32_0 : i32, i32
  }
  func.func @transform_3(%arg0: i32) -> (i32, i32) {
    %c0_i32 = arith.constant 0 : i32
    %c0_i32_0 = arith.constant 0 : i32
    %c0_i32_1 = arith.constant 0 : i32
    return %c0_i32, %c0_i32_0 : i32, i32
  }
  func.func @transform_4(%arg0: i32) -> (i32, i32) {
    %c0_i32 = arith.constant 0 : i32
    %c0_i32_0 = arith.constant 0 : i32
    return %arg0, %c0_i32 : i32, i32
  }
  func.func @transform_5(%arg0: i32) -> (i32, i32) {
    %c0_i32 = arith.constant 0 : i32
    %c0_i32_0 = arith.constant 0 : i32
    return %arg0, %c0_i32 : i32, i32
  }
}

</mosaic_0001>

<llo_original>
// kernel: tpu_custom_call.1
$region0: #{tpu_custom_call.1}
  #allocation0 [shape = 'u32[]', space=smem, size = 0x4, offset = 0x4, fixed_abs, tag = 'smem constant byte address 0x4 - core index']
  #allocation1 [shape = 'u32[144,128]{1,0:T(1,128)}', space=vmem, size = 0x12000, scoped, tag = 'internal scratch']
  %s0 = inlined_call_operand.vmem [shape: bf16[2048,64], index: 0, kind: input, shape index: {}]
  %s1 = inlined_call_operand.vmem [shape: bf16[64,128], index: 1, kind: input, shape index: {}]
  %s2 = inlined_call_operand.vmem [shape: f32[1,128], index: 2, kind: input, shape index: {}]
  %s3 = inlined_call_operand.vmem [shape: f32[1,128], index: 3, kind: input, shape index: {}]
  %s4 = inlined_call_operand.vmem [shape: bf16[2048,128], index: 4, kind: input, shape index: {}]
  %s5 = inlined_call_operand.hbm [shape: bf16[2048,128], index: 5, kind: output, shape index: {}]
  %s6 = sld [smem:[#allocation0]]
  $region53: #{tpu_custom_call.1} parent=0
    _
  %s8 = ssub.s32 1, %s6
  %s9 = scalar_select 0, %s8, %s6
  $region1: #{tpu_custom_call.1} parent=0
    #allocation2 [shape = 'u8[524288]{0}', space=vmem, size = 0x80000, scoped, tag = 'output window, operand 0']
    #allocation3 [shape = 's32[2]{0}', space=sflag, size = 0x8, scoped, tag = 'scoped memory for tpu_custom_call.1']
    %10 = vsyncpa [#allocation3], 0
    %s11 = scalar_lea.sflag [#allocation3], 1
    %12 = vsyncpa %s11, 0
    loop: start=0, step=1, limit=4
    $region2: #{tpu_custom_call.1} parent=1 // loop_pre_header
      _
    $region3: #{tpu_custom_call.1} parent=1 // loop_header
      %s14 = sphi 0, %s18
      %p15 = scmp.ge.s32.totalorder %s14, 4
      %s24 = sphi 0, %s26
      %s27 = sphi 0, %s24
      %s28 = sphi 0, %s27
      %s44 = sphi 0, %s28
      %s48 = sphi 0, %s48
      %s50 = sphi 0, %s48
      %s51 = sphi 0, %s50
      %s65 = sphi 0, %s51
      %s69 = sphi 0, %s69
      %s71 = sphi 0, %s69
      %s72 = sphi 0, %s71
      %s86 = sphi 0, %s72
      %s90 = sphi 0, %s90
      %s92 = sphi 0, %s90
      %s93 = sphi 0, %s92
      %s107 = sphi 0, %s93
      %s113 = sphi 0, %s115
      %s116 = sphi 0, %s113
      %s117 = sphi 0, %s116
      %s133 = sphi 0, %s117
      %s139 = sphi 0, %s141
      %s142 = sphi 0, %s139
      %s143 = sphi 0, %s142
      %s159 = sphi 0, %s143
    $region4: #{tpu_custom_call.1} parent=1 // loop_header_branch
      %17 = sbr.rel (%p15) target = $region8
    $region5: #{tpu_custom_call.1} parent=1 // loop_body
      %s19 = ssub.s32 %s14, 1
      %s20 = ssub.s32 %s14, 2
      %s21 = sadd.s32 %s14, 1
      %s22 = ssub.s32 %s14, %s21
      %p23 = scmp.eq.s32.totalorder %s22, 0
      %s25 = sadd.s32 %s24, 1
      %s26 = scalar_select %p23, %s24, %s25
      %p29 = pneg %p23
      %p30 = scmp.eq.s32.totalorder %s14, 1
      %p31 = por %p29, %p30
      %p32 = scmp.ne.s32.totalorder %s24, %s27
      %p33 = scmp.eq.s32.totalorder %s14, 0
      %p34 = por %p32, %p33
      %p35 = scmp.ne.s32.totalorder %s24, %s27
      %p36 = scmp.eq.s32.totalorder %s19, 1
      %p37 = por %p35, %p36
      %p38 = scmp.ne.s32.totalorder %s27, %s28
      %p39 = scmp.eq.s32.totalorder %s19, 0
      %p40 = por %p38, %p39
      %p41 = scmp.ne.s32.totalorder %s27, %s28
      %p42 = scmp.eq.s32.totalorder %s20, 1
      %p43 = por %p41, %p42
      %p45 = scmp.ne.s32.totalorder %s28, %s44
      %p46 = scmp.eq.s32.totalorder %s20, 0
      %p47 = por %p45, %p46
      %s49 = sadd.s32 %s48, 1
      %p52 = scmp.eq.s32.totalorder %s14, 1
      %p53 = scmp.ne.s32.totalorder %s48, %s50
      %p54 = scmp.eq.s32.totalorder %s14, 0
      %p55 = por %p53, %p54
      %p56 = scmp.ne.s32.totalorder %s48, %s50
      %p57 = scmp.eq.s32.totalorder %s19, 1
      %p58 = por %p56, %p57
      %p59 = scmp.ne.s32.totalorder %s50, %s51
      %p60 = scmp.eq.s32.totalorder %s19, 0
      %p61 = por %p59, %p60
      %p62 = scmp.ne.s32.totalorder %s50, %s51
      %p63 = scmp.eq.s32.totalorder %s20, 1
      %p64 = por %p62, %p63
      %p66 = scmp.ne.s32.totalorder %s51, %s65
      %p67 = scmp.eq.s32.totalorder %s20, 0
      %p68 = por %p66, %p67
      %s70 = sadd.s32 %s69, 1
      %p73 = scmp.eq.s32.totalorder %s14, 1
      %p74 = scmp.ne.s32.totalorder %s69, %s71
      %p75 = scmp.eq.s32.totalorder %s14, 0
      %p76 = por %p74, %p75
      %p77 = scmp.ne.s32.totalorder %s69, %s71
      %p78 = scmp.eq.s32.totalorder %s19, 1
      %p79 = por %p77, %p78
      %p80 = scmp.ne.s32.totalorder %s71, %s72
      %p81 = scmp.eq.s32.totalorder %s19, 0
      %p82 = por %p80, %p81
      %p83 = scmp.ne.s32.totalorder %s71, %s72
      %p84 = scmp.eq.s32.totalorder %s20, 1
      %p85 = por %p83, %p84
      %p87 = scmp.ne.s32.totalorder %s72, %s86
      %p88 = scmp.eq.s32.totalorder %s20, 0
      %p89 = por %p87, %p88
      %s91 = sadd.s32 %s90, 1
      %p94 = scmp.eq.s32.totalorder %s14, 1
      %p95 = scmp.ne.s32.totalorder %s90, %s92
      %p96 = scmp.eq.s32.totalorder %s14, 0
      %p97 = por %p95, %p96
      %p98 = scmp.ne.s32.totalorder %s90, %s92
      %p99 = scmp.eq.s32.totalorder %s19, 1
      %p100 = por %p98, %p99
      %p101 = scmp.ne.s32.totalorder %s92, %s93
      %p102 = scmp.eq.s32.totalorder %s19, 0
      %p103 = por %p101, %p102
      %p104 = scmp.ne.s32.totalorder %s92, %s93
      %p105 = scmp.eq.s32.totalorder %s20, 1
      %p106 = por %p104, %p105
      %p108 = scmp.ne.s32.totalorder %s93, %s107
      %p109 = scmp.eq.s32.totalorder %s20, 0
      %p110 = por %p108, %p109
      %s111 = ssub.s32 %s14, %s21
      %p112 = scmp.eq.s32.totalorder %s111, 0
      %s114 = sadd.s32 %s113, 1
      %s115 = scalar_select %p112, %s113, %s114
      %p118 = pneg %p112
      %p119 = scmp.eq.s32.totalorder %s14, 1
      %p120 = por %p118, %p119
      %p121 = scmp.ne.s32.totalorder %s113, %s116
      %p122 = scmp.eq.s32.totalorder %s14, 0
      %p123 = por %p121, %p122
      %p124 = scmp.ne.s32.totalorder %s113, %s116
      %p125 = scmp.eq.s32.totalorder %s19, 1
      %p126 = por %p124, %p125
      %p127 = scmp.ne.s32.totalorder %s116, %s117
      %p128 = scmp.eq.s32.totalorder %s19, 0
      %p129 = por %p127, %p128
      %p130 = scmp.ne.s32.totalorder %s116, %s117
      %p131 = scmp.eq.s32.totalorder %s20, 1
      %p132 = por %p130, %p131
      %p134 = scmp.ne.s32.totalorder %s117, %s133
      %p135 = scmp.eq.s32.totalorder %s20, 0
      %p136 = por %p134, %p135
      %s137 = ssub.s32 %s14, %s21
      %p138 = scmp.eq.s32.totalorder %s137, 0
      %s140 = sadd.s32 %s139, 1
      %s141 = scalar_select %p138, %s139, %s140
      %p144 = pneg %p138
      %p145 = scmp.eq.s32.totalorder %s14, 1
      %p146 = por %p144, %p145
      %p147 = scmp.ne.s32.totalorder %s139, %s142
      %p148 = scmp.eq.s32.totalorder %s14, 0
      %p149 = por %p147, %p148
      %p150 = scmp.ne.s32.totalorder %s139, %s142
      %p151 = scmp.eq.s32.totalorder %s19, 1
      %p152 = por %p150, %p151
      %p153 = scmp.ne.s32.totalorder %s142, %s143
      %p154 = scmp.eq.s32.totalorder %s19, 0
      %p155 = por %p153, %p154
      %p156 = scmp.ne.s32.totalorder %s142, %s143
      %p157 = scmp.eq.s32.totalorder %s20, 1
      %p158 = por %p156, %p157
      %p160 = scmp.ne.s32.totalorder %s143, %s159
      %p161 = scmp.eq.s32.totalorder %s20, 0
      %p162 = por %p160, %p161
      %p163 = scmp.le.s32.totalorder 1, %s14
      %p164 = scmp.lt.s32.totalorder %s14, 3
      %p165 = pnand %p163, %p164
      %p166 = pneg %p165
      // Predicated region
      $region9: #{tpu_custom_call.1} parent=5 // pred_check
        _
      $region10: #{tpu_custom_call.1} parent=5 // pred_check_branch
        %168 = sbr.rel (%p165) target = $region12
      $region11: #{tpu_custom_call.1} parent=5 // pred_region
        %s169 = ssub.s32 %s14, 1
        // Predicated region
        $region13: #{tpu_custom_call.1} parent=11 // pred_check
          %p170 = pneg %p61
        $region14: #{tpu_custom_call.1} parent=11 // pred_check_branch
          %172 = sbr.rel (%p170) target = $region16
        $region15: #{tpu_custom_call.1} parent=11 // pred_region
          _
        $region16: #{tpu_custom_call.1} parent=11 // pred_fallthru
          _
        // Predicated region
        $region17: #{tpu_custom_call.1} parent=11 // pred_check
          %p173 = pneg %p82
        $region18: #{tpu_custom_call.1} parent=11 // pred_check_branch
          %175 = sbr.rel (%p173) target = $region20
        $region19: #{tpu_custom_call.1} parent=11 // pred_region
          _
        $region20: #{tpu_custom_call.1} parent=11 // pred_fallthru
          _
        // Predicated region
        $region21: #{tpu_custom_call.1} parent=11 // pred_check
          %p176 = pneg %p103
        $region22: #{tpu_custom_call.1} parent=11 // pred_check_branch
          %178 = sbr.rel (%p176) target = $region24
        $region23: #{tpu_custom_call.1} parent=11 // pred_region
          _
        $region24: #{tpu_custom_call.1} parent=11 // pred_fallthru
          _
      $region12: #{tpu_custom_call.1} parent=5 // pred_fallthru
        _
      %p179 = scmp.lt.s32.totalorder %s14, 2
      // Predicated region
      $region25: #{tpu_custom_call.1} parent=5 // pred_check
        %p180 = pneg %p179
      $region26: #{tpu_custom_call.1} parent=5 // pred_check_branch
        %182 = sbr.rel (%p180) target = $region28
      $region27: #{tpu_custom_call.1} parent=5 // pred_region
        // Predicated region
        $region29: #{tpu_custom_call.1} parent=27 // pred_check
          %p183 = pneg %p34
        $region30: #{tpu_custom_call.1} parent=27 // pred_check_branch
          %185 = sbr.rel (%p183) target = $region32
        $region31: #{tpu_custom_call.1} parent=27 // pred_region
          %s186 = smul.u32 128, %s14
          %p187 = scmp.lt.s32.totalorder %s186, 255
          %s188 = scalar_select %p187, %s186, 255
          %s189 = smul.addr %s188, 4
          %s190 = scalar_lea.vmem %s0, %s189
          %s191 = smul.u32 128, %s14
        $region32: #{tpu_custom_call.1} parent=27 // pred_fallthru
          _
        // Predicated region
        $region33: #{tpu_custom_call.1} parent=27 // pred_check
          %p192 = pneg %p123
        $region34: #{tpu_custom_call.1} parent=27 // pred_check_branch
          %194 = sbr.rel (%p192) target = $region36
        $region35: #{tpu_custom_call.1} parent=27 // pred_region
          %s195 = smul.u32 128, %s14
          %p196 = scmp.lt.s32.totalorder %s195, 255
          %s197 = scalar_select %p196, %s195, 255
          %s198 = smul.addr %s197, 4
          %s199 = scalar_lea.vmem %s4, %s198
          %s200 = smul.u32 128, %s14
        $region36: #{tpu_custom_call.1} parent=27 // pred_fallthru
          _
      $region28: #{tpu_custom_call.1} parent=5 // pred_fallthru
        _
      %p201 = scmp.le.s32.totalorder 1, %s14
      %p202 = scmp.lt.s32.totalorder %s14, 3
      %p203 = pnand %p201, %p202
      %p204 = pneg %p203
      // Predicated region
      $region37: #{tpu_custom_call.1} parent=5 // pred_check
        _
      $region38: #{tpu_custom_call.1} parent=5 // pred_check_branch
        %206 = sbr.rel (%p203) target = $region40
      $region39: #{tpu_custom_call.1} parent=5 // pred_region
        %s207 = ssub.s32 %s14, 1
        %s208 = smul.u32 128, %s19
        %p209 = scmp.lt.s32.totalorder %s208, 255
        %s210 = scalar_select %p209, %s208, 255
        %s211 = smul.addr %s210, 4
        %s212 = scalar_lea.vmem %s0, %s211
        %p213 = pneg %p40
        %p214 = pneg %p37
        %p215 = pneg %p61
        %p216 = pneg %p58
        %p217 = pneg %p82
        %p218 = pneg %p79
        %p219 = pneg %p103
        %p220 = pneg %p100
        %s221 = smul.u32 128, %s19
        %p222 = scmp.lt.s32.totalorder %s221, 255
        %s223 = scalar_select %p222, %s221, 255
        %s224 = smul.addr %s223, 4
        %s225 = scalar_lea.vmem %s4, %s224
        %p226 = pneg %p129
        %p227 = pneg %p126
        %p228 = pneg %p155
        %p229 = pneg %p152
        %s230 = sand.u32 %s142, 1
        %s231 = scalar_lea.sflag [#allocation3], %s230
        %s232 = sand.u32 %s142, 1
        %s233 = smul.addr %s232, 512
        %s234 = scalar_lea.vmem [#allocation2], %s233
        %s235 = smul.u32 128, %s19
        %p236 = scmp.lt.s32.totalorder %s235, 255
        %s237 = scalar_select %p236, %s235, 255
        %s238 = smul.addr %s237, 4
        %s239 = scalar_lea.vmem %s0, %s238
        %s240 = smul.u32 128, %s19
        %s241 = smul.u32 128, %s19
        %p242 = scmp.lt.s32.totalorder %s241, 255
        %s243 = scalar_select %p242, %s241, 255
        %s244 = smul.addr %s243, 4
        %s245 = scalar_lea.vmem %s4, %s244
        %s246 = smul.u32 128, %s19
        %s247 = smul.u32 128, %s19
        %v249 = vld [vmem:[%s239] sm:$0xf]
        %v250 = vld [vmem:[%s239 + $0x4] sm:$0xf]
        %v251 = vld [vmem:[%s239 + $0x8] sm:$0xf]
        %v252 = vld [vmem:[%s239 + $0xc] sm:$0xf]
        %v253 = vld [vmem:[%s239 + $0x10] sm:$0xf]
        %v254 = vld [vmem:[%s239 + $0x14] sm:$0xf]
        %v255 = vld [vmem:[%s239 + $0x18] sm:$0xf]
        %v256 = vld [vmem:[%s239 + $0x1c] sm:$0xf]
        %v257 = vld [vmem:[%s239 + $0x20] sm:$0xf]
        %v258 = vld [vmem:[%s239 + $0x24] sm:$0xf]
        %v259 = vld [vmem:[%s239 + $0x28] sm:$0xf]
        %v260 = vld [vmem:[%s239 + $0x2c] sm:$0xf]
        %v261 = vld [vmem:[%s239 + $0x30] sm:$0xf]
        %v262 = vld [vmem:[%s239 + $0x34] sm:$0xf]
        %v263 = vld [vmem:[%s239 + $0x38] sm:$0xf]
        %v264 = vld [vmem:[%s239 + $0x3c] sm:$0xf]
        %v265 = vld [vmem:[%s239 + $0x40] sm:$0xf]
        %v266 = vld [vmem:[%s239 + $0x44] sm:$0xf]
        %v267 = vld [vmem:[%s239 + $0x48] sm:$0xf]
        %v268 = vld [vmem:[%s239 + $0x4c] sm:$0xf]
        %v269 = vld [vmem:[%s239 + $0x50] sm:$0xf]
        %v270 = vld [vmem:[%s239 + $0x54] sm:$0xf]
        %v271 = vld [vmem:[%s239 + $0x58] sm:$0xf]
        %v272 = vld [vmem:[%s239 + $0x5c] sm:$0xf]
        %v273 = vld [vmem:[%s239 + $0x60] sm:$0xf]
        %v274 = vld [vmem:[%s239 + $0x64] sm:$0xf]
        %v275 = vld [vmem:[%s239 + $0x68] sm:$0xf]
        %v276 = vld [vmem:[%s239 + $0x6c] sm:$0xf]
        %v277 = vld [vmem:[%s239 + $0x70] sm:$0xf]
        %v278 = vld [vmem:[%s239 + $0x74] sm:$0xf]
        %v279 = vld [vmem:[%s239 + $0x78] sm:$0xf]
        %v280 = vld [vmem:[%s239 + $0x7c] sm:$0xf]
        %v281 = vld [vmem:[%s239 + $0x80] sm:$0xf]
        %v282 = vld [vmem:[%s239 + $0x84] sm:$0xf]
        %v283 = vld [vmem:[%s239 + $0x88] sm:$0xf]
        %v284 = vld [vmem:[%s239 + $0x8c] sm:$0xf]
        %v285 = vld [vmem:[%s239 + $0x90] sm:$0xf]
        %v286 = vld [vmem:[%s239 + $0x94] sm:$0xf]
        %v287 = vld [vmem:[%s239 + $0x98] sm:$0xf]
        %v288 = vld [vmem:[%s239 + $0x9c] sm:$0xf]
        %v289 = vld [vmem:[%s239 + $0xa0] sm:$0xf]
        %v290 = vld [vmem:[%s239 + $0xa4] sm:$0xf]
        %v291 = vld [vmem:[%s239 + $0xa8] sm:$0xf]
        %v292 = vld [vmem:[%s239 + $0xac] sm:$0xf]
        %v293 = vld [vmem:[%s239 + $0xb0] sm:$0xf]
        %v294 = vld [vmem:[%s239 + $0xb4] sm:$0xf]
        %v295 = vld [vmem:[%s239 + $0xb8] sm:$0xf]
        %v296 = vld [vmem:[%s239 + $0xbc] sm:$0xf]
        %v297 = vld [vmem:[%s239 + $0xc0] sm:$0xf]
        %v298 = vld [vmem:[%s239 + $0xc4] sm:$0xf]
        %v299 = vld [vmem:[%s239 + $0xc8] sm:$0xf]
        %v300 = vld [vmem:[%s239 + $0xcc] sm:$0xf]
        %v301 = vld [vmem:[%s239 + $0xd0] sm:$0xf]
        %v302 = vld [vmem:[%s239 + $0xd4] sm:$0xf]
        %v303 = vld [vmem:[%s239 + $0xd8] sm:$0xf]
        %v304 = vld [vmem:[%s239 + $0xdc] sm:$0xf]
        %v305 = vld [vmem:[%s239 + $0xe0] sm:$0xf]
        %v306 = vld [vmem:[%s239 + $0xe4] sm:$0xf]
        %v307 = vld [vmem:[%s239 + $0xe8] sm:$0xf]
        %v308 = vld [vmem:[%s239 + $0xec] sm:$0xf]
        %v309 = vld [vmem:[%s239 + $0xf0] sm:$0xf]
        %v310 = vld [vmem:[%s239 + $0xf4] sm:$0xf]
        %v311 = vld [vmem:[%s239 + $0xf8] sm:$0xf]
        %v312 = vld [vmem:[%s239 + $0xfc] sm:$0xf]
        %v313 = vld [vmem:[%s239 + $0x100] sm:$0xf]
        %v314 = vld [vmem:[%s239 + $0x104] sm:$0xf]
        %v315 = vld [vmem:[%s239 + $0x108] sm:$0xf]
        %v316 = vld [vmem:[%s239 + $0x10c] sm:$0xf]
        %v317 = vld [vmem:[%s239 + $0x110] sm:$0xf]
        %v318 = vld [vmem:[%s239 + $0x114] sm:$0xf]
        %v319 = vld [vmem:[%s239 + $0x118] sm:$0xf]
        %v320 = vld [vmem:[%s239 + $0x11c] sm:$0xf]
        %v321 = vld [vmem:[%s239 + $0x120] sm:$0xf]
        %v322 = vld [vmem:[%s239 + $0x124] sm:$0xf]
        %v323 = vld [vmem:[%s239 + $0x128] sm:$0xf]
        %v324 = vld [vmem:[%s239 + $0x12c] sm:$0xf]
        %v325 = vld [vmem:[%s239 + $0x130] sm:$0xf]
        %v326 = vld [vmem:[%s239 + $0x134] sm:$0xf]
        %v327 = vld [vmem:[%s239 + $0x138] sm:$0xf]
        %v328 = vld [vmem:[%s239 + $0x13c] sm:$0xf]
        %v329 = vld [vmem:[%s239 + $0x140] sm:$0xf]
        %v330 = vld [vmem:[%s239 + $0x144] sm:$0xf]
        %v331 = vld [vmem:[%s239 + $0x148] sm:$0xf]
        %v332 = vld [vmem:[%s239 + $0x14c] sm:$0xf]
        %v333 = vld [vmem:[%s239 + $0x150] sm:$0xf]
        %v334 = vld [vmem:[%s239 + $0x154] sm:$0xf]
        %v335 = vld [vmem:[%s239 + $0x158] sm:$0xf]
        %v336 = vld [vmem:[%s239 + $0x15c] sm:$0xf]
        %v337 = vld [vmem:[%s239 + $0x160] sm:$0xf]
        %v338 = vld [vmem:[%s239 + $0x164] sm:$0xf]
        %v339 = vld [vmem:[%s239 + $0x168] sm:$0xf]
        %v340 = vld [vmem:[%s239 + $0x16c] sm:$0xf]
        %v341 = vld [vmem:[%s239 + $0x170] sm:$0xf]
        %v342 = vld [vmem:[%s239 + $0x174] sm:$0xf]
        %v343 = vld [vmem:[%s239 + $0x178] sm:$0xf]
        %v344 = vld [vmem:[%s239 + $0x17c] sm:$0xf]
        %v345 = vld [vmem:[%s239 + $0x180] sm:$0xf]
        %v346 = vld [vmem:[%s239 + $0x184] sm:$0xf]
        %v347 = vld [vmem:[%s239 + $0x188] sm:$0xf]
        %v348 = vld [vmem:[%s239 + $0x18c] sm:$0xf]
        %v349 = vld [vmem:[%s239 + $0x190] sm:$0xf]
        %v350 = vld [vmem:[%s239 + $0x194] sm:$0xf]
        %v351 = vld [vmem:[%s239 + $0x198] sm:$0xf]
        %v352 = vld [vmem:[%s239 + $0x19c] sm:$0xf]
        %v353 = vld [vmem:[%s239 + $0x1a0] sm:$0xf]
        %v354 = vld [vmem:[%s239 + $0x1a4] sm:$0xf]
        %v355 = vld [vmem:[%s239 + $0x1a8] sm:$0xf]
        %v356 = vld [vmem:[%s239 + $0x1ac] sm:$0xf]
        %v357 = vld [vmem:[%s239 + $0x1b0] sm:$0xf]
        %v358 = vld [vmem:[%s239 + $0x1b4] sm:$0xf]
        %v359 = vld [vmem:[%s239 + $0x1b8] sm:$0xf]
        %v360 = vld [vmem:[%s239 + $0x1bc] sm:$0xf]
        %v361 = vld [vmem:[%s239 + $0x1c0] sm:$0xf]
        %v362 = vld [vmem:[%s239 + $0x1c4] sm:$0xf]
        %v363 = vld [vmem:[%s239 + $0x1c8] sm:$0xf]
        %v364 = vld [vmem:[%s239 + $0x1cc] sm:$0xf]
        %v365 = vld [vmem:[%s239 + $0x1d0] sm:$0xf]
        %v366 = vld [vmem:[%s239 + $0x1d4] sm:$0xf]
        %v367 = vld [vmem:[%s239 + $0x1d8] sm:$0xf]
        %v368 = vld [vmem:[%s239 + $0x1dc] sm:$0xf]
        %v369 = vld [vmem:[%s239 + $0x1e0] sm:$0xf]
        %v370 = vld [vmem:[%s239 + $0x1e4] sm:$0xf]
        %v371 = vld [vmem:[%s239 + $0x1e8] sm:$0xf]
        %v372 = vld [vmem:[%s239 + $0x1ec] sm:$0xf]
        %v373 = vld [vmem:[%s239 + $0x1f0] sm:$0xf]
        %v374 = vld [vmem:[%s239 + $0x1f4] sm:$0xf]
        %v375 = vld [vmem:[%s239 + $0x1f8] sm:$0xf]
        %v376 = vld [vmem:[%s239 + $0x1fc] sm:$0xf]
        %v377 = vld [vmem:[%s1] sm:$0xf]
        %v378 = vld [vmem:[%s1 + $0x4] sm:$0xf]
        %v379 = vld [vmem:[%s1 + $0x8] sm:$0xf]
        %v380 = vld [vmem:[%s1 + $0xc] sm:$0xf]
        %v381 = vld [vmem:[%s1 + $0x10] sm:$0xf]
        %v382 = vld [vmem:[%s1 + $0x14] sm:$0xf]
        %v383 = vld [vmem:[%s1 + $0x18] sm:$0xf]
        %v384 = vld [vmem:[%s1 + $0x1c] sm:$0xf]
        %v513 = vunpack.c.l.b16 %v249
        %v514 = vunpack.c.l.b16 %v250
        %v515 = vunpack.c.l.b16 %v251
        %v516 = vunpack.c.l.b16 %v252
        %v517 = vunpack.c.l.b16 %v253
        %v518 = vunpack.c.l.b16 %v254
        %v519 = vunpack.c.l.b16 %v255
        %v520 = vunpack.c.l.b16 %v256
        %v521 = vunpack.c.l.b16 %v257
        %v522 = vunpack.c.l.b16 %v258
        %v523 = vunpack.c.l.b16 %v259
        %v524 = vunpack.c.l.b16 %v260
        %v525 = vunpack.c.l.b16 %v261
        %v526 = vunpack.c.l.b16 %v262
        %v527 = vunpack.c.l.b16 %v263
        %v528 = vunpack.c.l.b16 %v264
        %v529 = vunpack.c.l.b16 %v265
        %v530 = vunpack.c.l.b16 %v266
        %v531 = vunpack.c.l.b16 %v267
        %v532 = vunpack.c.l.b16 %v268
        %v533 = vunpack.c.l.b16 %v269
        %v534 = vunpack.c.l.b16 %v270
        %v535 = vunpack.c.l.b16 %v271
        %v536 = vunpack.c.l.b16 %v272
        %v537 = vunpack.c.l.b16 %v273
        %v538 = vunpack.c.l.b16 %v274
        %v539 = vunpack.c.l.b16 %v275
        %v540 = vunpack.c.l.b16 %v276
        %v541 = vunpack.c.l.b16 %v277
        %v542 = vunpack.c.l.b16 %v278
        %v543 = vunpack.c.l.b16 %v279
        %v544 = vunpack.c.l.b16 %v280
        %v545 = vunpack.c.l.b16 %v281
        %v546 = vunpack.c.l.b16 %v282
        %v547 = vunpack.c.l.b16 %v283
        %v548 = vunpack.c.l.b16 %v284
        %v549 = vunpack.c.l.b16 %v285
        %v550 = vunpack.c.l.b16 %v286
        %v551 = vunpack.c.l.b16 %v287
        %v552 = vunpack.c.l.b16 %v288
        %v553 = vunpack.c.l.b16 %v289
        %v554 = vunpack.c.l.b16 %v290
        %v555 = vunpack.c.l.b16 %v291
        %v556 = vunpack.c.l.b16 %v292
        %v557 = vunpack.c.l.b16 %v293
        %v558 = vunpack.c.l.b16 %v294
        %v559 = vunpack.c.l.b16 %v295
        %v560 = vunpack.c.l.b16 %v296
        %v561 = vunpack.c.l.b16 %v297
        %v562 = vunpack.c.l.b16 %v298
        %v563 = vunpack.c.l.b16 %v299
        %v564 = vunpack.c.l.b16 %v300
        %v565 = vunpack.c.l.b16 %v301
        %v566 = vunpack.c.l.b16 %v302
        %v567 = vunpack.c.l.b16 %v303
        %v568 = vunpack.c.l.b16 %v304
        %v569 = vunpack.c.l.b16 %v305
        %v570 = vunpack.c.l.b16 %v306
        %v571 = vunpack.c.l.b16 %v307
        %v572 = vunpack.c.l.b16 %v308
        %v573 = vunpack.c.l.b16 %v309
        %v574 = vunpack.c.l.b16 %v310
        %v575 = vunpack.c.l.b16 %v311
        %v576 = vunpack.c.l.b16 %v312
        %v577 = vunpack.c.l.b16 %v313
        %v578 = vunpack.c.l.b16 %v314
        %v579 = vunpack.c.l.b16 %v315
        %v580 = vunpack.c.l.b16 %v316
        %v581 = vunpack.c.l.b16 %v317
        %v582 = vunpack.c.l.b16 %v318
        %v583 = vunpack.c.l.b16 %v319
        %v584 = vunpack.c.l.b16 %v320
        %v585 = vunpack.c.l.b16 %v321
        %v586 = vunpack.c.l.b16 %v322
        %v587 = vunpack.c.l.b16 %v323
        %v588 = vunpack.c.l.b16 %v324
        %v589 = vunpack.c.l.b16 %v325
        %v590 = vunpack.c.l.b16 %v326
        %v591 = vunpack.c.l.b16 %v327
        %v592 = vunpack.c.l.b16 %v328
        %v593 = vunpack.c.l.b16 %v329
        %v594 = vunpack.c.l.b16 %v330
        %v595 = vunpack.c.l.b16 %v331
        %v596 = vunpack.c.l.b16 %v332
        %v597 = vunpack.c.l.b16 %v333
        %v598 = vunpack.c.l.b16 %v334
        %v599 = vunpack.c.l.b16 %v335
        %v600 = vunpack.c.l.b16 %v336
        %v601 = vunpack.c.l.b16 %v337
        %v602 = vunpack.c.l.b16 %v338
        %v603 = vunpack.c.l.b16 %v339
        %v604 = vunpack.c.l.b16 %v340
        %v605 = vunpack.c.l.b16 %v341
        %v606 = vunpack.c.l.b16 %v342
        %v607 = vunpack.c.l.b16 %v343
        %v608 = vunpack.c.l.b16 %v344
        %v609 = vunpack.c.l.b16 %v345
        %v610 = vunpack.c.l.b16 %v346
        %v611 = vunpack.c.l.b16 %v347
        %v612 = vunpack.c.l.b16 %v348
        %v613 = vunpack.c.l.b16 %v349
        %v614 = vunpack.c.l.b16 %v350
        %v615 = vunpack.c.l.b16 %v351
        %v616 = vunpack.c.l.b16 %v352
        %v617 = vunpack.c.l.b16 %v353
        %v618 = vunpack.c.l.b16 %v354
        %v619 = vunpack.c.l.b16 %v355
        %v620 = vunpack.c.l.b16 %v356
        %v621 = vunpack.c.l.b16 %v357
        %v622 = vunpack.c.l.b16 %v358
        %v623 = vunpack.c.l.b16 %v359
        %v624 = vunpack.c.l.b16 %v360
        %v625 = vunpack.c.l.b16 %v361
        %v626 = vunpack.c.l.b16 %v362
        %v627 = vunpack.c.l.b16 %v363
        %v628 = vunpack.c.l.b16 %v364
        %v629 = vunpack.c.l.b16 %v365
        %v630 = vunpack.c.l.b16 %v366
        %v631 = vunpack.c.l.b16 %v367
        %v632 = vunpack.c.l.b16 %v368
        %v633 = vunpack.c.l.b16 %v369
        %v634 = vunpack.c.l.b16 %v370
        %v635 = vunpack.c.l.b16 %v371
        %v636 = vunpack.c.l.b16 %v372
        %v637 = vunpack.c.l.b16 %v373
        %v638 = vunpack.c.l.b16 %v374
        %v639 = vunpack.c.l.b16 %v375
        %v640 = vunpack.c.l.b16 %v376
        %v641 = vpack.c.b16 %v514, %v513
        %v642 = vpack.c.b16 %v516, %v515
        %v643 = vpack.c.b16 %v518, %v517
        %v644 = vpack.c.b16 %v520, %v519
        %v645 = vpack.c.b16 %v522, %v521
        %v646 = vpack.c.b16 %v524, %v523
        %v647 = vpack.c.b16 %v526, %v525
        %v648 = vpack.c.b16 %v528, %v527
        %v649 = vpack.c.b16 %v530, %v529
        %v650 = vpack.c.b16 %v532, %v531
        %v651 = vpack.c.b16 %v534, %v533
        %v652 = vpack.c.b16 %v536, %v535
        %v653 = vpack.c.b16 %v538, %v537
        %v654 = vpack.c.b16 %v540, %v539
        %v655 = vpack.c.b16 %v542, %v541
        %v656 = vpack.c.b16 %v544, %v543
        %v657 = vpack.c.b16 %v546, %v545
        %v658 = vpack.c.b16 %v548, %v547
        %v659 = vpack.c.b16 %v550, %v549
        %v660 = vpack.c.b16 %v552, %v551
        %v661 = vpack.c.b16 %v554, %v553
        %v662 = vpack.c.b16 %v556, %v555
        %v663 = vpack.c.b16 %v558, %v557
        %v664 = vpack.c.b16 %v560, %v559
        %v665 = vpack.c.b16 %v562, %v561
        %v666 = vpack.c.b16 %v564, %v563
        %v667 = vpack.c.b16 %v566, %v565
        %v668 = vpack.c.b16 %v568, %v567
        %v669 = vpack.c.b16 %v570, %v569
        %v670 = vpack.c.b16 %v572, %v571
        %v671 = vpack.c.b16 %v574, %v573
        %v672 = vpack.c.b16 %v576, %v575
        %v673 = vpack.c.b16 %v578, %v577
        %v674 = vpack.c.b16 %v580, %v579
        %v675 = vpack.c.b16 %v582, %v581
        %v676 = vpack.c.b16 %v584, %v583
        %v677 = vpack.c.b16 %v586, %v585
        %v678 = vpack.c.b16 %v588, %v587
        %v679 = vpack.c.b16 %v590, %v589
        %v680 = vpack.c.b16 %v592, %v591
        %v681 = vpack.c.b16 %v594, %v593
        %v682 = vpack.c.b16 %v596, %v595
        %v683 = vpack.c.b16 %v598, %v597
        %v684 = vpack.c.b16 %v600, %v599
        %v685 = vpack.c.b16 %v602, %v601
        %v686 = vpack.c.b16 %v604, %v603
        %v687 = vpack.c.b16 %v606, %v605
        %v688 = vpack.c.b16 %v608, %v607
        %v689 = vpack.c.b16 %v610, %v609
        %v690 = vpack.c.b16 %v612, %v611
        %v691 = vpack.c.b16 %v614, %v613
        %v692 = vpack.c.b16 %v616, %v615
        %v693 = vpack.c.b16 %v618, %v617
        %v694 = vpack.c.b16 %v620, %v619
        %v695 = vpack.c.b16 %v622, %v621
        %v696 = vpack.c.b16 %v624, %v623
        %v697 = vpack.c.b16 %v626, %v625
        %v698 = vpack.c.b16 %v628, %v627
        %v699 = vpack.c.b16 %v630, %v629
        %v700 = vpack.c.b16 %v632, %v631
        %v701 = vpack.c.b16 %v634, %v633
        %v702 = vpack.c.b16 %v636, %v635
        %v703 = vpack.c.b16 %v638, %v637
        %v704 = vpack.c.b16 %v640, %v639
        %v713 = vunpack.c.l.b16 %v377
        %v714 = vunpack.c.l.b16 %v378
        %v715 = vunpack.c.l.b16 %v379
        %v716 = vunpack.c.l.b16 %v380
        %v717 = vunpack.c.l.b16 %v381
        %v718 = vunpack.c.l.b16 %v382
        %v719 = vunpack.c.l.b16 %v383
        %v720 = vunpack.c.l.b16 %v384
        %v721 = vpack.c.b16 %v714, %v713
        %v722 = vpack.c.b16 %v716, %v715
        %v723 = vpack.c.b16 %v718, %v717
        %v724 = vpack.c.b16 %v720, %v719
        %vm729 = vcmask 523264
        %v731 = vsel %vm729, %v641, 0
        %v734 = vsel %vm729, %v642, 0
        %v737 = vsel %vm729, %v643, 0
        %v740 = vsel %vm729, %v644, 0
        %v743 = vsel %vm729, %v645, 0
        %v746 = vsel %vm729, %v646, 0
        %v749 = vsel %vm729, %v647, 0
        %v752 = vsel %vm729, %v648, 0
        %v755 = vsel %vm729, %v649, 0
        %v758 = vsel %vm729, %v650, 0
        %v761 = vsel %vm729, %v651, 0
        %v764 = vsel %vm729, %v652, 0
        %v767 = vsel %vm729, %v653, 0
        %v770 = vsel %vm729, %v654, 0
        %v773 = vsel %vm729, %v655, 0
        %v776 = vsel %vm729, %v656, 0
        %v779 = vsel %vm729, %v657, 0
        %v782 = vsel %vm729, %v658, 0
        %v785 = vsel %vm729, %v659, 0
        %v788 = vsel %vm729, %v660, 0
        %v791 = vsel %vm729, %v661, 0
        %v794 = vsel %vm729, %v662, 0
        %v797 = vsel %vm729, %v663, 0
        %v800 = vsel %vm729, %v664, 0
        %v803 = vsel %vm729, %v665, 0
        %v806 = vsel %vm729, %v666, 0
        %v809 = vsel %vm729, %v667, 0
        %v812 = vsel %vm729, %v668, 0
        %v815 = vsel %vm729, %v669, 0
        %v818 = vsel %vm729, %v670, 0
        %v821 = vsel %vm729, %v671, 0
        %v824 = vsel %vm729, %v672, 0
        %v827 = vsel %vm729, %v673, 0
        %v830 = vsel %vm729, %v674, 0
        %v833 = vsel %vm729, %v675, 0
        %v836 = vsel %vm729, %v676, 0
        %v839 = vsel %vm729, %v677, 0
        %v842 = vsel %vm729, %v678, 0
        %v845 = vsel %vm729, %v679, 0
        %v848 = vsel %vm729, %v680, 0
        %v851 = vsel %vm729, %v681, 0
        %v854 = vsel %vm729, %v682, 0
        %v857 = vsel %vm729, %v683, 0
        %v860 = vsel %vm729, %v684, 0
        %v863 = vsel %vm729, %v685, 0
        %v866 = vsel %vm729, %v686, 0
        %v869 = vsel %vm729, %v687, 0
        %v872 = vsel %vm729, %v688, 0
        %v875 = vsel %vm729, %v689, 0
        %v878 = vsel %vm729, %v690, 0
        %v881 = vsel %vm729, %v691, 0
        %v884 = vsel %vm729, %v692, 0
        %v887 = vsel %vm729, %v693, 0
        %v890 = vsel %vm729, %v694, 0
        %v893 = vsel %vm729, %v695, 0
        %v896 = vsel %vm729, %v696, 0
        %v899 = vsel %vm729, %v697, 0
        %v902 = vsel %vm729, %v698, 0
        %v905 = vsel %vm729, %v699, 0
        %v908 = vsel %vm729, %v700, 0
        %v911 = vsel %vm729, %v701, 0
        %v914 = vsel %vm729, %v702, 0
        %v917 = vsel %vm729, %v703, 0
        %v920 = vsel %vm729, %v704, 0
        %922 = vmatprep.subr.bf16.mxu0 0
        %923 = vmatpush1.bf16.msra.mxu0 0
        %924 = vmatprep.subr.bf16.mxu0 0
        %925 = vmatpush1.bf16.msra.mxu0 0
        %926 = vmatprep.subr.bf16.mxu0 0
        %927 = vmatpush1.bf16.msra.mxu0 0
        %928 = vmatprep.subr.bf16.mxu0 0
        %929 = vmatpush1.bf16.msra.mxu0 0
        %930 = vmatprep.subr.bf16.mxu0 0
        %931 = vmatpush1.bf16.msra.mxu0 %v724
        %932 = vmatprep.subr.bf16.mxu0 0
        %933 = vmatpush1.bf16.msra.mxu0 %v723
        %934 = vmatprep.subr.bf16.mxu0 0
        %935 = vmatpush1.bf16.msra.mxu0 %v722
        %936 = vmatprep.subr.bf16.mxu0 0
        %937 = vmatpush1.bf16.msra.mxu0 %v721
        %938 = vmatprep.subr.bf16.mxu0 0
        %939 = vmatpush2.bf16.msra.mxu0 0
        %940 = vmatprep.subr.bf16.mxu0 0
        %941 = vmatpush2.bf16.msra.mxu0 0
        %942 = vmatprep.subr.bf16.mxu0 0
        %943 = vmatpush2.bf16.msra.mxu0 0
        %944 = vmatprep.subr.bf16.mxu0 0
        %945 = vmatpush2.bf16.msra.mxu0 0
        %946 = vmatprep.subr.bf16.mxu0 0
        %947 = vmatpush2.bf16.msra.mxu0 0
        %948 = vmatprep.subr.bf16.mxu0 0
        %949 = vmatpush2.bf16.msra.mxu0 0
        %950 = vmatprep.subr.bf16.mxu0 0
        %951 = vmatpush2.bf16.msra.mxu0 0
        %952 = vmatprep.subr.bf16.mxu0 0
        %953 = vmatpush2.bf16.msra.mxu0 0
        %954 = vmatprep.mubr.bf16.mxu0 0
        %955 = vmatmul.mubr.bf16.gmra.mxu0 %v731
        %v956 = vpop.f32.mrf.mxu0
        %v957 = vadd.f32 0.0, %v956
        %v958 = vpop.f32.mrf.mxu0
        %v959 = vpop.f32.mrf.mxu0
        %v960 = vadd.f32 0.0, %v959
        %v961 = vpop.f32.mrf.mxu0
        %962 = vmatprep.mubr.bf16.mxu0 0
        %963 = vmatmul.mubr.bf16.gmra.mxu0 %v734
        %v964 = vpop.f32.mrf.mxu0
        %v965 = vadd.f32 0.0, %v964
        %v966 = vpop.f32.mrf.mxu0
        %v967 = vpop.f32.mrf.mxu0
        %v968 = vadd.f32 0.0, %v967
        %v969 = vpop.f32.mrf.mxu0
        %970 = vmatprep.mubr.bf16.mxu0 0
        %971 = vmatmul.mubr.bf16.gmra.mxu0 %v737
        %v972 = vpop.f32.mrf.mxu0
        %v973 = vadd.f32 0.0, %v972
        %v974 = vpop.f32.mrf.mxu0
        %v975 = vpop.f32.mrf.mxu0
        %v976 = vadd.f32 0.0, %v975
        %v977 = vpop.f32.mrf.mxu0
        %978 = vmatprep.mubr.bf16.mxu0 0
        %979 = vmatmul.mubr.bf16.gmra.mxu0 %v740
        %v980 = vpop.f32.mrf.mxu0
        %v981 = vadd.f32 0.0, %v980
        %v982 = vpop.f32.mrf.mxu0
        %v983 = vpop.f32.mrf.mxu0
        %v984 = vadd.f32 0.0, %v983
        %v985 = vpop.f32.mrf.mxu0
        %986 = vmatprep.mubr.bf16.mxu0 0
        %987 = vmatmul.mubr.bf16.gmra.mxu0 %v743
        %v988 = vpop.f32.mrf.mxu0
        %v989 = vadd.f32 0.0, %v988
        %v990 = vpop.f32.mrf.mxu0
        %v991 = vpop.f32.mrf.mxu0
        %v992 = vadd.f32 0.0, %v991
        %v993 = vpop.f32.mrf.mxu0
        %994 = vmatprep.mubr.bf16.mxu0 0
        %995 = vmatmul.mubr.bf16.gmra.mxu0 %v746
        %v996 = vpop.f32.mrf.mxu0
        %v997 = vadd.f32 0.0, %v996
        %v998 = vpop.f32.mrf.mxu0
        %v999 = vpop.f32.mrf.mxu0
        %v1000 = vadd.f32 0.0, %v999
        %v1001 = vpop.f32.mrf.mxu0
        %1002 = vmatprep.mubr.bf16.mxu0 0
        %1003 = vmatmul.mubr.bf16.gmra.mxu0 %v749
        %v1004 = vpop.f32.mrf.mxu0
        %v1005 = vadd.f32 0.0, %v1004
        %v1006 = vpop.f32.mrf.mxu0
        %v1007 = vpop.f32.mrf.mxu0
        %v1008 = vadd.f32 0.0, %v1007
        %v1009 = vpop.f32.mrf.mxu0
        %1010 = vmatprep.mubr.bf16.mxu0 0
        %1011 = vmatmul.mubr.bf16.gmra.mxu0 %v752
        %v1012 = vpop.f32.mrf.mxu0
        %v1013 = vadd.f32 0.0, %v1012
        %v1014 = vpop.f32.mrf.mxu0
        %v1015 = vpop.f32.mrf.mxu0
        %v1016 = vadd.f32 0.0, %v1015
        %v1017 = vpop.f32.mrf.mxu0
        %1018 = vmatprep.mubr.bf16.mxu0 0
        %1019 = vmatmul.mubr.bf16.gmra.mxu0 %v755
        %v1020 = vpop.f32.mrf.mxu0
        %v1021 = vadd.f32 0.0, %v1020
        %v1022 = vpop.f32.mrf.mxu0
        %v1023 = vpop.f32.mrf.mxu0
        %v1024 = vadd.f32 0.0, %v1023
        %v1025 = vpop.f32.mrf.mxu0
        %1026 = vmatprep.mubr.bf16.mxu0 0
        %1027 = vmatmul.mubr.bf16.gmra.mxu0 %v758
        %v1028 = vpop.f32.mrf.mxu0
        %v1029 = vadd.f32 0.0, %v1028
        %v1030 = vpop.f32.mrf.mxu0
        %v1031 = vpop.f32.mrf.mxu0
        %v1032 = vadd.f32 0.0, %v1031
        %v1033 = vpop.f32.mrf.mxu0
        %1034 = vmatprep.mubr.bf16.mxu0 0
        %1035 = vmatmul.mubr.bf16.gmra.mxu0 %v761
        %v1036 = vpop.f32.mrf.mxu0
        %v1037 = vadd.f32 0.0, %v1036
        %v1038 = vpop.f32.mrf.mxu0
        %v1039 = vpop.f32.mrf.mxu0
        %v1040 = vadd.f32 0.0, %v1039
        %v1041 = vpop.f32.mrf.mxu0
        %1042 = vmatprep.mubr.bf16.mxu0 0
        %1043 = vmatmul.mubr.bf16.gmra.mxu0 %v764
        %v1044 = vpop.f32.mrf.mxu0
        %v1045 = vadd.f32 0.0, %v1044
        %v1046 = vpop.f32.mrf.mxu0
        %v1047 = vpop.f32.mrf.mxu0
        %v1048 = vadd.f32 0.0, %v1047
        %v1049 = vpop.f32.mrf.mxu0
        %1050 = vmatprep.mubr.bf16.mxu0 0
        %1051 = vmatmul.mubr.bf16.gmra.mxu0 %v767
        %v1052 = vpop.f32.mrf.mxu0
        %v1053 = vadd.f32 0.0, %v1052
        %v1054 = vpop.f32.mrf.mxu0
        %v1055 = vpop.f32.mrf.mxu0
        %v1056 = vadd.f32 0.0, %v1055
        %v1057 = vpop.f32.mrf.mxu0
        %1058 = vmatprep.mubr.bf16.mxu0 0
        %1059 = vmatmul.mubr.bf16.gmra.mxu0 %v770
        %v1060 = vpop.f32.mrf.mxu0
        %v1061 = vadd.f32 0.0, %v1060
        %v1062 = vpop.f32.mrf.mxu0
        %v1063 = vpop.f32.mrf.mxu0
        %v1064 = vadd.f32 0.0, %v1063
        %v1065 = vpop.f32.mrf.mxu0
        %1066 = vmatprep.mubr.bf16.mxu0 0
        %1067 = vmatmul.mubr.bf16.gmra.mxu0 %v773
        %v1068 = vpop.f32.mrf.mxu0
        %v1069 = vadd.f32 0.0, %v1068
        %v1070 = vpop.f32.mrf.mxu0
        %v1071 = vpop.f32.mrf.mxu0
        %v1072 = vadd.f32 0.0, %v1071
        %v1073 = vpop.f32.mrf.mxu0
        %1074 = vmatprep.mubr.bf16.mxu0 0
        %1075 = vmatmul.mubr.bf16.gmra.mxu0 %v776
        %v1076 = vpop.f32.mrf.mxu0
        %v1077 = vadd.f32 0.0, %v1076
        %v1078 = vpop.f32.mrf.mxu0
        %v1079 = vpop.f32.mrf.mxu0
        %v1080 = vadd.f32 0.0, %v1079
        %v1081 = vpop.f32.mrf.mxu0
        %1082 = vmatprep.mubr.bf16.mxu0 0
        %1083 = vmatmul.mubr.bf16.gmra.mxu0 %v779
        %v1084 = vpop.f32.mrf.mxu0
        %v1085 = vadd.f32 0.0, %v1084
        %v1086 = vpop.f32.mrf.mxu0
        %v1087 = vpop.f32.mrf.mxu0
        %v1088 = vadd.f32 0.0, %v1087
        %v1089 = vpop.f32.mrf.mxu0
        %1090 = vmatprep.mubr.bf16.mxu0 0
        %1091 = vmatmul.mubr.bf16.gmra.mxu0 %v782
        %v1092 = vpop.f32.mrf.mxu0
        %v1093 = vadd.f32 0.0, %v1092
        %v1094 = vpop.f32.mrf.mxu0
        %v1095 = vpop.f32.mrf.mxu0
        %v1096 = vadd.f32 0.0, %v1095
        %v1097 = vpop.f32.mrf.mxu0
        %1098 = vmatprep.mubr.bf16.mxu0 0
        %1099 = vmatmul.mubr.bf16.gmra.mxu0 %v785
        %v1100 = vpop.f32.mrf.mxu0
        %v1101 = vadd.f32 0.0, %v1100
        %v1102 = vpop.f32.mrf.mxu0
        %v1103 = vpop.f32.mrf.mxu0
        %v1104 = vadd.f32 0.0, %v1103
        %v1105 = vpop.f32.mrf.mxu0
        %1106 = vmatprep.mubr.bf16.mxu0 0
        %1107 = vmatmul.mubr.bf16.gmra.mxu0 %v788
        %v1108 = vpop.f32.mrf.mxu0
        %v1109 = vadd.f32 0.0, %v1108
        %v1110 = vpop.f32.mrf.mxu0
        %v1111 = vpop.f32.mrf.mxu0
        %v1112 = vadd.f32 0.0, %v1111
        %v1113 = vpop.f32.mrf.mxu0
        %1114 = vmatprep.mubr.bf16.mxu0 0
        %1115 = vmatmul.mubr.bf16.gmra.mxu0 %v791
        %v1116 = vpop.f32.mrf.mxu0
        %v1117 = vadd.f32 0.0, %v1116
        %v1118 = vpop.f32.mrf.mxu0
        %v1119 = vpop.f32.mrf.mxu0
        %v1120 = vadd.f32 0.0, %v1119
        %v1121 = vpop.f32.mrf.mxu0
        %1122 = vmatprep.mubr.bf16.mxu0 0
        %1123 = vmatmul.mubr.bf16.gmra.mxu0 %v794
        %v1124 = vpop.f32.mrf.mxu0
        %v1125 = vadd.f32 0.0, %v1124
        %v1126 = vpop.f32.mrf.mxu0
        %v1127 = vpop.f32.mrf.mxu0
        %v1128 = vadd.f32 0.0, %v1127
        %v1129 = vpop.f32.mrf.mxu0
        %1130 = vmatprep.mubr.bf16.mxu0 0
        %1131 = vmatmul.mubr.bf16.gmra.mxu0 %v797
        %v1132 = vpop.f32.mrf.mxu0
        %v1133 = vadd.f32 0.0, %v1132
        %v1134 = vpop.f32.mrf.mxu0
        %v1135 = vpop.f32.mrf.mxu0
        %v1136 = vadd.f32 0.0, %v1135
        %v1137 = vpop.f32.mrf.mxu0
        %1138 = vmatprep.mubr.bf16.mxu0 0
        %1139 = vmatmul.mubr.bf16.gmra.mxu0 %v800
        %v1140 = vpop.f32.mrf.mxu0
        %v1141 = vadd.f32 0.0, %v1140
        %v1142 = vpop.f32.mrf.mxu0
        %v1143 = vpop.f32.mrf.mxu0
        %v1144 = vadd.f32 0.0, %v1143
        %v1145 = vpop.f32.mrf.mxu0
        %1146 = vmatprep.mubr.bf16.mxu0 0
        %1147 = vmatmul.mubr.bf16.gmra.mxu0 %v803
        %v1148 = vpop.f32.mrf.mxu0
        %v1149 = vadd.f32 0.0, %v1148
        %v1150 = vpop.f32.mrf.mxu0
        %v1151 = vpop.f32.mrf.mxu0
        %v1152 = vadd.f32 0.0, %v1151
        %v1153 = vpop.f32.mrf.mxu0
        %1154 = vmatprep.mubr.bf16.mxu0 0
        %1155 = vmatmul.mubr.bf16.gmra.mxu0 %v806
        %v1156 = vpop.f32.mrf.mxu0
        %v1157 = vadd.f32 0.0, %v1156
        %v1158 = vpop.f32.mrf.mxu0
        %v1159 = vpop.f32.mrf.mxu0
        %v1160 = vadd.f32 0.0, %v1159
        %v1161 = vpop.f32.mrf.mxu0
        %1162 = vmatprep.mubr.bf16.mxu0 0
        %1163 = vmatmul.mubr.bf16.gmra.mxu0 %v809
        %v1164 = vpop.f32.mrf.mxu0
        %v1165 = vadd.f32 0.0, %v1164
        %v1166 = vpop.f32.mrf.mxu0
        %v1167 = vpop.f32.mrf.mxu0
        %v1168 = vadd.f32 0.0, %v1167
        %v1169 = vpop.f32.mrf.mxu0
        %1170 = vmatprep.mubr.bf16.mxu0 0
        %1171 = vmatmul.mubr.bf16.gmra.mxu0 %v812
        %v1172 = vpop.f32.mrf.mxu0
        %v1173 = vadd.f32 0.0, %v1172
        %v1174 = vpop.f32.mrf.mxu0
        %v1175 = vpop.f32.mrf.mxu0
        %v1176 = vadd.f32 0.0, %v1175
        %v1177 = vpop.f32.mrf.mxu0
        %1178 = vmatprep.mubr.bf16.mxu0 0
        %1179 = vmatmul.mubr.bf16.gmra.mxu0 %v815
        %v1180 = vpop.f32.mrf.mxu0
        %v1181 = vadd.f32 0.0, %v1180
        %v1182 = vpop.f32.mrf.mxu0
        %v1183 = vpop.f32.mrf.mxu0
        %v1184 = vadd.f32 0.0, %v1183
        %v1185 = vpop.f32.mrf.mxu0
        %1186 = vmatprep.mubr.bf16.mxu0 0
        %1187 = vmatmul.mubr.bf16.gmra.mxu0 %v818
        %v1188 = vpop.f32.mrf.mxu0
        %v1189 = vadd.f32 0.0, %v1188
        %v1190 = vpop.f32.mrf.mxu0
        %v1191 = vpop.f32.mrf.mxu0
        %v1192 = vadd.f32 0.0, %v1191
        %v1193 = vpop.f32.mrf.mxu0
        %1194 = vmatprep.mubr.bf16.mxu0 0
        %1195 = vmatmul.mubr.bf16.gmra.mxu0 %v821
        %v1196 = vpop.f32.mrf.mxu0
        %v1197 = vadd.f32 0.0, %v1196
        %v1198 = vpop.f32.mrf.mxu0
        %v1199 = vpop.f32.mrf.mxu0
        %v1200 = vadd.f32 0.0, %v1199
        %v1201 = vpop.f32.mrf.mxu0
        %1202 = vmatprep.mubr.bf16.mxu0 0
        %1203 = vmatmul.mubr.bf16.gmra.mxu0 %v824
        %v1204 = vpop.f32.mrf.mxu0
        %v1205 = vadd.f32 0.0, %v1204
        %v1206 = vpop.f32.mrf.mxu0
        %v1207 = vpop.f32.mrf.mxu0
        %v1208 = vadd.f32 0.0, %v1207
        %v1209 = vpop.f32.mrf.mxu0
        %1210 = vmatprep.mubr.bf16.mxu0 0
        %1211 = vmatmul.mubr.bf16.gmra.mxu0 %v827
        %v1212 = vpop.f32.mrf.mxu0
        %v1213 = vadd.f32 0.0, %v1212
        %v1214 = vpop.f32.mrf.mxu0
        %v1215 = vpop.f32.mrf.mxu0
        %v1216 = vadd.f32 0.0, %v1215
        %v1217 = vpop.f32.mrf.mxu0
        %1218 = vmatprep.mubr.bf16.mxu0 0
        %1219 = vmatmul.mubr.bf16.gmra.mxu0 %v830
        %v1220 = vpop.f32.mrf.mxu0
        %v1221 = vadd.f32 0.0, %v1220
        %v1222 = vpop.f32.mrf.mxu0
        %v1223 = vpop.f32.mrf.mxu0
        %v1224 = vadd.f32 0.0, %v1223
        %v1225 = vpop.f32.mrf.mxu0
        %1226 = vmatprep.mubr.bf16.mxu0 0
        %1227 = vmatmul.mubr.bf16.gmra.mxu0 %v833
        %v1228 = vpop.f32.mrf.mxu0
        %v1229 = vadd.f32 0.0, %v1228
        %v1230 = vpop.f32.mrf.mxu0
        %v1231 = vpop.f32.mrf.mxu0
        %v1232 = vadd.f32 0.0, %v1231
        %v1233 = vpop.f32.mrf.mxu0
        %1234 = vmatprep.mubr.bf16.mxu0 0
        %1235 = vmatmul.mubr.bf16.gmra.mxu0 %v836
        %v1236 = vpop.f32.mrf.mxu0
        %v1237 = vadd.f32 0.0, %v1236
        %v1238 = vpop.f32.mrf.mxu0
        %v1239 = vpop.f32.mrf.mxu0
        %v1240 = vadd.f32 0.0, %v1239
        %v1241 = vpop.f32.mrf.mxu0
        %1242 = vmatprep.mubr.bf16.mxu0 0
        %1243 = vmatmul.mubr.bf16.gmra.mxu0 %v839
        %v1244 = vpop.f32.mrf.mxu0
        %v1245 = vadd.f32 0.0, %v1244
        %v1246 = vpop.f32.mrf.mxu0
        %v1247 = vpop.f32.mrf.mxu0
        %v1248 = vadd.f32 0.0, %v1247
        %v1249 = vpop.f32.mrf.mxu0
        %1250 = vmatprep.mubr.bf16.mxu0 0
        %1251 = vmatmul.mubr.bf16.gmra.mxu0 %v842
        %v1252 = vpop.f32.mrf.mxu0
        %v1253 = vadd.f32 0.0, %v1252
        %v1254 = vpop.f32.mrf.mxu0
        %v1255 = vpop.f32.mrf.mxu0
        %v1256 = vadd.f32 0.0, %v1255
        %v1257 = vpop.f32.mrf.mxu0
        %1258 = vmatprep.mubr.bf16.mxu0 0
        %1259 = vmatmul.mubr.bf16.gmra.mxu0 %v845
        %v1260 = vpop.f32.mrf.mxu0
        %v1261 = vadd.f32 0.0, %v1260
        %v1262 = vpop.f32.mrf.mxu0
        %v1263 = vpop.f32.mrf.mxu0
        %v1264 = vadd.f32 0.0, %v1263
        %v1265 = vpop.f32.mrf.mxu0
        %1266 = vmatprep.mubr.bf16.mxu0 0
        %1267 = vmatmul.mubr.bf16.gmra.mxu0 %v848
        %v1268 = vpop.f32.mrf.mxu0
        %v1269 = vadd.f32 0.0, %v1268
        %v1270 = vpop.f32.mrf.mxu0
        %v1271 = vpop.f32.mrf.mxu0
        %v1272 = vadd.f32 0.0, %v1271
        %v1273 = vpop.f32.mrf.mxu0
        %1274 = vmatprep.mubr.bf16.mxu0 0
        %1275 = vmatmul.mubr.bf16.gmra.mxu0 %v851
        %v1276 = vpop.f32.mrf.mxu0
        %v1277 = vadd.f32 0.0, %v1276
        %v1278 = vpop.f32.mrf.mxu0
        %v1279 = vpop.f32.mrf.mxu0
        %v1280 = vadd.f32 0.0, %v1279
        %v1281 = vpop.f32.mrf.mxu0
        %1282 = vmatprep.mubr.bf16.mxu0 0
        %1283 = vmatmul.mubr.bf16.gmra.mxu0 %v854
        %v1284 = vpop.f32.mrf.mxu0
        %v1285 = vadd.f32 0.0, %v1284
        %v1286 = vpop.f32.mrf.mxu0
        %v1287 = vpop.f32.mrf.mxu0
        %v1288 = vadd.f32 0.0, %v1287
        %v1289 = vpop.f32.mrf.mxu0
        %1290 = vmatprep.mubr.bf16.mxu0 0
        %1291 = vmatmul.mubr.bf16.gmra.mxu0 %v857
        %v1292 = vpop.f32.mrf.mxu0
        %v1293 = vadd.f32 0.0, %v1292
        %v1294 = vpop.f32.mrf.mxu0
        %v1295 = vpop.f32.mrf.mxu0
        %v1296 = vadd.f32 0.0, %v1295
        %v1297 = vpop.f32.mrf.mxu0
        %1298 = vmatprep.mubr.bf16.mxu0 0
        %1299 = vmatmul.mubr.bf16.gmra.mxu0 %v860
        %v1300 = vpop.f32.mrf.mxu0
        %v1301 = vadd.f32 0.0, %v1300
        %v1302 = vpop.f32.mrf.mxu0
        %v1303 = vpop.f32.mrf.mxu0
        %v1304 = vadd.f32 0.0, %v1303
        %v1305 = vpop.f32.mrf.mxu0
        %1306 = vmatprep.mubr.bf16.mxu0 0
        %1307 = vmatmul.mubr.bf16.gmra.mxu0 %v863
        %v1308 = vpop.f32.mrf.mxu0
        %v1309 = vadd.f32 0.0, %v1308
        %v1310 = vpop.f32.mrf.mxu0
        %v1311 = vpop.f32.mrf.mxu0
        %v1312 = vadd.f32 0.0, %v1311
        %v1313 = vpop.f32.mrf.mxu0
        %1314 = vmatprep.mubr.bf16.mxu0 0
        %1315 = vmatmul.mubr.bf16.gmra.mxu0 %v866
        %v1316 = vpop.f32.mrf.mxu0
        %v1317 = vadd.f32 0.0, %v1316
        %v1318 = vpop.f32.mrf.mxu0
        %v1319 = vpop.f32.mrf.mxu0
        %v1320 = vadd.f32 0.0, %v1319
        %v1321 = vpop.f32.mrf.mxu0
        %1322 = vmatprep.mubr.bf16.mxu0 0
        %1323 = vmatmul.mubr.bf16.gmra.mxu0 %v869
        %v1324 = vpop.f32.mrf.mxu0
        %v1325 = vadd.f32 0.0, %v1324
        %v1326 = vpop.f32.mrf.mxu0
        %v1327 = vpop.f32.mrf.mxu0
        %v1328 = vadd.f32 0.0, %v1327
        %v1329 = vpop.f32.mrf.mxu0
        %1330 = vmatprep.mubr.bf16.mxu0 0
        %1331 = vmatmul.mubr.bf16.gmra.mxu0 %v872
        %v1332 = vpop.f32.mrf.mxu0
        %v1333 = vadd.f32 0.0, %v1332
        %v1334 = vpop.f32.mrf.mxu0
        %v1335 = vpop.f32.mrf.mxu0
        %v1336 = vadd.f32 0.0, %v1335
        %v1337 = vpop.f32.mrf.mxu0
        %1338 = vmatprep.mubr.bf16.mxu0 0
        %1339 = vmatmul.mubr.bf16.gmra.mxu0 %v875
        %v1340 = vpop.f32.mrf.mxu0
        %v1341 = vadd.f32 0.0, %v1340
        %v1342 = vpop.f32.mrf.mxu0
        %v1343 = vpop.f32.mrf.mxu0
        %v1344 = vadd.f32 0.0, %v1343
        %v1345 = vpop.f32.mrf.mxu0
        %1346 = vmatprep.mubr.bf16.mxu0 0
        %1347 = vmatmul.mubr.bf16.gmra.mxu0 %v878
        %v1348 = vpop.f32.mrf.mxu0
        %v1349 = vadd.f32 0.0, %v1348
        %v1350 = vpop.f32.mrf.mxu0
        %v1351 = vpop.f32.mrf.mxu0
        %v1352 = vadd.f32 0.0, %v1351
        %v1353 = vpop.f32.mrf.mxu0
        %1354 = vmatprep.mubr.bf16.mxu0 0
        %1355 = vmatmul.mubr.bf16.gmra.mxu0 %v881
        %v1356 = vpop.f32.mrf.mxu0
        %v1357 = vadd.f32 0.0, %v1356
        %v1358 = vpop.f32.mrf.mxu0
        %v1359 = vpop.f32.mrf.mxu0
        %v1360 = vadd.f32 0.0, %v1359
        %v1361 = vpop.f32.mrf.mxu0
        %1362 = vmatprep.mubr.bf16.mxu0 0
        %1363 = vmatmul.mubr.bf16.gmra.mxu0 %v884
        %v1364 = vpop.f32.mrf.mxu0
        %v1365 = vadd.f32 0.0, %v1364
        %v1366 = vpop.f32.mrf.mxu0
        %v1367 = vpop.f32.mrf.mxu0
        %v1368 = vadd.f32 0.0, %v1367
        %v1369 = vpop.f32.mrf.mxu0
        %1370 = vmatprep.mubr.bf16.mxu0 0
        %1371 = vmatmul.mubr.bf16.gmra.mxu0 %v887
        %v1372 = vpop.f32.mrf.mxu0
        %v1373 = vadd.f32 0.0, %v1372
        %v1374 = vpop.f32.mrf.mxu0
        %v1375 = vpop.f32.mrf.mxu0
        %v1376 = vadd.f32 0.0, %v1375
        %v1377 = vpop.f32.mrf.mxu0
        %1378 = vmatprep.mubr.bf16.mxu0 0
        %1379 = vmatmul.mubr.bf16.gmra.mxu0 %v890
        %v1380 = vpop.f32.mrf.mxu0
        %v1381 = vadd.f32 0.0, %v1380
        %v1382 = vpop.f32.mrf.mxu0
        %v1383 = vpop.f32.mrf.mxu0
        %v1384 = vadd.f32 0.0, %v1383
        %v1385 = vpop.f32.mrf.mxu0
        %1386 = vmatprep.mubr.bf16.mxu0 0
        %1387 = vmatmul.mubr.bf16.gmra.mxu0 %v893
        %v1388 = vpop.f32.mrf.mxu0
        %v1389 = vadd.f32 0.0, %v1388
        %v1390 = vpop.f32.mrf.mxu0
        %v1391 = vpop.f32.mrf.mxu0
        %v1392 = vadd.f32 0.0, %v1391
        %v1393 = vpop.f32.mrf.mxu0
        %1394 = vmatprep.mubr.bf16.mxu0 0
        %1395 = vmatmul.mubr.bf16.gmra.mxu0 %v896
        %v1396 = vpop.f32.mrf.mxu0
        %v1397 = vadd.f32 0.0, %v1396
        %v1398 = vpop.f32.mrf.mxu0
        %v1399 = vpop.f32.mrf.mxu0
        %v1400 = vadd.f32 0.0, %v1399
        %v1401 = vpop.f32.mrf.mxu0
        %1402 = vmatprep.mubr.bf16.mxu0 0
        %1403 = vmatmul.mubr.bf16.gmra.mxu0 %v899
        %v1404 = vpop.f32.mrf.mxu0
        %v1405 = vadd.f32 0.0, %v1404
        %v1406 = vpop.f32.mrf.mxu0
        %v1407 = vpop.f32.mrf.mxu0
        %v1408 = vadd.f32 0.0, %v1407
        %v1409 = vpop.f32.mrf.mxu0
        %1410 = vmatprep.mubr.bf16.mxu0 0
        %1411 = vmatmul.mubr.bf16.gmra.mxu0 %v902
        %v1412 = vpop.f32.mrf.mxu0
        %v1413 = vadd.f32 0.0, %v1412
        %v1414 = vpop.f32.mrf.mxu0
        %v1415 = vpop.f32.mrf.mxu0
        %v1416 = vadd.f32 0.0, %v1415
        %v1417 = vpop.f32.mrf.mxu0
        %1418 = vmatprep.mubr.bf16.mxu0 0
        %1419 = vmatmul.mubr.bf16.gmra.mxu0 %v905
        %v1420 = vpop.f32.mrf.mxu0
        %v1421 = vadd.f32 0.0, %v1420
        %v1422 = vpop.f32.mrf.mxu0
        %v1423 = vpop.f32.mrf.mxu0
        %v1424 = vadd.f32 0.0, %v1423
        %v1425 = vpop.f32.mrf.mxu0
        %1426 = vmatprep.mubr.bf16.mxu0 0
        %1427 = vmatmul.mubr.bf16.gmra.mxu0 %v908
        %v1428 = vpop.f32.mrf.mxu0
        %v1429 = vadd.f32 0.0, %v1428
        %v1430 = vpop.f32.mrf.mxu0
        %v1431 = vpop.f32.mrf.mxu0
        %v1432 = vadd.f32 0.0, %v1431
        %v1433 = vpop.f32.mrf.mxu0
        %1434 = vmatprep.mubr.bf16.mxu0 0
        %1435 = vmatmul.mubr.bf16.gmra.mxu0 %v911
        %v1436 = vpop.f32.mrf.mxu0
        %v1437 = vadd.f32 0.0, %v1436
        %v1438 = vpop.f32.mrf.mxu0
        %v1439 = vpop.f32.mrf.mxu0
        %v1440 = vadd.f32 0.0, %v1439
        %v1441 = vpop.f32.mrf.mxu0
        %1442 = vmatprep.mubr.bf16.mxu0 0
        %1443 = vmatmul.mubr.bf16.gmra.mxu0 %v914
        %v1444 = vpop.f32.mrf.mxu0
        %v1445 = vadd.f32 0.0, %v1444
        %v1446 = vpop.f32.mrf.mxu0
        %v1447 = vpop.f32.mrf.mxu0
        %v1448 = vadd.f32 0.0, %v1447
        %v1449 = vpop.f32.mrf.mxu0
        %1450 = vmatprep.mubr.bf16.mxu0 0
        %1451 = vmatmul.mubr.bf16.gmra.mxu0 %v917
        %v1452 = vpop.f32.mrf.mxu0
        %v1453 = vadd.f32 0.0, %v1452
        %v1454 = vpop.f32.mrf.mxu0
        %v1455 = vpop.f32.mrf.mxu0
        %v1456 = vadd.f32 0.0, %v1455
        %v1457 = vpop.f32.mrf.mxu0
        %1458 = vmatprep.mubr.bf16.mxu0 0
        %1459 = vmatmul.mubr.bf16.gmra.mxu0 %v920
        %v1460 = vpop.f32.mrf.mxu0
        %v1461 = vadd.f32 0.0, %v1460
        %v1462 = vpop.f32.mrf.mxu0
        %v1463 = vpop.f32.mrf.mxu0
        %v1464 = vadd.f32 0.0, %v1463
        %v1465 = vpop.f32.mrf.mxu0
        %1466 = vdwg.mxu0
        %v1467 = vadd.f32 %v957, %v960
        %v1468 = vadd.f32 %v1467, %v965
        %v1469 = vadd.f32 %v1468, %v968
        %v1470 = vadd.f32 %v1469, %v973
        %v1471 = vadd.f32 %v1470, %v976
        %v1472 = vadd.f32 %v1471, %v981
        %v1473 = vadd.f32 %v1472, %v984
        %v1474 = vadd.f32 %v1473, %v989
        %v1475 = vadd.f32 %v1474, %v992
        %v1476 = vadd.f32 %v1475, %v997
        %v1477 = vadd.f32 %v1476, %v1000
        %v1478 = vadd.f32 %v1477, %v1005
        %v1479 = vadd.f32 %v1478, %v1008
        %v1480 = vadd.f32 %v1479, %v1013
        %v1481 = vadd.f32 %v1480, %v1016
        %v1482 = vadd.f32 %v1481, %v1021
        %v1483 = vadd.f32 %v1482, %v1024
        %v1484 = vadd.f32 %v1483, %v1029
        %v1485 = vadd.f32 %v1484, %v1032
        %v1486 = vadd.f32 %v1485, %v1037
        %v1487 = vadd.f32 %v1486, %v1040
        %v1488 = vadd.f32 %v1487, %v1045
        %v1489 = vadd.f32 %v1488, %v1048
        %v1490 = vadd.f32 %v1489, %v1053
        %v1491 = vadd.f32 %v1490, %v1056
        %v1492 = vadd.f32 %v1491, %v1061
        %v1493 = vadd.f32 %v1492, %v1064
        %v1494 = vadd.f32 %v1493, %v1069
        %v1495 = vadd.f32 %v1494, %v1072
        %v1496 = vadd.f32 %v1495, %v1077
        %v1497 = vadd.f32 %v1496, %v1080
        %v1498 = vadd.f32 %v1497, %v1085
        %v1499 = vadd.f32 %v1498, %v1088
        %v1500 = vadd.f32 %v1499, %v1093
        %v1501 = vadd.f32 %v1500, %v1096
        %v1502 = vadd.f32 %v1501, %v1101
        %v1503 = vadd.f32 %v1502, %v1104
        %v1504 = vadd.f32 %v1503, %v1109
        %v1505 = vadd.f32 %v1504, %v1112
        %v1506 = vadd.f32 %v1505, %v1117
        %v1507 = vadd.f32 %v1506, %v1120
        %v1508 = vadd.f32 %v1507, %v1125
        %v1509 = vadd.f32 %v1508, %v1128
        %v1510 = vadd.f32 %v1509, %v1133
        %v1511 = vadd.f32 %v1510, %v1136
        %v1512 = vadd.f32 %v1511, %v1141
        %v1513 = vadd.f32 %v1512, %v1144
        %v1514 = vadd.f32 %v1513, %v1149
        %v1515 = vadd.f32 %v1514, %v1152
        %v1516 = vadd.f32 %v1515, %v1157
        %v1517 = vadd.f32 %v1516, %v1160
        %v1518 = vadd.f32 %v1517, %v1165
        %v1519 = vadd.f32 %v1518, %v1168
        %v1520 = vadd.f32 %v1519, %v1173
        %v1521 = vadd.f32 %v1520, %v1176
        %v1522 = vadd.f32 %v1521, %v1181
        %v1523 = vadd.f32 %v1522, %v1184
        %v1524 = vadd.f32 %v1523, %v1189
        %v1525 = vadd.f32 %v1524, %v1192
        %v1526 = vadd.f32 %v1525, %v1197
        %v1527 = vadd.f32 %v1526, %v1200
        %v1528 = vadd.f32 %v1527, %v1205
        %v1529 = vadd.f32 %v1528, %v1208
        %v1530 = vrot.slane %v1529, 4
        %v1531 = vadd.f32 %v1529, %v1530
        %v1532 = vrot.slane %v1531, 2
        %v1533 = vadd.f32 %v1531, %v1532
        %v1534 = vrot.slane %v1533, 1
        %v1535 = vadd.f32 %v1533, %v1534
        %v1536 = vadd.f32 %v1213, %v1216
        %v1537 = vadd.f32 %v1536, %v1221
        %v1538 = vadd.f32 %v1537, %v1224
        %v1539 = vadd.f32 %v1538, %v1229
        %v1540 = vadd.f32 %v1539, %v1232
        %v1541 = vadd.f32 %v1540, %v1237
        %v1542 = vadd.f32 %v1541, %v1240
        %v1543 = vadd.f32 %v1542, %v1245
        %v1544 = vadd.f32 %v1543, %v1248
        %v1545 = vadd.f32 %v1544, %v1253
        %v1546 = vadd.f32 %v1545, %v1256
        %v1547 = vadd.f32 %v1546, %v1261
        %v1548 = vadd.f32 %v1547, %v1264
        %v1549 = vadd.f32 %v1548, %v1269
        %v1550 = vadd.f32 %v1549, %v1272
        %v1551 = vadd.f32 %v1550, %v1277
        %v1552 = vadd.f32 %v1551, %v1280
        %v1553 = vadd.f32 %v1552, %v1285
        %v1554 = vadd.f32 %v1553, %v1288
        %v1555 = vadd.f32 %v1554, %v1293
        %v1556 = vadd.f32 %v1555, %v1296
        %v1557 = vadd.f32 %v1556, %v1301
        %v1558 = vadd.f32 %v1557, %v1304
        %v1559 = vadd.f32 %v1558, %v1309
        %v1560 = vadd.f32 %v1559, %v1312
        %v1561 = vadd.f32 %v1560, %v1317
        %v1562 = vadd.f32 %v1561, %v1320
        %v1563 = vadd.f32 %v1562, %v1325
        %v1564 = vadd.f32 %v1563, %v1328
        %v1565 = vadd.f32 %v1564, %v1333
        %v1566 = vadd.f32 %v1565, %v1336
        %v1567 = vadd.f32 %v1566, %v1341
        %v1568 = vadd.f32 %v1567, %v1344
        %v1569 = vadd.f32 %v1568, %v1349
        %v1570 = vadd.f32 %v1569, %v1352
        %v1571 = vadd.f32 %v1570, %v1357
        %v1572 = vadd.f32 %v1571, %v1360
        %v1573 = vadd.f32 %v1572, %v1365
        %v1574 = vadd.f32 %v1573, %v1368
        %v1575 = vadd.f32 %v1574, %v1373
        %v1576 = vadd.f32 %v1575, %v1376
        %v1577 = vadd.f32 %v1576, %v1381
        %v1578 = vadd.f32 %v1577, %v1384
        %v1579 = vadd.f32 %v1578, %v1389
        %v1580 = vadd.f32 %v1579, %v1392
        %v1581 = vadd.f32 %v1580, %v1397
        %v1582 = vadd.f32 %v1581, %v1400
        %v1583 = vadd.f32 %v1582, %v1405
        %v1584 = vadd.f32 %v1583, %v1408
        %v1585 = vadd.f32 %v1584, %v1413
        %v1586 = vadd.f32 %v1585, %v1416
        %v1587 = vadd.f32 %v1586, %v1421
        %v1588 = vadd.f32 %v1587, %v1424
        %v1589 = vadd.f32 %v1588, %v1429
        %v1590 = vadd.f32 %v1589, %v1432
        %v1591 = vadd.f32 %v1590, %v1437
        %v1592 = vadd.f32 %v1591, %v1440
        %v1593 = vadd.f32 %v1592, %v1445
        %v1594 = vadd.f32 %v1593, %v1448
        %v1595 = vadd.f32 %v1594, %v1453
        %v1596 = vadd.f32 %v1595, %v1456
        %v1597 = vadd.f32 %v1596, %v1461
        %v1598 = vadd.f32 %v1597, %v1464
        %v1599 = vrot.slane %v1598, 4
        %v1600 = vadd.f32 %v1598, %v1599
        %v1601 = vrot.slane %v1600, 2
        %v1602 = vadd.f32 %v1600, %v1601
        %v1603 = vrot.slane %v1602, 1
        %v1604 = vadd.f32 %v1602, %v1603
        %v1605 = vrcp.pop 512.0
        %v1606 = vmul.f32 %v1535, %v1605
        %v1607 = vmul.f32 %v1604, %v1605
        %v1608 = vmul.f32 %v957, %v957
        %v1609 = vmul.f32 %v960, %v960
        %v1610 = vmul.f32 %v965, %v965
        %v1611 = vmul.f32 %v968, %v968
        %v1612 = vmul.f32 %v973, %v973
        %v1613 = vmul.f32 %v976, %v976
        %v1614 = vmul.f32 %v981, %v981
        %v1615 = vmul.f32 %v984, %v984
        %v1616 = vmul.f32 %v989, %v989
        %v1617 = vmul.f32 %v992, %v992
        %v1618 = vmul.f32 %v997, %v997
        %v1619 = vmul.f32 %v1000, %v1000
        %v1620 = vmul.f32 %v1005, %v1005
        %v1621 = vmul.f32 %v1008, %v1008
        %v1622 = vmul.f32 %v1013, %v1013
        %v1623 = vmul.f32 %v1016, %v1016
        %v1624 = vmul.f32 %v1021, %v1021
        %v1625 = vmul.f32 %v1024, %v1024
        %v1626 = vmul.f32 %v1029, %v1029
        %v1627 = vmul.f32 %v1032, %v1032
        %v1628 = vmul.f32 %v1037, %v1037
        %v1629 = vmul.f32 %v1040, %v1040
        %v1630 = vmul.f32 %v1045, %v1045
        %v1631 = vmul.f32 %v1048, %v1048
        %v1632 = vmul.f32 %v1053, %v1053
        %v1633 = vmul.f32 %v1056, %v1056
        %v1634 = vmul.f32 %v1061, %v1061
        %v1635 = vmul.f32 %v1064, %v1064
        %v1636 = vmul.f32 %v1069, %v1069
        %v1637 = vmul.f32 %v1072, %v1072
        %v1638 = vmul.f32 %v1077, %v1077
        %v1639 = vmul.f32 %v1080, %v1080
        %v1640 = vmul.f32 %v1085, %v1085
        %v1641 = vmul.f32 %v1088, %v1088
        %v1642 = vmul.f32 %v1093, %v1093
        %v1643 = vmul.f32 %v1096, %v1096
        %v1644 = vmul.f32 %v1101, %v1101
        %v1645 = vmul.f32 %v1104, %v1104
        %v1646 = vmul.f32 %v1109, %v1109
        %v1647 = vmul.f32 %v1112, %v1112
        %v1648 = vmul.f32 %v1117, %v1117
        %v1649 = vmul.f32 %v1120, %v1120
        %v1650 = vmul.f32 %v1125, %v1125
        %v1651 = vmul.f32 %v1128, %v1128
        %v1652 = vmul.f32 %v1133, %v1133
        %v1653 = vmul.f32 %v1136, %v1136
        %v1654 = vmul.f32 %v1141, %v1141
        %v1655 = vmul.f32 %v1144, %v1144
        %v1656 = vmul.f32 %v1149, %v1149
        %v1657 = vmul.f32 %v1152, %v1152
        %v1658 = vmul.f32 %v1157, %v1157
        %v1659 = vmul.f32 %v1160, %v1160
        %v1660 = vmul.f32 %v1165, %v1165
        %v1661 = vmul.f32 %v1168, %v1168
        %v1662 = vmul.f32 %v1173, %v1173
        %v1663 = vmul.f32 %v1176, %v1176
        %v1664 = vmul.f32 %v1181, %v1181
        %v1665 = vmul.f32 %v1184, %v1184
        %v1666 = vmul.f32 %v1189, %v1189
        %v1667 = vmul.f32 %v1192, %v1192
        %v1668 = vmul.f32 %v1197, %v1197
        %v1669 = vmul.f32 %v1200, %v1200
        %v1670 = vmul.f32 %v1205, %v1205
        %v1671 = vmul.f32 %v1208, %v1208
        %v1672 = vmul.f32 %v1213, %v1213
        %v1673 = vmul.f32 %v1216, %v1216
        %v1674 = vmul.f32 %v1221, %v1221
        %v1675 = vmul.f32 %v1224, %v1224
        %v1676 = vmul.f32 %v1229, %v1229
        %v1677 = vmul.f32 %v1232, %v1232
        %v1678 = vmul.f32 %v1237, %v1237
        %v1679 = vmul.f32 %v1240, %v1240
        %v1680 = vmul.f32 %v1245, %v1245
        %v1681 = vmul.f32 %v1248, %v1248
        %v1682 = vmul.f32 %v1253, %v1253
        %v1683 = vmul.f32 %v1256, %v1256
        %v1684 = vmul.f32 %v1261, %v1261
        %v1685 = vmul.f32 %v1264, %v1264
        %v1686 = vmul.f32 %v1269, %v1269
        %v1687 = vmul.f32 %v1272, %v1272
        %v1688 = vmul.f32 %v1277, %v1277
        %v1689 = vmul.f32 %v1280, %v1280
        %v1690 = vmul.f32 %v1285, %v1285
        %v1691 = vmul.f32 %v1288, %v1288
        %v1692 = vmul.f32 %v1293, %v1293
        %v1693 = vmul.f32 %v1296, %v1296
        %v1694 = vmul.f32 %v1301, %v1301
        %v1695 = vmul.f32 %v1304, %v1304
        %v1696 = vmul.f32 %v1309, %v1309
        %v1697 = vmul.f32 %v1312, %v1312
        %v1698 = vmul.f32 %v1317, %v1317
        %v1699 = vmul.f32 %v1320, %v1320
        %v1700 = vmul.f32 %v1325, %v1325
        %v1701 = vmul.f32 %v1328, %v1328
        %v1702 = vmul.f32 %v1333, %v1333
        %v1703 = vmul.f32 %v1336, %v1336
        %v1704 = vmul.f32 %v1341, %v1341
        %v1705 = vmul.f32 %v1344, %v1344
        %v1706 = vmul.f32 %v1349, %v1349
        %v1707 = vmul.f32 %v1352, %v1352
        %v1708 = vmul.f32 %v1357, %v1357
        %v1709 = vmul.f32 %v1360, %v1360
        %v1710 = vmul.f32 %v1365, %v1365
        %v1711 = vmul.f32 %v1368, %v1368
        %v1712 = vmul.f32 %v1373, %v1373
        %v1713 = vmul.f32 %v1376, %v1376
        %v1714 = vmul.f32 %v1381, %v1381
        %v1715 = vmul.f32 %v1384, %v1384
        %v1716 = vmul.f32 %v1389, %v1389
        %v1717 = vmul.f32 %v1392, %v1392
        %v1718 = vmul.f32 %v1397, %v1397
        %v1719 = vmul.f32 %v1400, %v1400
        %v1720 = vmul.f32 %v1405, %v1405
        %v1721 = vmul.f32 %v1408, %v1408
        %v1722 = vmul.f32 %v1413, %v1413
        %v1723 = vmul.f32 %v1416, %v1416
        %v1724 = vmul.f32 %v1421, %v1421
        %v1725 = vmul.f32 %v1424, %v1424
        %v1726 = vmul.f32 %v1429, %v1429
        %v1727 = vmul.f32 %v1432, %v1432
        %v1728 = vmul.f32 %v1437, %v1437
        %v1729 = vmul.f32 %v1440, %v1440
        %v1730 = vmul.f32 %v1445, %v1445
        %v1731 = vmul.f32 %v1448, %v1448
        %v1732 = vmul.f32 %v1453, %v1453
        %v1733 = vmul.f32 %v1456, %v1456
        %v1734 = vmul.f32 %v1461, %v1461
        %v1735 = vmul.f32 %v1464, %v1464
        %v1736 = vadd.f32 %v1608, %v1609
        %v1737 = vadd.f32 %v1736, %v1610
        %v1738 = vadd.f32 %v1737, %v1611
        %v1739 = vadd.f32 %v1738, %v1612
        %v1740 = vadd.f32 %v1739, %v1613
        %v1741 = vadd.f32 %v1740, %v1614
        %v1742 = vadd.f32 %v1741, %v1615
        %v1743 = vadd.f32 %v1742, %v1616
        %v1744 = vadd.f32 %v1743, %v1617
        %v1745 = vadd.f32 %v1744, %v1618
        %v1746 = vadd.f32 %v1745, %v1619
        %v1747 = vadd.f32 %v1746, %v1620
        %v1748 = vadd.f32 %v1747, %v1621
        %v1749 = vadd.f32 %v1748, %v1622
        %v1750 = vadd.f32 %v1749, %v1623
        %v1751 = vadd.f32 %v1750, %v1624
        %v1752 = vadd.f32 %v1751, %v1625
        %v1753 = vadd.f32 %v1752, %v1626
        %v1754 = vadd.f32 %v1753, %v1627
        %v1755 = vadd.f32 %v1754, %v1628
        %v1756 = vadd.f32 %v1755, %v1629
        %v1757 = vadd.f32 %v1756, %v1630
        %v1758 = vadd.f32 %v1757, %v1631
        %v1759 = vadd.f32 %v1758, %v1632
        %v1760 = vadd.f32 %v1759, %v1633
        %v1761 = vadd.f32 %v1760, %v1634
        %v1762 = vadd.f32 %v1761, %v1635
        %v1763 = vadd.f32 %v1762, %v1636
        %v1764 = vadd.f32 %v1763, %v1637
        %v1765 = vadd.f32 %v1764, %v1638
        %v1766 = vadd.f32 %v1765, %v1639
        %v1767 = vadd.f32 %v1766, %v1640
        %v1768 = vadd.f32 %v1767, %v1641
        %v1769 = vadd.f32 %v1768, %v1642
        %v1770 = vadd.f32 %v1769, %v1643
        %v1771 = vadd.f32 %v1770, %v1644
        %v1772 = vadd.f32 %v1771, %v1645
        %v1773 = vadd.f32 %v1772, %v1646
        %v1774 = vadd.f32 %v1773, %v1647
        %v1775 = vadd.f32 %v1774, %v1648
        %v1776 = vadd.f32 %v1775, %v1649
        %v1777 = vadd.f32 %v1776, %v1650
        %v1778 = vadd.f32 %v1777, %v1651
        %v1779 = vadd.f32 %v1778, %v1652
        %v1780 = vadd.f32 %v1779, %v1653
        %v1781 = vadd.f32 %v1780, %v1654
        %v1782 = vadd.f32 %v1781, %v1655
        %v1783 = vadd.f32 %v1782, %v1656
        %v1784 = vadd.f32 %v1783, %v1657
        %v1785 = vadd.f32 %v1784, %v1658
        %v1786 = vadd.f32 %v1785, %v1659
        %v1787 = vadd.f32 %v1786, %v1660
        %v1788 = vadd.f32 %v1787, %v1661
        %v1789 = vadd.f32 %v1788, %v1662
        %v1790 = vadd.f32 %v1789, %v1663
        %v1791 = vadd.f32 %v1790, %v1664
        %v1792 = vadd.f32 %v1791, %v1665
        %v1793 = vadd.f32 %v1792, %v1666
        %v1794 = vadd.f32 %v1793, %v1667
        %v1795 = vadd.f32 %v1794, %v1668
        %v1796 = vadd.f32 %v1795, %v1669
        %v1797 = vadd.f32 %v1796, %v1670
        %v1798 = vadd.f32 %v1797, %v1671
        %v1799 = vrot.slane %v1798, 4
        %v1800 = vadd.f32 %v1798, %v1799
        %v1801 = vrot.slane %v1800, 2
        %v1802 = vadd.f32 %v1800, %v1801
        %v1803 = vrot.slane %v1802, 1
        %v1804 = vadd.f32 %v1802, %v1803
        %v1805 = vadd.f32 %v1672, %v1673
        %v1806 = vadd.f32 %v1805, %v1674
        %v1807 = vadd.f32 %v1806, %v1675
        %v1808 = vadd.f32 %v1807, %v1676
        %v1809 = vadd.f32 %v1808, %v1677
        %v1810 = vadd.f32 %v1809, %v1678
        %v1811 = vadd.f32 %v1810, %v1679
        %v1812 = vadd.f32 %v1811, %v1680
        %v1813 = vadd.f32 %v1812, %v1681
        %v1814 = vadd.f32 %v1813, %v1682
        %v1815 = vadd.f32 %v1814, %v1683
        %v1816 = vadd.f32 %v1815, %v1684
        %v1817 = vadd.f32 %v1816, %v1685
        %v1818 = vadd.f32 %v1817, %v1686
        %v1819 = vadd.f32 %v1818, %v1687
        %v1820 = vadd.f32 %v1819, %v1688
        %v1821 = vadd.f32 %v1820, %v1689
        %v1822 = vadd.f32 %v1821, %v1690
        %v1823 = vadd.f32 %v1822, %v1691
        %v1824 = vadd.f32 %v1823, %v1692
        %v1825 = vadd.f32 %v1824, %v1693
        %v1826 = vadd.f32 %v1825, %v1694
        %v1827 = vadd.f32 %v1826, %v1695
        %v1828 = vadd.f32 %v1827, %v1696
        %v1829 = vadd.f32 %v1828, %v1697
        %v1830 = vadd.f32 %v1829, %v1698
        %v1831 = vadd.f32 %v1830, %v1699
        %v1832 = vadd.f32 %v1831, %v1700
        %v1833 = vadd.f32 %v1832, %v1701
        %v1834 = vadd.f32 %v1833, %v1702
        %v1835 = vadd.f32 %v1834, %v1703
        %v1836 = vadd.f32 %v1835, %v1704
        %v1837 = vadd.f32 %v1836, %v1705
        %v1838 = vadd.f32 %v1837, %v1706
        %v1839 = vadd.f32 %v1838, %v1707
        %v1840 = vadd.f32 %v1839, %v1708
        %v1841 = vadd.f32 %v1840, %v1709
        %v1842 = vadd.f32 %v1841, %v1710
        %v1843 = vadd.f32 %v1842, %v1711
        %v1844 = vadd.f32 %v1843, %v1712
        %v1845 = vadd.f32 %v1844, %v1713
        %v1846 = vadd.f32 %v1845, %v1714
        %v1847 = vadd.f32 %v1846, %v1715
        %v1848 = vadd.f32 %v1847, %v1716
        %v1849 = vadd.f32 %v1848, %v1717
        %v1850 = vadd.f32 %v1849, %v1718
        %v1851 = vadd.f32 %v1850, %v1719
        %v1852 = vadd.f32 %v1851, %v1720
        %v1853 = vadd.f32 %v1852, %v1721
        %v1854 = vadd.f32 %v1853, %v1722
        %v1855 = vadd.f32 %v1854, %v1723
        %v1856 = vadd.f32 %v1855, %v1724
        %v1857 = vadd.f32 %v1856, %v1725
        %v1858 = vadd.f32 %v1857, %v1726
        %v1859 = vadd.f32 %v1858, %v1727
        %v1860 = vadd.f32 %v1859, %v1728
        %v1861 = vadd.f32 %v1860, %v1729
        %v1862 = vadd.f32 %v1861, %v1730
        %v1863 = vadd.f32 %v1862, %v1731
        %v1864 = vadd.f32 %v1863, %v1732
        %v1865 = vadd.f32 %v1864, %v1733
        %v1866 = vadd.f32 %v1865, %v1734
        %v1867 = vadd.f32 %v1866, %v1735
        %v1868 = vrot.slane %v1867, 4
        %v1869 = vadd.f32 %v1867, %v1868
        %v1870 = vrot.slane %v1869, 2
        %v1871 = vadd.f32 %v1869, %v1870
        %v1872 = vrot.slane %v1871, 1
        %v1873 = vadd.f32 %v1871, %v1872
        %v1874 = vmul.f32 %v1804, %v1605
        %v1875 = vmul.f32 %v1873, %v1605
        %v1876 = vmul.f32 %v1606, %v1606
        %v1877 = vmul.f32 %v1607, %v1607
        %v1878 = vsub.f32 %v1874, %v1876
        %v1879 = vsub.f32 %v1875, %v1877
        %v1880 = vmax.f32 %v1878, 0.0
        %v1881 = vmax.f32 %v1879, 0.0
        %v1882 = vld [vmem:[%s2] sm:$0x1]
        %v1883 = vadd.f32 %v1880, 1e-05
        %v1884 = vadd.f32 %v1881, 1e-05
        %v1885 = vrsqrt.pop %v1883
        %v1886 = vrsqrt.pop %v1884
        %v1887 = vmul.f32 %v1882, %v1885
        %v1888 = vmul.f32 %v1882, %v1886
        %v1889 = vld [vmem:[%s3] sm:$0x1]
        %v1890 = vmul.f32 %v1606, %v1887
        %v1891 = vmul.f32 %v1607, %v1888
        %v1892 = vsub.f32 %v1889, %v1890
        %v1893 = vsub.f32 %v1889, %v1891
        %v1896 = vlaneseq
        %v1897 = vshrl.u32 %v1896, 7
        %v1898 = vsub.s32 0, %v1897
        %v1899 = vrot.slane %v1887, %v1898
        %v1900 = vlaneseq
        %v1901 = vshrl.u32 %v1900, 7
        %v1902 = vsub.s32 0, %v1901
        %v1903 = vrot.slane %v1888, %v1902
        %v1906 = vmul.f32 %v957, %v1899
        %v1907 = vmul.f32 %v960, %v1899
        %v1908 = vmul.f32 %v965, %v1899
        %v1909 = vmul.f32 %v968, %v1899
        %v1910 = vmul.f32 %v973, %v1899
        %v1911 = vmul.f32 %v976, %v1899
        %v1912 = vmul.f32 %v981, %v1899
        %v1913 = vmul.f32 %v984, %v1899
        %v1914 = vmul.f32 %v989, %v1899
        %v1915 = vmul.f32 %v992, %v1899
        %v1916 = vmul.f32 %v997, %v1899
        %v1917 = vmul.f32 %v1000, %v1899
        %v1918 = vmul.f32 %v1005, %v1899
        %v1919 = vmul.f32 %v1008, %v1899
        %v1920 = vmul.f32 %v1013, %v1899
        %v1921 = vmul.f32 %v1016, %v1899
        %v1922 = vmul.f32 %v1021, %v1899
        %v1923 = vmul.f32 %v1024, %v1899
        %v1924 = vmul.f32 %v1029, %v1899
        %v1925 = vmul.f32 %v1032, %v1899
        %v1926 = vmul.f32 %v1037, %v1899
        %v1927 = vmul.f32 %v1040, %v1899
        %v1928 = vmul.f32 %v1045, %v1899
        %v1929 = vmul.f32 %v1048, %v1899
        %v1930 = vmul.f32 %v1053, %v1899
        %v1931 = vmul.f32 %v1056, %v1899
        %v1932 = vmul.f32 %v1061, %v1899
        %v1933 = vmul.f32 %v1064, %v1899
        %v1934 = vmul.f32 %v1069, %v1899
        %v1935 = vmul.f32 %v1072, %v1899
        %v1936 = vmul.f32 %v1077, %v1899
        %v1937 = vmul.f32 %v1080, %v1899
        %v1938 = vmul.f32 %v1085, %v1899
        %v1939 = vmul.f32 %v1088, %v1899
        %v1940 = vmul.f32 %v1093, %v1899
        %v1941 = vmul.f32 %v1096, %v1899
        %v1942 = vmul.f32 %v1101, %v1899
        %v1943 = vmul.f32 %v1104, %v1899
        %v1944 = vmul.f32 %v1109, %v1899
        %v1945 = vmul.f32 %v1112, %v1899
        %v1946 = vmul.f32 %v1117, %v1899
        %v1947 = vmul.f32 %v1120, %v1899
        %v1948 = vmul.f32 %v1125, %v1899
        %v1949 = vmul.f32 %v1128, %v1899
        %v1950 = vmul.f32 %v1133, %v1899
        %v1951 = vmul.f32 %v1136, %v1899
        %v1952 = vmul.f32 %v1141, %v1899
        %v1953 = vmul.f32 %v1144, %v1899
        %v1954 = vmul.f32 %v1149, %v1899
        %v1955 = vmul.f32 %v1152, %v1899
        %v1956 = vmul.f32 %v1157, %v1899
        %v1957 = vmul.f32 %v1160, %v1899
        %v1958 = vmul.f32 %v1165, %v1899
        %v1959 = vmul.f32 %v1168, %v1899
        %v1960 = vmul.f32 %v1173, %v1899
        %v1961 = vmul.f32 %v1176, %v1899
        %v1962 = vmul.f32 %v1181, %v1899
        %v1963 = vmul.f32 %v1184, %v1899
        %v1964 = vmul.f32 %v1189, %v1899
        %v1965 = vmul.f32 %v1192, %v1899
        %v1966 = vmul.f32 %v1197, %v1899
        %v1967 = vmul.f32 %v1200, %v1899
        %v1968 = vmul.f32 %v1205, %v1899
        %v1969 = vmul.f32 %v1208, %v1899
        %v1970 = vmul.f32 %v1213, %v1903
        %v1971 = vmul.f32 %v1216, %v1903
        %v1972 = vmul.f32 %v1221, %v1903
        %v1973 = vmul.f32 %v1224, %v1903
        %v1974 = vmul.f32 %v1229, %v1903
        %v1975 = vmul.f32 %v1232, %v1903
        %v1976 = vmul.f32 %v1237, %v1903
        %v1977 = vmul.f32 %v1240, %v1903
        %v1978 = vmul.f32 %v1245, %v1903
        %v1979 = vmul.f32 %v1248, %v1903
        %v1980 = vmul.f32 %v1253, %v1903
        %v1981 = vmul.f32 %v1256, %v1903
        %v1982 = vmul.f32 %v1261, %v1903
        %v1983 = vmul.f32 %v1264, %v1903
        %v1984 = vmul.f32 %v1269, %v1903
        %v1985 = vmul.f32 %v1272, %v1903
        %v1986 = vmul.f32 %v1277, %v1903
        %v1987 = vmul.f32 %v1280, %v1903
        %v1988 = vmul.f32 %v1285, %v1903
        %v1989 = vmul.f32 %v1288, %v1903
        %v1990 = vmul.f32 %v1293, %v1903
        %v1991 = vmul.f32 %v1296, %v1903
        %v1992 = vmul.f32 %v1301, %v1903
        %v1993 = vmul.f32 %v1304, %v1903
        %v1994 = vmul.f32 %v1309, %v1903
        %v1995 = vmul.f32 %v1312, %v1903
        %v1996 = vmul.f32 %v1317, %v1903
        %v1997 = vmul.f32 %v1320, %v1903
        %v1998 = vmul.f32 %v1325, %v1903
        %v1999 = vmul.f32 %v1328, %v1903
        %v2000 = vmul.f32 %v1333, %v1903
        %v2001 = vmul.f32 %v1336, %v1903
        %v2002 = vmul.f32 %v1341, %v1903
        %v2003 = vmul.f32 %v1344, %v1903
        %v2004 = vmul.f32 %v1349, %v1903
        %v2005 = vmul.f32 %v1352, %v1903
        %v2006 = vmul.f32 %v1357, %v1903
        %v2007 = vmul.f32 %v1360, %v1903
        %v2008 = vmul.f32 %v1365, %v1903
        %v2009 = vmul.f32 %v1368, %v1903
        %v2010 = vmul.f32 %v1373, %v1903
        %v2011 = vmul.f32 %v1376, %v1903
        %v2012 = vmul.f32 %v1381, %v1903
        %v2013 = vmul.f32 %v1384, %v1903
        %v2014 = vmul.f32 %v1389, %v1903
        %v2015 = vmul.f32 %v1392, %v1903
        %v2016 = vmul.f32 %v1397, %v1903
        %v2017 = vmul.f32 %v1400, %v1903
        %v2018 = vmul.f32 %v1405, %v1903
        %v2019 = vmul.f32 %v1408, %v1903
        %v2020 = vmul.f32 %v1413, %v1903
        %v2021 = vmul.f32 %v1416, %v1903
        %v2022 = vmul.f32 %v1421, %v1903
        %v2023 = vmul.f32 %v1424, %v1903
        %v2024 = vmul.f32 %v1429, %v1903
        %v2025 = vmul.f32 %v1432, %v1903
        %v2026 = vmul.f32 %v1437, %v1903
        %v2027 = vmul.f32 %v1440, %v1903
        %v2028 = vmul.f32 %v1445, %v1903
        %v2029 = vmul.f32 %v1448, %v1903
        %v2030 = vmul.f32 %v1453, %v1903
        %v2031 = vmul.f32 %v1456, %v1903
        %v2032 = vmul.f32 %v1461, %v1903
        %v2033 = vmul.f32 %v1464, %v1903
        %v2036 = vlaneseq
        %v2037 = vshrl.u32 %v2036, 7
        %v2038 = vsub.s32 0, %v2037
        %v2039 = vrot.slane %v1892, %v2038
        %v2040 = vlaneseq
        %v2041 = vshrl.u32 %v2040, 7
        %v2042 = vsub.s32 0, %v2041
        %v2043 = vrot.slane %v1893, %v2042
        %v2046 = vadd.f32 %v1906, %v2039
        %v2047 = vadd.f32 %v1907, %v2039
        %v2048 = vadd.f32 %v1908, %v2039
        %v2049 = vadd.f32 %v1909, %v2039
        %v2050 = vadd.f32 %v1910, %v2039
        %v2051 = vadd.f32 %v1911, %v2039
        %v2052 = vadd.f32 %v1912, %v2039
        %v2053 = vadd.f32 %v1913, %v2039
        %v2054 = vadd.f32 %v1914, %v2039
        %v2055 = vadd.f32 %v1915, %v2039
        %v2056 = vadd.f32 %v1916, %v2039
        %v2057 = vadd.f32 %v1917, %v2039
        %v2058 = vadd.f32 %v1918, %v2039
        %v2059 = vadd.f32 %v1919, %v2039
        %v2060 = vadd.f32 %v1920, %v2039
        %v2061 = vadd.f32 %v1921, %v2039
        %v2062 = vadd.f32 %v1922, %v2039
        %v2063 = vadd.f32 %v1923, %v2039
        %v2064 = vadd.f32 %v1924, %v2039
        %v2065 = vadd.f32 %v1925, %v2039
        %v2066 = vadd.f32 %v1926, %v2039
        %v2067 = vadd.f32 %v1927, %v2039
        %v2068 = vadd.f32 %v1928, %v2039
        %v2069 = vadd.f32 %v1929, %v2039
        %v2070 = vadd.f32 %v1930, %v2039
        %v2071 = vadd.f32 %v1931, %v2039
        %v2072 = vadd.f32 %v1932, %v2039
        %v2073 = vadd.f32 %v1933, %v2039
        %v2074 = vadd.f32 %v1934, %v2039
        %v2075 = vadd.f32 %v1935, %v2039
        %v2076 = vadd.f32 %v1936, %v2039
        %v2077 = vadd.f32 %v1937, %v2039
        %v2078 = vadd.f32 %v1938, %v2039
        %v2079 = vadd.f32 %v1939, %v2039
        %v2080 = vadd.f32 %v1940, %v2039
        %v2081 = vadd.f32 %v1941, %v2039
        %v2082 = vadd.f32 %v1942, %v2039
        %v2083 = vadd.f32 %v1943, %v2039
        %v2084 = vadd.f32 %v1944, %v2039
        %v2085 = vadd.f32 %v1945, %v2039
        %v2086 = vadd.f32 %v1946, %v2039
        %v2087 = vadd.f32 %v1947, %v2039
        %v2088 = vadd.f32 %v1948, %v2039
        %v2089 = vadd.f32 %v1949, %v2039
        %v2090 = vadd.f32 %v1950, %v2039
        %v2091 = vadd.f32 %v1951, %v2039
        %v2092 = vadd.f32 %v1952, %v2039
        %v2093 = vadd.f32 %v1953, %v2039
        %v2094 = vadd.f32 %v1954, %v2039
        %v2095 = vadd.f32 %v1955, %v2039
        %v2096 = vadd.f32 %v1956, %v2039
        %v2097 = vadd.f32 %v1957, %v2039
        %v2098 = vadd.f32 %v1958, %v2039
        %v2099 = vadd.f32 %v1959, %v2039
        %v2100 = vadd.f32 %v1960, %v2039
        %v2101 = vadd.f32 %v1961, %v2039
        %v2102 = vadd.f32 %v1962, %v2039
        %v2103 = vadd.f32 %v1963, %v2039
        %v2104 = vadd.f32 %v1964, %v2039
        %v2105 = vadd.f32 %v1965, %v2039
        %v2106 = vadd.f32 %v1966, %v2039
        %v2107 = vadd.f32 %v1967, %v2039
        %v2108 = vadd.f32 %v1968, %v2039
        %v2109 = vadd.f32 %v1969, %v2039
        %v2110 = vadd.f32 %v1970, %v2043
        %v2111 = vadd.f32 %v1971, %v2043
        %v2112 = vadd.f32 %v1972, %v2043
        %v2113 = vadd.f32 %v1973, %v2043
        %v2114 = vadd.f32 %v1974, %v2043
        %v2115 = vadd.f32 %v1975, %v2043
        %v2116 = vadd.f32 %v1976, %v2043
        %v2117 = vadd.f32 %v1977, %v2043
        %v2118 = vadd.f32 %v1978, %v2043
        %v2119 = vadd.f32 %v1979, %v2043
        %v2120 = vadd.f32 %v1980, %v2043
        %v2121 = vadd.f32 %v1981, %v2043
        %v2122 = vadd.f32 %v1982, %v2043
        %v2123 = vadd.f32 %v1983, %v2043
        %v2124 = vadd.f32 %v1984, %v2043
        %v2125 = vadd.f32 %v1985, %v2043
        %v2126 = vadd.f32 %v1986, %v2043
        %v2127 = vadd.f32 %v1987, %v2043
        %v2128 = vadd.f32 %v1988, %v2043
        %v2129 = vadd.f32 %v1989, %v2043
        %v2130 = vadd.f32 %v1990, %v2043
        %v2131 = vadd.f32 %v1991, %v2043
        %v2132 = vadd.f32 %v1992, %v2043
        %v2133 = vadd.f32 %v1993, %v2043
        %v2134 = vadd.f32 %v1994, %v2043
        %v2135 = vadd.f32 %v1995, %v2043
        %v2136 = vadd.f32 %v1996, %v2043
        %v2137 = vadd.f32 %v1997, %v2043
        %v2138 = vadd.f32 %v1998, %v2043
        %v2139 = vadd.f32 %v1999, %v2043
        %v2140 = vadd.f32 %v2000, %v2043
        %v2141 = vadd.f32 %v2001, %v2043
        %v2142 = vadd.f32 %v2002, %v2043
        %v2143 = vadd.f32 %v2003, %v2043
        %v2144 = vadd.f32 %v2004, %v2043
        %v2145 = vadd.f32 %v2005, %v2043
        %v2146 = vadd.f32 %v2006, %v2043
        %v2147 = vadd.f32 %v2007, %v2043
        %v2148 = vadd.f32 %v2008, %v2043
        %v2149 = vadd.f32 %v2009, %v2043
        %v2150 = vadd.f32 %v2010, %v2043
        %v2151 = vadd.f32 %v2011, %v2043
        %v2152 = vadd.f32 %v2012, %v2043
        %v2153 = vadd.f32 %v2013, %v2043
        %v2154 = vadd.f32 %v2014, %v2043
        %v2155 = vadd.f32 %v2015, %v2043
        %v2156 = vadd.f32 %v2016, %v2043
        %v2157 = vadd.f32 %v2017, %v2043
        %v2158 = vadd.f32 %v2018, %v2043
        %v2159 = vadd.f32 %v2019, %v2043
        %v2160 = vadd.f32 %v2020, %v2043
        %v2161 = vadd.f32 %v2021, %v2043
        %v2162 = vadd.f32 %v2022, %v2043
        %v2163 = vadd.f32 %v2023, %v2043
        %v2164 = vadd.f32 %v2024, %v2043
        %v2165 = vadd.f32 %v2025, %v2043
        %v2166 = vadd.f32 %v2026, %v2043
        %v2167 = vadd.f32 %v2027, %v2043
        %v2168 = vadd.f32 %v2028, %v2043
        %v2169 = vadd.f32 %v2029, %v2043
        %v2170 = vadd.f32 %v2030, %v2043
        %v2171 = vadd.f32 %v2031, %v2043
        %v2172 = vadd.f32 %v2032, %v2043
        %v2173 = vadd.f32 %v2033, %v2043
        %v2174 = vld [vmem:[%s245] sm:$0xf]
        %v2175 = vld [vmem:[%s245 + $0x4] sm:$0xf]
        %v2176 = vld [vmem:[%s245 + $0x8] sm:$0xf]
        %v2177 = vld [vmem:[%s245 + $0xc] sm:$0xf]
        %v2178 = vld [vmem:[%s245 + $0x10] sm:$0xf]
        %v2179 = vld [vmem:[%s245 + $0x14] sm:$0xf]
        %v2180 = vld [vmem:[%s245 + $0x18] sm:$0xf]
        %v2181 = vld [vmem:[%s245 + $0x1c] sm:$0xf]
        %v2182 = vld [vmem:[%s245 + $0x20] sm:$0xf]
        %v2183 = vld [vmem:[%s245 + $0x24] sm:$0xf]
        %v2184 = vld [vmem:[%s245 + $0x28] sm:$0xf]
        %v2185 = vld [vmem:[%s245 + $0x2c] sm:$0xf]
        %v2186 = vld [vmem:[%s245 + $0x30] sm:$0xf]
        %v2187 = vld [vmem:[%s245 + $0x34] sm:$0xf]
        %v2188 = vld [vmem:[%s245 + $0x38] sm:$0xf]
        %v2189 = vld [vmem:[%s245 + $0x3c] sm:$0xf]
        %v2190 = vld [vmem:[%s245 + $0x40] sm:$0xf]
        %v2191 = vld [vmem:[%s245 + $0x44] sm:$0xf]
        %v2192 = vld [vmem:[%s245 + $0x48] sm:$0xf]
        %v2193 = vld [vmem:[%s245 + $0x4c] sm:$0xf]
        %v2194 = vld [vmem:[%s245 + $0x50] sm:$0xf]
        %v2195 = vld [vmem:[%s245 + $0x54] sm:$0xf]
        %v2196 = vld [vmem:[%s245 + $0x58] sm:$0xf]
        %v2197 = vld [vmem:[%s245 + $0x5c] sm:$0xf]
        %v2198 = vld [vmem:[%s245 + $0x60] sm:$0xf]
        %v2199 = vld [vmem:[%s245 + $0x64] sm:$0xf]
        %v2200 = vld [vmem:[%s245 + $0x68] sm:$0xf]
        %v2201 = vld [vmem:[%s245 + $0x6c] sm:$0xf]
        %v2202 = vld [vmem:[%s245 + $0x70] sm:$0xf]
        %v2203 = vld [vmem:[%s245 + $0x74] sm:$0xf]
        %v2204 = vld [vmem:[%s245 + $0x78] sm:$0xf]
        %v2205 = vld [vmem:[%s245 + $0x7c] sm:$0xf]
        %v2206 = vld [vmem:[%s245 + $0x80] sm:$0xf]
        %v2207 = vld [vmem:[%s245 + $0x84] sm:$0xf]
        %v2208 = vld [vmem:[%s245 + $0x88] sm:$0xf]
        %v2209 = vld [vmem:[%s245 + $0x8c] sm:$0xf]
        %v2210 = vld [vmem:[%s245 + $0x90] sm:$0xf]
        %v2211 = vld [vmem:[%s245 + $0x94] sm:$0xf]
        %v2212 = vld [vmem:[%s245 + $0x98] sm:$0xf]
        %v2213 = vld [vmem:[%s245 + $0x9c] sm:$0xf]
        %v2214 = vld [vmem:[%s245 + $0xa0] sm:$0xf]
        %v2215 = vld [vmem:[%s245 + $0xa4] sm:$0xf]
        %v2216 = vld [vmem:[%s245 + $0xa8] sm:$0xf]
        %v2217 = vld [vmem:[%s245 + $0xac] sm:$0xf]
        %v2218 = vld [vmem:[%s245 + $0xb0] sm:$0xf]
        %v2219 = vld [vmem:[%s245 + $0xb4] sm:$0xf]
        %v2220 = vld [vmem:[%s245 + $0xb8] sm:$0xf]
        %v2221 = vld [vmem:[%s245 + $0xbc] sm:$0xf]
        %v2222 = vld [vmem:[%s245 + $0xc0] sm:$0xf]
        %v2223 = vld [vmem:[%s245 + $0xc4] sm:$0xf]
        %v2224 = vld [vmem:[%s245 + $0xc8] sm:$0xf]
        %v2225 = vld [vmem:[%s245 + $0xcc] sm:$0xf]
        %v2226 = vld [vmem:[%s245 + $0xd0] sm:$0xf]
        %v2227 = vld [vmem:[%s245 + $0xd4] sm:$0xf]
        %v2228 = vld [vmem:[%s245 + $0xd8] sm:$0xf]
        %v2229 = vld [vmem:[%s245 + $0xdc] sm:$0xf]
        %v2230 = vld [vmem:[%s245 + $0xe0] sm:$0xf]
        %v2231 = vld [vmem:[%s245 + $0xe4] sm:$0xf]
        %v2232 = vld [vmem:[%s245 + $0xe8] sm:$0xf]
        %v2233 = vld [vmem:[%s245 + $0xec] sm:$0xf]
        %v2234 = vld [vmem:[%s245 + $0xf0] sm:$0xf]
        %v2235 = vld [vmem:[%s245 + $0xf4] sm:$0xf]
        %v2236 = vld [vmem:[%s245 + $0xf8] sm:$0xf]
        %v2237 = vld [vmem:[%s245 + $0xfc] sm:$0xf]
        %v2238 = vld [vmem:[%s245 + $0x100] sm:$0xf]
        %v2239 = vld [vmem:[%s245 + $0x104] sm:$0xf]
        %v2240 = vld [vmem:[%s245 + $0x108] sm:$0xf]
        %v2241 = vld [vmem:[%s245 + $0x10c] sm:$0xf]
        %v2242 = vld [vmem:[%s245 + $0x110] sm:$0xf]
        %v2243 = vld [vmem:[%s245 + $0x114] sm:$0xf]
        %v2244 = vld [vmem:[%s245 + $0x118] sm:$0xf]
        %v2245 = vld [vmem:[%s245 + $0x11c] sm:$0xf]
        %v2246 = vld [vmem:[%s245 + $0x120] sm:$0xf]
        %v2247 = vld [vmem:[%s245 + $0x124] sm:$0xf]
        %v2248 = vld [vmem:[%s245 + $0x128] sm:$0xf]
        %v2249 = vld [vmem:[%s245 + $0x12c] sm:$0xf]
        %v2250 = vld [vmem:[%s245 + $0x130] sm:$0xf]
        %v2251 = vld [vmem:[%s245 + $0x134] sm:$0xf]
        %v2252 = vld [vmem:[%s245 + $0x138] sm:$0xf]
        %v2253 = vld [vmem:[%s245 + $0x13c] sm:$0xf]
        %v2254 = vld [vmem:[%s245 + $0x140] sm:$0xf]
        %v2255 = vld [vmem:[%s245 + $0x144] sm:$0xf]
        %v2256 = vld [vmem:[%s245 + $0x148] sm:$0xf]
        %v2257 = vld [vmem:[%s245 + $0x14c] sm:$0xf]
        %v2258 = vld [vmem:[%s245 + $0x150] sm:$0xf]
        %v2259 = vld [vmem:[%s245 + $0x154] sm:$0xf]
        %v2260 = vld [vmem:[%s245 + $0x158] sm:$0xf]
        %v2261 = vld [vmem:[%s245 + $0x15c] sm:$0xf]
        %v2262 = vld [vmem:[%s245 + $0x160] sm:$0xf]
        %v2263 = vld [vmem:[%s245 + $0x164] sm:$0xf]
        %v2264 = vld [vmem:[%s245 + $0x168] sm:$0xf]
        %v2265 = vld [vmem:[%s245 + $0x16c] sm:$0xf]
        %v2266 = vld [vmem:[%s245 + $0x170] sm:$0xf]
        %v2267 = vld [vmem:[%s245 + $0x174] sm:$0xf]
        %v2268 = vld [vmem:[%s245 + $0x178] sm:$0xf]
        %v2269 = vld [vmem:[%s245 + $0x17c] sm:$0xf]
        %v2270 = vld [vmem:[%s245 + $0x180] sm:$0xf]
        %v2271 = vld [vmem:[%s245 + $0x184] sm:$0xf]
        %v2272 = vld [vmem:[%s245 + $0x188] sm:$0xf]
        %v2273 = vld [vmem:[%s245 + $0x18c] sm:$0xf]
        %v2274 = vld [vmem:[%s245 + $0x190] sm:$0xf]
        %v2275 = vld [vmem:[%s245 + $0x194] sm:$0xf]
        %v2276 = vld [vmem:[%s245 + $0x198] sm:$0xf]
        %v2277 = vld [vmem:[%s245 + $0x19c] sm:$0xf]
        %v2278 = vld [vmem:[%s245 + $0x1a0] sm:$0xf]
        %v2279 = vld [vmem:[%s245 + $0x1a4] sm:$0xf]
        %v2280 = vld [vmem:[%s245 + $0x1a8] sm:$0xf]
        %v2281 = vld [vmem:[%s245 + $0x1ac] sm:$0xf]
        %v2282 = vld [vmem:[%s245 + $0x1b0] sm:$0xf]
        %v2283 = vld [vmem:[%s245 + $0x1b4] sm:$0xf]
        %v2284 = vld [vmem:[%s245 + $0x1b8] sm:$0xf]
        %v2285 = vld [vmem:[%s245 + $0x1bc] sm:$0xf]
        %v2286 = vld [vmem:[%s245 + $0x1c0] sm:$0xf]
        %v2287 = vld [vmem:[%s245 + $0x1c4] sm:$0xf]
        %v2288 = vld [vmem:[%s245 + $0x1c8] sm:$0xf]
        %v2289 = vld [vmem:[%s245 + $0x1cc] sm:$0xf]
        %v2290 = vld [vmem:[%s245 + $0x1d0] sm:$0xf]
        %v2291 = vld [vmem:[%s245 + $0x1d4] sm:$0xf]
        %v2292 = vld [vmem:[%s245 + $0x1d8] sm:$0xf]
        %v2293 = vld [vmem:[%s245 + $0x1dc] sm:$0xf]
        %v2294 = vld [vmem:[%s245 + $0x1e0] sm:$0xf]
        %v2295 = vld [vmem:[%s245 + $0x1e4] sm:$0xf]
        %v2296 = vld [vmem:[%s245 + $0x1e8] sm:$0xf]
        %v2297 = vld [vmem:[%s245 + $0x1ec] sm:$0xf]
        %v2298 = vld [vmem:[%s245 + $0x1f0] sm:$0xf]
        %v2299 = vld [vmem:[%s245 + $0x1f4] sm:$0xf]
        %v2300 = vld [vmem:[%s245 + $0x1f8] sm:$0xf]
        %v2301 = vld [vmem:[%s245 + $0x1fc] sm:$0xf]
        %v2302 = vunpack.c.l.bf16 %v2174
        %v2303 = vunpack.c.l.bf16 %v2175
        %v2304 = vunpack.c.l.bf16 %v2176
        %v2305 = vunpack.c.l.bf16 %v2177
        %v2306 = vunpack.c.l.bf16 %v2178
        %v2307 = vunpack.c.l.bf16 %v2179
        %v2308 = vunpack.c.l.bf16 %v2180
        %v2309 = vunpack.c.l.bf16 %v2181
        %v2310 = vunpack.c.l.bf16 %v2182
        %v2311 = vunpack.c.l.bf16 %v2183
        %v2312 = vunpack.c.l.bf16 %v2184
        %v2313 = vunpack.c.l.bf16 %v2185
        %v2314 = vunpack.c.l.bf16 %v2186
        %v2315 = vunpack.c.l.bf16 %v2187
        %v2316 = vunpack.c.l.bf16 %v2188
        %v2317 = vunpack.c.l.bf16 %v2189
        %v2318 = vunpack.c.l.bf16 %v2190
        %v2319 = vunpack.c.l.bf16 %v2191
        %v2320 = vunpack.c.l.bf16 %v2192
        %v2321 = vunpack.c.l.bf16 %v2193
        %v2322 = vunpack.c.l.bf16 %v2194
        %v2323 = vunpack.c.l.bf16 %v2195
        %v2324 = vunpack.c.l.bf16 %v2196
        %v2325 = vunpack.c.l.bf16 %v2197
        %v2326 = vunpack.c.l.bf16 %v2198
        %v2327 = vunpack.c.l.bf16 %v2199
        %v2328 = vunpack.c.l.bf16 %v2200
        %v2329 = vunpack.c.l.bf16 %v2201
        %v2330 = vunpack.c.l.bf16 %v2202
        %v2331 = vunpack.c.l.bf16 %v2203
        %v2332 = vunpack.c.l.bf16 %v2204
        %v2333 = vunpack.c.l.bf16 %v2205
        %v2334 = vunpack.c.l.bf16 %v2206
        %v2335 = vunpack.c.l.bf16 %v2207
        %v2336 = vunpack.c.l.bf16 %v2208
        %v2337 = vunpack.c.l.bf16 %v2209
        %v2338 = vunpack.c.l.bf16 %v2210
        %v2339 = vunpack.c.l.bf16 %v2211
        %v2340 = vunpack.c.l.bf16 %v2212
        %v2341 = vunpack.c.l.bf16 %v2213
        %v2342 = vunpack.c.l.bf16 %v2214
        %v2343 = vunpack.c.l.bf16 %v2215
        %v2344 = vunpack.c.l.bf16 %v2216
        %v2345 = vunpack.c.l.bf16 %v2217
        %v2346 = vunpack.c.l.bf16 %v2218
        %v2347 = vunpack.c.l.bf16 %v2219
        %v2348 = vunpack.c.l.bf16 %v2220
        %v2349 = vunpack.c.l.bf16 %v2221
        %v2350 = vunpack.c.l.bf16 %v2222
        %v2351 = vunpack.c.l.bf16 %v2223
        %v2352 = vunpack.c.l.bf16 %v2224
        %v2353 = vunpack.c.l.bf16 %v2225
        %v2354 = vunpack.c.l.bf16 %v2226
        %v2355 = vunpack.c.l.bf16 %v2227
        %v2356 = vunpack.c.l.bf16 %v2228
        %v2357 = vunpack.c.l.bf16 %v2229
        %v2358 = vunpack.c.l.bf16 %v2230
        %v2359 = vunpack.c.l.bf16 %v2231
        %v2360 = vunpack.c.l.bf16 %v2232
        %v2361 = vunpack.c.l.bf16 %v2233
        %v2362 = vunpack.c.l.bf16 %v2234
        %v2363 = vunpack.c.l.bf16 %v2235
        %v2364 = vunpack.c.l.bf16 %v2236
        %v2365 = vunpack.c.l.bf16 %v2237
        %v2366 = vunpack.c.l.bf16 %v2238
        %v2367 = vunpack.c.l.bf16 %v2239
        %v2368 = vunpack.c.l.bf16 %v2240
        %v2369 = vunpack.c.l.bf16 %v2241
        %v2370 = vunpack.c.l.bf16 %v2242
        %v2371 = vunpack.c.l.bf16 %v2243
        %v2372 = vunpack.c.l.bf16 %v2244
        %v2373 = vunpack.c.l.bf16 %v2245
        %v2374 = vunpack.c.l.bf16 %v2246
        %v2375 = vunpack.c.l.bf16 %v2247
        %v2376 = vunpack.c.l.bf16 %v2248
        %v2377 = vunpack.c.l.bf16 %v2249
        %v2378 = vunpack.c.l.bf16 %v2250
        %v2379 = vunpack.c.l.bf16 %v2251
        %v2380 = vunpack.c.l.bf16 %v2252
        %v2381 = vunpack.c.l.bf16 %v2253
        %v2382 = vunpack.c.l.bf16 %v2254
        %v2383 = vunpack.c.l.bf16 %v2255
        %v2384 = vunpack.c.l.bf16 %v2256
        %v2385 = vunpack.c.l.bf16 %v2257
        %v2386 = vunpack.c.l.bf16 %v2258
        %v2387 = vunpack.c.l.bf16 %v2259
        %v2388 = vunpack.c.l.bf16 %v2260
        %v2389 = vunpack.c.l.bf16 %v2261
        %v2390 = vunpack.c.l.bf16 %v2262
        %v2391 = vunpack.c.l.bf16 %v2263
        %v2392 = vunpack.c.l.bf16 %v2264
        %v2393 = vunpack.c.l.bf16 %v2265
        %v2394 = vunpack.c.l.bf16 %v2266
        %v2395 = vunpack.c.l.bf16 %v2267
        %v2396 = vunpack.c.l.bf16 %v2268
        %v2397 = vunpack.c.l.bf16 %v2269
        %v2398 = vunpack.c.l.bf16 %v2270
        %v2399 = vunpack.c.l.bf16 %v2271
        %v2400 = vunpack.c.l.bf16 %v2272
        %v2401 = vunpack.c.l.bf16 %v2273
        %v2402 = vunpack.c.l.bf16 %v2274
        %v2403 = vunpack.c.l.bf16 %v2275
        %v2404 = vunpack.c.l.bf16 %v2276
        %v2405 = vunpack.c.l.bf16 %v2277
        %v2406 = vunpack.c.l.bf16 %v2278
        %v2407 = vunpack.c.l.bf16 %v2279
        %v2408 = vunpack.c.l.bf16 %v2280
        %v2409 = vunpack.c.l.bf16 %v2281
        %v2410 = vunpack.c.l.bf16 %v2282
        %v2411 = vunpack.c.l.bf16 %v2283
        %v2412 = vunpack.c.l.bf16 %v2284
        %v2413 = vunpack.c.l.bf16 %v2285
        %v2414 = vunpack.c.l.bf16 %v2286
        %v2415 = vunpack.c.l.bf16 %v2287
        %v2416 = vunpack.c.l.bf16 %v2288
        %v2417 = vunpack.c.l.bf16 %v2289
        %v2418 = vunpack.c.l.bf16 %v2290
        %v2419 = vunpack.c.l.bf16 %v2291
        %v2420 = vunpack.c.l.bf16 %v2292
        %v2421 = vunpack.c.l.bf16 %v2293
        %v2422 = vunpack.c.l.bf16 %v2294
        %v2423 = vunpack.c.l.bf16 %v2295
        %v2424 = vunpack.c.l.bf16 %v2296
        %v2425 = vunpack.c.l.bf16 %v2297
        %v2426 = vunpack.c.l.bf16 %v2298
        %v2427 = vunpack.c.l.bf16 %v2299
        %v2428 = vunpack.c.l.bf16 %v2300
        %v2429 = vunpack.c.l.bf16 %v2301
        %v2430 = vmul.f32 %v2302, %v2046
        %v2431 = vmul.f32 %v2303, %v2047
        %v2432 = vmul.f32 %v2304, %v2048
        %v2433 = vmul.f32 %v2305, %v2049
        %v2434 = vmul.f32 %v2306, %v2050
        %v2435 = vmul.f32 %v2307, %v2051
        %v2436 = vmul.f32 %v2308, %v2052
        %v2437 = vmul.f32 %v2309, %v2053
        %v2438 = vmul.f32 %v2310, %v2054
        %v2439 = vmul.f32 %v2311, %v2055
        %v2440 = vmul.f32 %v2312, %v2056
        %v2441 = vmul.f32 %v2313, %v2057
        %v2442 = vmul.f32 %v2314, %v2058
        %v2443 = vmul.f32 %v2315, %v2059
        %v2444 = vmul.f32 %v2316, %v2060
        %v2445 = vmul.f32 %v2317, %v2061
        %v2446 = vmul.f32 %v2318, %v2062
        %v2447 = vmul.f32 %v2319, %v2063
        %v2448 = vmul.f32 %v2320, %v2064
        %v2449 = vmul.f32 %v2321, %v2065
        %v2450 = vmul.f32 %v2322, %v2066
        %v2451 = vmul.f32 %v2323, %v2067
        %v2452 = vmul.f32 %v2324, %v2068
        %v2453 = vmul.f32 %v2325, %v2069
        %v2454 = vmul.f32 %v2326, %v2070
        %v2455 = vmul.f32 %v2327, %v2071
        %v2456 = vmul.f32 %v2328, %v2072
        %v2457 = vmul.f32 %v2329, %v2073
        %v2458 = vmul.f32 %v2330, %v2074
        %v2459 = vmul.f32 %v2331, %v2075
        %v2460 = vmul.f32 %v2332, %v2076
        %v2461 = vmul.f32 %v2333, %v2077
        %v2462 = vmul.f32 %v2334, %v2078
        %v2463 = vmul.f32 %v2335, %v2079
        %v2464 = vmul.f32 %v2336, %v2080
        %v2465 = vmul.f32 %v2337, %v2081
        %v2466 = vmul.f32 %v2338, %v2082
        %v2467 = vmul.f32 %v2339, %v2083
        %v2468 = vmul.f32 %v2340, %v2084
        %v2469 = vmul.f32 %v2341, %v2085
        %v2470 = vmul.f32 %v2342, %v2086
        %v2471 = vmul.f32 %v2343, %v2087
        %v2472 = vmul.f32 %v2344, %v2088
        %v2473 = vmul.f32 %v2345, %v2089
        %v2474 = vmul.f32 %v2346, %v2090
        %v2475 = vmul.f32 %v2347, %v2091
        %v2476 = vmul.f32 %v2348, %v2092
        %v2477 = vmul.f32 %v2349, %v2093
        %v2478 = vmul.f32 %v2350, %v2094
        %v2479 = vmul.f32 %v2351, %v2095
        %v2480 = vmul.f32 %v2352, %v2096
        %v2481 = vmul.f32 %v2353, %v2097
        %v2482 = vmul.f32 %v2354, %v2098
        %v2483 = vmul.f32 %v2355, %v2099
        %v2484 = vmul.f32 %v2356, %v2100
        %v2485 = vmul.f32 %v2357, %v2101
        %v2486 = vmul.f32 %v2358, %v2102
        %v2487 = vmul.f32 %v2359, %v2103
        %v2488 = vmul.f32 %v2360, %v2104
        %v2489 = vmul.f32 %v2361, %v2105
        %v2490 = vmul.f32 %v2362, %v2106
        %v2491 = vmul.f32 %v2363, %v2107
        %v2492 = vmul.f32 %v2364, %v2108
        %v2493 = vmul.f32 %v2365, %v2109
        %v2494 = vmul.f32 %v2366, %v2110
        %v2495 = vmul.f32 %v2367, %v2111
        %v2496 = vmul.f32 %v2368, %v2112
        %v2497 = vmul.f32 %v2369, %v2113
        %v2498 = vmul.f32 %v2370, %v2114
        %v2499 = vmul.f32 %v2371, %v2115
        %v2500 = vmul.f32 %v2372, %v2116
        %v2501 = vmul.f32 %v2373, %v2117
        %v2502 = vmul.f32 %v2374, %v2118
        %v2503 = vmul.f32 %v2375, %v2119
        %v2504 = vmul.f32 %v2376, %v2120
        %v2505 = vmul.f32 %v2377, %v2121
        %v2506 = vmul.f32 %v2378, %v2122
        %v2507 = vmul.f32 %v2379, %v2123
        %v2508 = vmul.f32 %v2380, %v2124
        %v2509 = vmul.f32 %v2381, %v2125
        %v2510 = vmul.f32 %v2382, %v2126
        %v2511 = vmul.f32 %v2383, %v2127
        %v2512 = vmul.f32 %v2384, %v2128
        %v2513 = vmul.f32 %v2385, %v2129
        %v2514 = vmul.f32 %v2386, %v2130
        %v2515 = vmul.f32 %v2387, %v2131
        %v2516 = vmul.f32 %v2388, %v2132
        %v2517 = vmul.f32 %v2389, %v2133
        %v2518 = vmul.f32 %v2390, %v2134
        %v2519 = vmul.f32 %v2391, %v2135
        %v2520 = vmul.f32 %v2392, %v2136
        %v2521 = vmul.f32 %v2393, %v2137
        %v2522 = vmul.f32 %v2394, %v2138
        %v2523 = vmul.f32 %v2395, %v2139
        %v2524 = vmul.f32 %v2396, %v2140
        %v2525 = vmul.f32 %v2397, %v2141
        %v2526 = vmul.f32 %v2398, %v2142
        %v2527 = vmul.f32 %v2399, %v2143
        %v2528 = vmul.f32 %v2400, %v2144
        %v2529 = vmul.f32 %v2401, %v2145
        %v2530 = vmul.f32 %v2402, %v2146
        %v2531 = vmul.f32 %v2403, %v2147
        %v2532 = vmul.f32 %v2404, %v2148
        %v2533 = vmul.f32 %v2405, %v2149
        %v2534 = vmul.f32 %v2406, %v2150
        %v2535 = vmul.f32 %v2407, %v2151
        %v2536 = vmul.f32 %v2408, %v2152
        %v2537 = vmul.f32 %v2409, %v2153
        %v2538 = vmul.f32 %v2410, %v2154
        %v2539 = vmul.f32 %v2411, %v2155
        %v2540 = vmul.f32 %v2412, %v2156
        %v2541 = vmul.f32 %v2413, %v2157
        %v2542 = vmul.f32 %v2414, %v2158
        %v2543 = vmul.f32 %v2415, %v2159
        %v2544 = vmul.f32 %v2416, %v2160
        %v2545 = vmul.f32 %v2417, %v2161
        %v2546 = vmul.f32 %v2418, %v2162
        %v2547 = vmul.f32 %v2419, %v2163
        %v2548 = vmul.f32 %v2420, %v2164
        %v2549 = vmul.f32 %v2421, %v2165
        %v2550 = vmul.f32 %v2422, %v2166
        %v2551 = vmul.f32 %v2423, %v2167
        %v2552 = vmul.f32 %v2424, %v2168
        %v2553 = vmul.f32 %v2425, %v2169
        %v2554 = vmul.f32 %v2426, %v2170
        %v2555 = vmul.f32 %v2427, %v2171
        %v2556 = vmul.f32 %v2428, %v2172
        %v2557 = vmul.f32 %v2429, %v2173
        %v2558 = vlaneseq
        %v2559 = vand.u32 %v2558, 127
        %vm2560 = vcmp.lt.s32.totalorder %v2559, 64
        %v2561 = vsel %vm2560, %v2430, -1e+30
        %v2562 = vsel %vm2560, %v2431, -1e+30
        %v2563 = vsel %vm2560, %v2432, -1e+30
        %v2564 = vsel %vm2560, %v2433, -1e+30
        %v2565 = vsel %vm2560, %v2434, -1e+30
        %v2566 = vsel %vm2560, %v2435, -1e+30
        %v2567 = vsel %vm2560, %v2436, -1e+30
        %v2568 = vsel %vm2560, %v2437, -1e+30
        %v2569 = vsel %vm2560, %v2438, -1e+30
        %v2570 = vsel %vm2560, %v2439, -1e+30
        %v2571 = vsel %vm2560, %v2440, -1e+30
        %v2572 = vsel %vm2560, %v2441, -1e+30
        %v2573 = vsel %vm2560, %v2442, -1e+30
        %v2574 = vsel %vm2560, %v2443, -1e+30
        %v2575 = vsel %vm2560, %v2444, -1e+30
        %v2576 = vsel %vm2560, %v2445, -1e+30
        %v2577 = vsel %vm2560, %v2446, -1e+30
        %v2578 = vsel %vm2560, %v2447, -1e+30
        %v2579 = vsel %vm2560, %v2448, -1e+30
        %v2580 = vsel %vm2560, %v2449, -1e+30
        %v2581 = vsel %vm2560, %v2450, -1e+30
        %v2582 = vsel %vm2560, %v2451, -1e+30
        %v2583 = vsel %vm2560, %v2452, -1e+30
        %v2584 = vsel %vm2560, %v2453, -1e+30
        %v2585 = vsel %vm2560, %v2454, -1e+30
        %v2586 = vsel %vm2560, %v2455, -1e+30
        %v2587 = vsel %vm2560, %v2456, -1e+30
        %v2588 = vsel %vm2560, %v2457, -1e+30
        %v2589 = vsel %vm2560, %v2458, -1e+30
        %v2590 = vsel %vm2560, %v2459, -1e+30
        %v2591 = vsel %vm2560, %v2460, -1e+30
        %v2592 = vsel %vm2560, %v2461, -1e+30
        %v2593 = vsel %vm2560, %v2462, -1e+30
        %v2594 = vsel %vm2560, %v2463, -1e+30
        %v2595 = vsel %vm2560, %v2464, -1e+30
        %v2596 = vsel %vm2560, %v2465, -1e+30
        %v2597 = vsel %vm2560, %v2466, -1e+30
        %v2598 = vsel %vm2560, %v2467, -1e+30
        %v2599 = vsel %vm2560, %v2468, -1e+30
        %v2600 = vsel %vm2560, %v2469, -1e+30
        %v2601 = vsel %vm2560, %v2470, -1e+30
        %v2602 = vsel %vm2560, %v2471, -1e+30
        %v2603 = vsel %vm2560, %v2472, -1e+30
        %v2604 = vsel %vm2560, %v2473, -1e+30
        %v2605 = vsel %vm2560, %v2474, -1e+30
        %v2606 = vsel %vm2560, %v2475, -1e+30
        %v2607 = vsel %vm2560, %v2476, -1e+30
        %v2608 = vsel %vm2560, %v2477, -1e+30
        %v2609 = vsel %vm2560, %v2478, -1e+30
        %v2610 = vsel %vm2560, %v2479, -1e+30
        %v2611 = vsel %vm2560, %v2480, -1e+30
        %v2612 = vsel %vm2560, %v2481, -1e+30
        %v2613 = vsel %vm2560, %v2482, -1e+30
        %v2614 = vsel %vm2560, %v2483, -1e+30
        %v2615 = vsel %vm2560, %v2484, -1e+30
        %v2616 = vsel %vm2560, %v2485, -1e+30
        %v2617 = vsel %vm2560, %v2486, -1e+30
        %v2618 = vsel %vm2560, %v2487, -1e+30
        %v2619 = vsel %vm2560, %v2488, -1e+30
        %v2620 = vsel %vm2560, %v2489, -1e+30
        %v2621 = vsel %vm2560, %v2490, -1e+30
        %v2622 = vsel %vm2560, %v2491, -1e+30
        %v2623 = vsel %vm2560, %v2492, -1e+30
        %v2624 = vsel %vm2560, %v2493, -1e+30
        %v2625 = vsel %vm2560, %v2494, -1e+30
        %v2626 = vsel %vm2560, %v2495, -1e+30
        %v2627 = vsel %vm2560, %v2496, -1e+30
        %v2628 = vsel %vm2560, %v2497, -1e+30
        %v2629 = vsel %vm2560, %v2498, -1e+30
        %v2630 = vsel %vm2560, %v2499, -1e+30
        %v2631 = vsel %vm2560, %v2500, -1e+30
        %v2632 = vsel %vm2560, %v2501, -1e+30
        %v2633 = vsel %vm2560, %v2502, -1e+30
        %v2634 = vsel %vm2560, %v2503, -1e+30
        %v2635 = vsel %vm2560, %v2504, -1e+30
        %v2636 = vsel %vm2560, %v2505, -1e+30
        %v2637 = vsel %vm2560, %v2506, -1e+30
        %v2638 = vsel %vm2560, %v2507, -1e+30
        %v2639 = vsel %vm2560, %v2508, -1e+30
        %v2640 = vsel %vm2560, %v2509, -1e+30
        %v2641 = vsel %vm2560, %v2510, -1e+30
        %v2642 = vsel %vm2560, %v2511, -1e+30
        %v2643 = vsel %vm2560, %v2512, -1e+30
        %v2644 = vsel %vm2560, %v2513, -1e+30
        %v2645 = vsel %vm2560, %v2514, -1e+30
        %v2646 = vsel %vm2560, %v2515, -1e+30
        %v2647 = vsel %vm2560, %v2516, -1e+30
        %v2648 = vsel %vm2560, %v2517, -1e+30
        %v2649 = vsel %vm2560, %v2518, -1e+30
        %v2650 = vsel %vm2560, %v2519, -1e+30
        %v2651 = vsel %vm2560, %v2520, -1e+30
        %v2652 = vsel %vm2560, %v2521, -1e+30
        %v2653 = vsel %vm2560, %v2522, -1e+30
        %v2654 = vsel %vm2560, %v2523, -1e+30
        %v2655 = vsel %vm2560, %v2524, -1e+30
        %v2656 = vsel %vm2560, %v2525, -1e+30
        %v2657 = vsel %vm2560, %v2526, -1e+30
        %v2658 = vsel %vm2560, %v2527, -1e+30
        %v2659 = vsel %vm2560, %v2528, -1e+30
        %v2660 = vsel %vm2560, %v2529, -1e+30
        %v2661 = vsel %vm2560, %v2530, -1e+30
        %v2662 = vsel %vm2560, %v2531, -1e+30
        %v2663 = vsel %vm2560, %v2532, -1e+30
        %v2664 = vsel %vm2560, %v2533, -1e+30
        %v2665 = vsel %vm2560, %v2534, -1e+30
        %v2666 = vsel %vm2560, %v2535, -1e+30
        %v2667 = vsel %vm2560, %v2536, -1e+30
        %v2668 = vsel %vm2560, %v2537, -1e+30
        %v2669 = vsel %vm2560, %v2538, -1e+30
        %v2670 = vsel %vm2560, %v2539, -1e+30
        %v2671 = vsel %vm2560, %v2540, -1e+30
        %v2672 = vsel %vm2560, %v2541, -1e+30
        %v2673 = vsel %vm2560, %v2542, -1e+30
        %v2674 = vsel %vm2560, %v2543, -1e+30
        %v2675 = vsel %vm2560, %v2544, -1e+30
        %v2676 = vsel %vm2560, %v2545, -1e+30
        %v2677 = vsel %vm2560, %v2546, -1e+30
        %v2678 = vsel %vm2560, %v2547, -1e+30
        %v2679 = vsel %vm2560, %v2548, -1e+30
        %v2680 = vsel %vm2560, %v2549, -1e+30
        %v2681 = vsel %vm2560, %v2550, -1e+30
        %v2682 = vsel %vm2560, %v2551, -1e+30
        %v2683 = vsel %vm2560, %v2552, -1e+30
        %v2684 = vsel %vm2560, %v2553, -1e+30
        %v2685 = vsel %vm2560, %v2554, -1e+30
        %v2686 = vsel %vm2560, %v2555, -1e+30
        %v2687 = vsel %vm2560, %v2556, -1e+30
        %v2688 = vsel %vm2560, %v2557, -1e+30
        %2689 = vmax.xlane.f32.xlu0 %v2561
        %v2690 = vpop.xlane.xlu0 %2689
        %2691 = vmax.xlane.f32.xlu0 %v2562
        %v2692 = vpop.xlane.xlu0 %2691
        %2693 = vmax.xlane.f32.xlu0 %v2563
        %v2694 = vpop.xlane.xlu0 %2693
        %2695 = vmax.xlane.f32.xlu0 %v2564
        %v2696 = vpop.xlane.xlu0 %2695
        %2697 = vmax.xlane.f32.xlu0 %v2565
        %v2698 = vpop.xlane.xlu0 %2697
        %2699 = vmax.xlane.f32.xlu0 %v2566
        %v2700 = vpop.xlane.xlu0 %2699
        %2701 = vmax.xlane.f32.xlu0 %v2567
        %v2702 = vpop.xlane.xlu0 %2701
        %2703 = vmax.xlane.f32.xlu0 %v2568
        %v2704 = vpop.xlane.xlu0 %2703
        %2705 = vmax.xlane.f32.xlu0 %v2569
        %v2706 = vpop.xlane.xlu0 %2705
        %2707 = vmax.xlane.f32.xlu0 %v2570
        %v2708 = vpop.xlane.xlu0 %2707
        %2709 = vmax.xlane.f32.xlu0 %v2571
        %v2710 = vpop.xlane.xlu0 %2709
        %2711 = vmax.xlane.f32.xlu0 %v2572
        %v2712 = vpop.xlane.xlu0 %2711
        %2713 = vmax.xlane.f32.xlu0 %v2573
        %v2714 = vpop.xlane.xlu0 %2713
        %2715 = vmax.xlane.f32.xlu0 %v2574
        %v2716 = vpop.xlane.xlu0 %2715
        %2717 = vmax.xlane.f32.xlu0 %v2575
        %v2718 = vpop.xlane.xlu0 %2717
        %2719 = vmax.xlane.f32.xlu0 %v2576
        %v2720 = vpop.xlane.xlu0 %2719
        %2721 = vmax.xlane.f32.xlu0 %v2577
        %v2722 = vpop.xlane.xlu0 %2721
        %2723 = vmax.xlane.f32.xlu0 %v2578
        %v2724 = vpop.xlane.xlu0 %2723
        %2725 = vmax.xlane.f32.xlu0 %v2579
        %v2726 = vpop.xlane.xlu0 %2725
        %2727 = vmax.xlane.f32.xlu0 %v2580
        %v2728 = vpop.xlane.xlu0 %2727
        %2729 = vmax.xlane.f32.xlu0 %v2581
        %v2730 = vpop.xlane.xlu0 %2729
        %2731 = vmax.xlane.f32.xlu0 %v2582
        %v2732 = vpop.xlane.xlu0 %2731
        %2733 = vmax.xlane.f32.xlu0 %v2583
        %v2734 = vpop.xlane.xlu0 %2733
        %2735 = vmax.xlane.f32.xlu0 %v2584
        %v2736 = vpop.xlane.xlu0 %2735
        %2737 = vmax.xlane.f32.xlu0 %v2585
        %v2738 = vpop.xlane.xlu0 %2737
        %2739 = vmax.xlane.f32.xlu0 %v2586
        %v2740 = vpop.xlane.xlu0 %2739
        %2741 = vmax.xlane.f32.xlu0 %v2587
        %v2742 = vpop.xlane.xlu0 %2741
        %2743 = vmax.xlane.f32.xlu0 %v2588
        %v2744 = vpop.xlane.xlu0 %2743
        %2745 = vmax.xlane.f32.xlu0 %v2589
        %v2746 = vpop.xlane.xlu0 %2745
        %2747 = vmax.xlane.f32.xlu0 %v2590
        %v2748 = vpop.xlane.xlu0 %2747
        %2749 = vmax.xlane.f32.xlu0 %v2591
        %v2750 = vpop.xlane.xlu0 %2749
        %2751 = vmax.xlane.f32.xlu0 %v2592
        %v2752 = vpop.xlane.xlu0 %2751
        %2753 = vmax.xlane.f32.xlu0 %v2593
        %v2754 = vpop.xlane.xlu0 %2753
        %2755 = vmax.xlane.f32.xlu0 %v2594
        %v2756 = vpop.xlane.xlu0 %2755
        %2757 = vmax.xlane.f32.xlu0 %v2595
        %v2758 = vpop.xlane.xlu0 %2757
        %2759 = vmax.xlane.f32.xlu0 %v2596
        %v2760 = vpop.xlane.xlu0 %2759
        %2761 = vmax.xlane.f32.xlu0 %v2597
        %v2762 = vpop.xlane.xlu0 %2761
        %2763 = vmax.xlane.f32.xlu0 %v2598
        %v2764 = vpop.xlane.xlu0 %2763
        %2765 = vmax.xlane.f32.xlu0 %v2599
        %v2766 = vpop.xlane.xlu0 %2765
        %2767 = vmax.xlane.f32.xlu0 %v2600
        %v2768 = vpop.xlane.xlu0 %2767
        %2769 = vmax.xlane.f32.xlu0 %v2601
        %v2770 = vpop.xlane.xlu0 %2769
        %2771 = vmax.xlane.f32.xlu0 %v2602
        %v2772 = vpop.xlane.xlu0 %2771
        %2773 = vmax.xlane.f32.xlu0 %v2603
        %v2774 = vpop.xlane.xlu0 %2773
        %2775 = vmax.xlane.f32.xlu0 %v2604
        %v2776 = vpop.xlane.xlu0 %2775
        %2777 = vmax.xlane.f32.xlu0 %v2605
        %v2778 = vpop.xlane.xlu0 %2777
        %2779 = vmax.xlane.f32.xlu0 %v2606
        %v2780 = vpop.xlane.xlu0 %2779
        %2781 = vmax.xlane.f32.xlu0 %v2607
        %v2782 = vpop.xlane.xlu0 %2781
        %2783 = vmax.xlane.f32.xlu0 %v2608
        %v2784 = vpop.xlane.xlu0 %2783
        %2785 = vmax.xlane.f32.xlu0 %v2609
        %v2786 = vpop.xlane.xlu0 %2785
        %2787 = vmax.xlane.f32.xlu0 %v2610
        %v2788 = vpop.xlane.xlu0 %2787
        %2789 = vmax.xlane.f32.xlu0 %v2611
        %v2790 = vpop.xlane.xlu0 %2789
        %2791 = vmax.xlane.f32.xlu0 %v2612
        %v2792 = vpop.xlane.xlu0 %2791
        %2793 = vmax.xlane.f32.xlu0 %v2613
        %v2794 = vpop.xlane.xlu0 %2793
        %2795 = vmax.xlane.f32.xlu0 %v2614
        %v2796 = vpop.xlane.xlu0 %2795
        %2797 = vmax.xlane.f32.xlu0 %v2615
        %v2798 = vpop.xlane.xlu0 %2797
        %2799 = vmax.xlane.f32.xlu0 %v2616
        %v2800 = vpop.xlane.xlu0 %2799
        %2801 = vmax.xlane.f32.xlu0 %v2617
        %v2802 = vpop.xlane.xlu0 %2801
        %2803 = vmax.xlane.f32.xlu0 %v2618
        %v2804 = vpop.xlane.xlu0 %2803
        %2805 = vmax.xlane.f32.xlu0 %v2619
        %v2806 = vpop.xlane.xlu0 %2805
        %2807 = vmax.xlane.f32.xlu0 %v2620
        %v2808 = vpop.xlane.xlu0 %2807
        %2809 = vmax.xlane.f32.xlu0 %v2621
        %v2810 = vpop.xlane.xlu0 %2809
        %2811 = vmax.xlane.f32.xlu0 %v2622
        %v2812 = vpop.xlane.xlu0 %2811
        %2813 = vmax.xlane.f32.xlu0 %v2623
        %v2814 = vpop.xlane.xlu0 %2813
        %2815 = vmax.xlane.f32.xlu0 %v2624
        %v2816 = vpop.xlane.xlu0 %2815
        %2817 = vmax.xlane.f32.xlu0 %v2625
        %v2818 = vpop.xlane.xlu0 %2817
        %2819 = vmax.xlane.f32.xlu0 %v2626
        %v2820 = vpop.xlane.xlu0 %2819
        %2821 = vmax.xlane.f32.xlu0 %v2627
        %v2822 = vpop.xlane.xlu0 %2821
        %2823 = vmax.xlane.f32.xlu0 %v2628
        %v2824 = vpop.xlane.xlu0 %2823
        %2825 = vmax.xlane.f32.xlu0 %v2629
        %v2826 = vpop.xlane.xlu0 %2825
        %2827 = vmax.xlane.f32.xlu0 %v2630
        %v2828 = vpop.xlane.xlu0 %2827
        %2829 = vmax.xlane.f32.xlu0 %v2631
        %v2830 = vpop.xlane.xlu0 %2829
        %2831 = vmax.xlane.f32.xlu0 %v2632
        %v2832 = vpop.xlane.xlu0 %2831
        %2833 = vmax.xlane.f32.xlu0 %v2633
        %v2834 = vpop.xlane.xlu0 %2833
        %2835 = vmax.xlane.f32.xlu0 %v2634
        %v2836 = vpop.xlane.xlu0 %2835
        %2837 = vmax.xlane.f32.xlu0 %v2635
        %v2838 = vpop.xlane.xlu0 %2837
        %2839 = vmax.xlane.f32.xlu0 %v2636
        %v2840 = vpop.xlane.xlu0 %2839
        %2841 = vmax.xlane.f32.xlu0 %v2637
        %v2842 = vpop.xlane.xlu0 %2841
        %2843 = vmax.xlane.f32.xlu0 %v2638
        %v2844 = vpop.xlane.xlu0 %2843
        %2845 = vmax.xlane.f32.xlu0 %v2639
        %v2846 = vpop.xlane.xlu0 %2845
        %2847 = vmax.xlane.f32.xlu0 %v2640
        %v2848 = vpop.xlane.xlu0 %2847
        %2849 = vmax.xlane.f32.xlu0 %v2641
        %v2850 = vpop.xlane.xlu0 %2849
        %2851 = vmax.xlane.f32.xlu0 %v2642
        %v2852 = vpop.xlane.xlu0 %2851
        %2853 = vmax.xlane.f32.xlu0 %v2643
        %v2854 = vpop.xlane.xlu0 %2853
        %2855 = vmax.xlane.f32.xlu0 %v2644
        %v2856 = vpop.xlane.xlu0 %2855
        %2857 = vmax.xlane.f32.xlu0 %v2645
        %v2858 = vpop.xlane.xlu0 %2857
        %2859 = vmax.xlane.f32.xlu0 %v2646
        %v2860 = vpop.xlane.xlu0 %2859
        %2861 = vmax.xlane.f32.xlu0 %v2647
        %v2862 = vpop.xlane.xlu0 %2861
        %2863 = vmax.xlane.f32.xlu0 %v2648
        %v2864 = vpop.xlane.xlu0 %2863
        %2865 = vmax.xlane.f32.xlu0 %v2649
        %v2866 = vpop.xlane.xlu0 %2865
        %2867 = vmax.xlane.f32.xlu0 %v2650
        %v2868 = vpop.xlane.xlu0 %2867
        %2869 = vmax.xlane.f32.xlu0 %v2651
        %v2870 = vpop.xlane.xlu0 %2869
        %2871 = vmax.xlane.f32.xlu0 %v2652
        %v2872 = vpop.xlane.xlu0 %2871
        %2873 = vmax.xlane.f32.xlu0 %v2653
        %v2874 = vpop.xlane.xlu0 %2873
        %2875 = vmax.xlane.f32.xlu0 %v2654
        %v2876 = vpop.xlane.xlu0 %2875
        %2877 = vmax.xlane.f32.xlu0 %v2655
        %v2878 = vpop.xlane.xlu0 %2877
        %2879 = vmax.xlane.f32.xlu0 %v2656
        %v2880 = vpop.xlane.xlu0 %2879
        %2881 = vmax.xlane.f32.xlu0 %v2657
        %v2882 = vpop.xlane.xlu0 %2881
        %2883 = vmax.xlane.f32.xlu0 %v2658
        %v2884 = vpop.xlane.xlu0 %2883
        %2885 = vmax.xlane.f32.xlu0 %v2659
        %v2886 = vpop.xlane.xlu0 %2885
        %2887 = vmax.xlane.f32.xlu0 %v2660
        %v2888 = vpop.xlane.xlu0 %2887
        %2889 = vmax.xlane.f32.xlu0 %v2661
        %v2890 = vpop.xlane.xlu0 %2889
        %2891 = vmax.xlane.f32.xlu0 %v2662
        %v2892 = vpop.xlane.xlu0 %2891
        %2893 = vmax.xlane.f32.xlu0 %v2663
        %v2894 = vpop.xlane.xlu0 %2893
        %2895 = vmax.xlane.f32.xlu0 %v2664
        %v2896 = vpop.xlane.xlu0 %2895
        %2897 = vmax.xlane.f32.xlu0 %v2665
        %v2898 = vpop.xlane.xlu0 %2897
        %2899 = vmax.xlane.f32.xlu0 %v2666
        %v2900 = vpop.xlane.xlu0 %2899
        %2901 = vmax.xlane.f32.xlu0 %v2667
        %v2902 = vpop.xlane.xlu0 %2901
        %2903 = vmax.xlane.f32.xlu0 %v2668
        %v2904 = vpop.xlane.xlu0 %2903
        %2905 = vmax.xlane.f32.xlu0 %v2669
        %v2906 = vpop.xlane.xlu0 %2905
        %2907 = vmax.xlane.f32.xlu0 %v2670
        %v2908 = vpop.xlane.xlu0 %2907
        %2909 = vmax.xlane.f32.xlu0 %v2671
        %v2910 = vpop.xlane.xlu0 %2909
        %2911 = vmax.xlane.f32.xlu0 %v2672
        %v2912 = vpop.xlane.xlu0 %2911
        %2913 = vmax.xlane.f32.xlu0 %v2673
        %v2914 = vpop.xlane.xlu0 %2913
        %2915 = vmax.xlane.f32.xlu0 %v2674
        %v2916 = vpop.xlane.xlu0 %2915
        %2917 = vmax.xlane.f32.xlu0 %v2675
        %v2918 = vpop.xlane.xlu0 %2917
        %2919 = vmax.xlane.f32.xlu0 %v2676
        %v2920 = vpop.xlane.xlu0 %2919
        %2921 = vmax.xlane.f32.xlu0 %v2677
        %v2922 = vpop.xlane.xlu0 %2921
        %2923 = vmax.xlane.f32.xlu0 %v2678
        %v2924 = vpop.xlane.xlu0 %2923
        %2925 = vmax.xlane.f32.xlu0 %v2679
        %v2926 = vpop.xlane.xlu0 %2925
        %2927 = vmax.xlane.f32.xlu0 %v2680
        %v2928 = vpop.xlane.xlu0 %2927
        %2929 = vmax.xlane.f32.xlu0 %v2681
        %v2930 = vpop.xlane.xlu0 %2929
        %2931 = vmax.xlane.f32.xlu0 %v2682
        %v2932 = vpop.xlane.xlu0 %2931
        %2933 = vmax.xlane.f32.xlu0 %v2683
        %v2934 = vpop.xlane.xlu0 %2933
        %2935 = vmax.xlane.f32.xlu0 %v2684
        %v2936 = vpop.xlane.xlu0 %2935
        %2937 = vmax.xlane.f32.xlu0 %v2685
        %v2938 = vpop.xlane.xlu0 %2937
        %2939 = vmax.xlane.f32.xlu0 %v2686
        %v2940 = vpop.xlane.xlu0 %2939
        %2941 = vmax.xlane.f32.xlu0 %v2687
        %v2942 = vpop.xlane.xlu0 %2941
        %2943 = vmax.xlane.f32.xlu0 %v2688
        %v2944 = vpop.xlane.xlu0 %2943
        %v2945 = vsub.f32 %v2561, %v2690
        %v2946 = vsub.f32 %v2562, %v2692
        %v2947 = vsub.f32 %v2563, %v2694
        %v2948 = vsub.f32 %v2564, %v2696
        %v2949 = vsub.f32 %v2565, %v2698
        %v2950 = vsub.f32 %v2566, %v2700
        %v2951 = vsub.f32 %v2567, %v2702
        %v2952 = vsub.f32 %v2568, %v2704
        %v2953 = vsub.f32 %v2569, %v2706
        %v2954 = vsub.f32 %v2570, %v2708
        %v2955 = vsub.f32 %v2571, %v2710
        %v2956 = vsub.f32 %v2572, %v2712
        %v2957 = vsub.f32 %v2573, %v2714
        %v2958 = vsub.f32 %v2574, %v2716
        %v2959 = vsub.f32 %v2575, %v2718
        %v2960 = vsub.f32 %v2576, %v2720
        %v2961 = vsub.f32 %v2577, %v2722
        %v2962 = vsub.f32 %v2578, %v2724
        %v2963 = vsub.f32 %v2579, %v2726
        %v2964 = vsub.f32 %v2580, %v2728
        %v2965 = vsub.f32 %v2581, %v2730
        %v2966 = vsub.f32 %v2582, %v2732
        %v2967 = vsub.f32 %v2583, %v2734
        %v2968 = vsub.f32 %v2584, %v2736
        %v2969 = vsub.f32 %v2585, %v2738
        %v2970 = vsub.f32 %v2586, %v2740
        %v2971 = vsub.f32 %v2587, %v2742
        %v2972 = vsub.f32 %v2588, %v2744
        %v2973 = vsub.f32 %v2589, %v2746
        %v2974 = vsub.f32 %v2590, %v2748
        %v2975 = vsub.f32 %v2591, %v2750
        %v2976 = vsub.f32 %v2592, %v2752
        %v2977 = vsub.f32 %v2593, %v2754
        %v2978 = vsub.f32 %v2594, %v2756
        %v2979 = vsub.f32 %v2595, %v2758
        %v2980 = vsub.f32 %v2596, %v2760
        %v2981 = vsub.f32 %v2597, %v2762
        %v2982 = vsub.f32 %v2598, %v2764
        %v2983 = vsub.f32 %v2599, %v2766
        %v2984 = vsub.f32 %v2600, %v2768
        %v2985 = vsub.f32 %v2601, %v2770
        %v2986 = vsub.f32 %v2602, %v2772
        %v2987 = vsub.f32 %v2603, %v2774
        %v2988 = vsub.f32 %v2604, %v2776
        %v2989 = vsub.f32 %v2605, %v2778
        %v2990 = vsub.f32 %v2606, %v2780
        %v2991 = vsub.f32 %v2607, %v2782
        %v2992 = vsub.f32 %v2608, %v2784
        %v2993 = vsub.f32 %v2609, %v2786
        %v2994 = vsub.f32 %v2610, %v2788
        %v2995 = vsub.f32 %v2611, %v2790
        %v2996 = vsub.f32 %v2612, %v2792
        %v2997 = vsub.f32 %v2613, %v2794
        %v2998 = vsub.f32 %v2614, %v2796
        %v2999 = vsub.f32 %v2615, %v2798
        %v3000 = vsub.f32 %v2616, %v2800
        %v3001 = vsub.f32 %v2617, %v2802
        %v3002 = vsub.f32 %v2618, %v2804
        %v3003 = vsub.f32 %v2619, %v2806
        %v3004 = vsub.f32 %v2620, %v2808
        %v3005 = vsub.f32 %v2621, %v2810
        %v3006 = vsub.f32 %v2622, %v2812
        %v3007 = vsub.f32 %v2623, %v2814
        %v3008 = vsub.f32 %v2624, %v2816
        %v3009 = vsub.f32 %v2625, %v2818
        %v3010 = vsub.f32 %v2626, %v2820
        %v3011 = vsub.f32 %v2627, %v2822
        %v3012 = vsub.f32 %v2628, %v2824
        %v3013 = vsub.f32 %v2629, %v2826
        %v3014 = vsub.f32 %v2630, %v2828
        %v3015 = vsub.f32 %v2631, %v2830
        %v3016 = vsub.f32 %v2632, %v2832
        %v3017 = vsub.f32 %v2633, %v2834
        %v3018 = vsub.f32 %v2634, %v2836
        %v3019 = vsub.f32 %v2635, %v2838
        %v3020 = vsub.f32 %v2636, %v2840
        %v3021 = vsub.f32 %v2637, %v2842
        %v3022 = vsub.f32 %v2638, %v2844
        %v3023 = vsub.f32 %v2639, %v2846
        %v3024 = vsub.f32 %v2640, %v2848
        %v3025 = vsub.f32 %v2641, %v2850
        %v3026 = vsub.f32 %v2642, %v2852
        %v3027 = vsub.f32 %v2643, %v2854
        %v3028 = vsub.f32 %v2644, %v2856
        %v3029 = vsub.f32 %v2645, %v2858
        %v3030 = vsub.f32 %v2646, %v2860
        %v3031 = vsub.f32 %v2647, %v2862
        %v3032 = vsub.f32 %v2648, %v2864
        %v3033 = vsub.f32 %v2649, %v2866
        %v3034 = vsub.f32 %v2650, %v2868
        %v3035 = vsub.f32 %v2651, %v2870
        %v3036 = vsub.f32 %v2652, %v2872
        %v3037 = vsub.f32 %v2653, %v2874
        %v3038 = vsub.f32 %v2654, %v2876
        %v3039 = vsub.f32 %v2655, %v2878
        %v3040 = vsub.f32 %v2656, %v2880
        %v3041 = vsub.f32 %v2657, %v2882
        %v3042 = vsub.f32 %v2658, %v2884
        %v3043 = vsub.f32 %v2659, %v2886
        %v3044 = vsub.f32 %v2660, %v2888
        %v3045 = vsub.f32 %v2661, %v2890
        %v3046 = vsub.f32 %v2662, %v2892
        %v3047 = vsub.f32 %v2663, %v2894
        %v3048 = vsub.f32 %v2664, %v2896
        %v3049 = vsub.f32 %v2665, %v2898
        %v3050 = vsub.f32 %v2666, %v2900
        %v3051 = vsub.f32 %v2667, %v2902
        %v3052 = vsub.f32 %v2668, %v2904
        %v3053 = vsub.f32 %v2669, %v2906
        %v3054 = vsub.f32 %v2670, %v2908
        %v3055 = vsub.f32 %v2671, %v2910
        %v3056 = vsub.f32 %v2672, %v2912
        %v3057 = vsub.f32 %v2673, %v2914
        %v3058 = vsub.f32 %v2674, %v2916
        %v3059 = vsub.f32 %v2675, %v2918
        %v3060 = vsub.f32 %v2676, %v2920
        %v3061 = vsub.f32 %v2677, %v2922
        %v3062 = vsub.f32 %v2678, %v2924
        %v3063 = vsub.f32 %v2679, %v2926
        %v3064 = vsub.f32 %v2680, %v2928
        %v3065 = vsub.f32 %v2681, %v2930
        %v3066 = vsub.f32 %v2682, %v2932
        %v3067 = vsub.f32 %v2683, %v2934
        %v3068 = vsub.f32 %v2684, %v2936
        %v3069 = vsub.f32 %v2685, %v2938
        %v3070 = vsub.f32 %v2686, %v2940
        %v3071 = vsub.f32 %v2687, %v2942
        %v3072 = vsub.f32 %v2688, %v2944
        %v3073 = vmul.f32 %v2945, 1.442695
        %v3074 = vpow.pop %v3073
        %v3075 = vmul.f32 %v2946, 1.442695
        %v3076 = vpow.pop %v3075
        %v3077 = vmul.f32 %v2947, 1.442695
        %v3078 = vpow.pop %v3077
        %v3079 = vmul.f32 %v2948, 1.442695
        %v3080 = vpow.pop %v3079
        %v3081 = vmul.f32 %v2949, 1.442695
        %v3082 = vpow.pop %v3081
        %v3083 = vmul.f32 %v2950, 1.442695
        %v3084 = vpow.pop %v3083
        %v3085 = vmul.f32 %v2951, 1.442695
        %v3086 = vpow.pop %v3085
        %v3087 = vmul.f32 %v2952, 1.442695
        %v3088 = vpow.pop %v3087
        %v3089 = vmul.f32 %v2953, 1.442695
        %v3090 = vpow.pop %v3089
        %v3091 = vmul.f32 %v2954, 1.442695
        %v3092 = vpow.pop %v3091
        %v3093 = vmul.f32 %v2955, 1.442695
        %v3094 = vpow.pop %v3093
        %v3095 = vmul.f32 %v2956, 1.442695
        %v3096 = vpow.pop %v3095
        %v3097 = vmul.f32 %v2957, 1.442695
        %v3098 = vpow.pop %v3097
        %v3099 = vmul.f32 %v2958, 1.442695
        %v3100 = vpow.pop %v3099
        %v3101 = vmul.f32 %v2959, 1.442695
        %v3102 = vpow.pop %v3101
        %v3103 = vmul.f32 %v2960, 1.442695
        %v3104 = vpow.pop %v3103
        %v3105 = vmul.f32 %v2961, 1.442695
        %v3106 = vpow.pop %v3105
        %v3107 = vmul.f32 %v2962, 1.442695
        %v3108 = vpow.pop %v3107
        %v3109 = vmul.f32 %v2963, 1.442695
        %v3110 = vpow.pop %v3109
        %v3111 = vmul.f32 %v2964, 1.442695
        %v3112 = vpow.pop %v3111
        %v3113 = vmul.f32 %v2965, 1.442695
        %v3114 = vpow.pop %v3113
        %v3115 = vmul.f32 %v2966, 1.442695
        %v3116 = vpow.pop %v3115
        %v3117 = vmul.f32 %v2967, 1.442695
        %v3118 = vpow.pop %v3117
        %v3119 = vmul.f32 %v2968, 1.442695
        %v3120 = vpow.pop %v3119
        %v3121 = vmul.f32 %v2969, 1.442695
        %v3122 = vpow.pop %v3121
        %v3123 = vmul.f32 %v2970, 1.442695
        %v3124 = vpow.pop %v3123
        %v3125 = vmul.f32 %v2971, 1.442695
        %v3126 = vpow.pop %v3125
        %v3127 = vmul.f32 %v2972, 1.442695
        %v3128 = vpow.pop %v3127
        %v3129 = vmul.f32 %v2973, 1.442695
        %v3130 = vpow.pop %v3129
        %v3131 = vmul.f32 %v2974, 1.442695
        %v3132 = vpow.pop %v3131
        %v3133 = vmul.f32 %v2975, 1.442695
        %v3134 = vpow.pop %v3133
        %v3135 = vmul.f32 %v2976, 1.442695
        %v3136 = vpow.pop %v3135
        %v3137 = vmul.f32 %v2977, 1.442695
        %v3138 = vpow.pop %v3137
        %v3139 = vmul.f32 %v2978, 1.442695
        %v3140 = vpow.pop %v3139
        %v3141 = vmul.f32 %v2979, 1.442695
        %v3142 = vpow.pop %v3141
        %v3143 = vmul.f32 %v2980, 1.442695
        %v3144 = vpow.pop %v3143
        %v3145 = vmul.f32 %v2981, 1.442695
        %v3146 = vpow.pop %v3145
        %v3147 = vmul.f32 %v2982, 1.442695
        %v3148 = vpow.pop %v3147
        %v3149 = vmul.f32 %v2983, 1.442695
        %v3150 = vpow.pop %v3149
        %v3151 = vmul.f32 %v2984, 1.442695
        %v3152 = vpow.pop %v3151
        %v3153 = vmul.f32 %v2985, 1.442695
        %v3154 = vpow.pop %v3153
        %v3155 = vmul.f32 %v2986, 1.442695
        %v3156 = vpow.pop %v3155
        %v3157 = vmul.f32 %v2987, 1.442695
        %v3158 = vpow.pop %v3157
        %v3159 = vmul.f32 %v2988, 1.442695
        %v3160 = vpow.pop %v3159
        %v3161 = vmul.f32 %v2989, 1.442695
        %v3162 = vpow.pop %v3161
        %v3163 = vmul.f32 %v2990, 1.442695
        %v3164 = vpow.pop %v3163
        %v3165 = vmul.f32 %v2991, 1.442695
        %v3166 = vpow.pop %v3165
        %v3167 = vmul.f32 %v2992, 1.442695
        %v3168 = vpow.pop %v3167
        %v3169 = vmul.f32 %v2993, 1.442695
        %v3170 = vpow.pop %v3169
        %v3171 = vmul.f32 %v2994, 1.442695
        %v3172 = vpow.pop %v3171
        %v3173 = vmul.f32 %v2995, 1.442695
        %v3174 = vpow.pop %v3173
        %v3175 = vmul.f32 %v2996, 1.442695
        %v3176 = vpow.pop %v3175
        %v3177 = vmul.f32 %v2997, 1.442695
        %v3178 = vpow.pop %v3177
        %v3179 = vmul.f32 %v2998, 1.442695
        %v3180 = vpow.pop %v3179
        %v3181 = vmul.f32 %v2999, 1.442695
        %v3182 = vpow.pop %v3181
        %v3183 = vmul.f32 %v3000, 1.442695
        %v3184 = vpow.pop %v3183
        %v3185 = vmul.f32 %v3001, 1.442695
        %v3186 = vpow.pop %v3185
        %v3187 = vmul.f32 %v3002, 1.442695
        %v3188 = vpow.pop %v3187
        %v3189 = vmul.f32 %v3003, 1.442695
        %v3190 = vpow.pop %v3189
        %v3191 = vmul.f32 %v3004, 1.442695
        %v3192 = vpow.pop %v3191
        %v3193 = vmul.f32 %v3005, 1.442695
        %v3194 = vpow.pop %v3193
        %v3195 = vmul.f32 %v3006, 1.442695
        %v3196 = vpow.pop %v3195
        %v3197 = vmul.f32 %v3007, 1.442695
        %v3198 = vpow.pop %v3197
        %v3199 = vmul.f32 %v3008, 1.442695
        %v3200 = vpow.pop %v3199
        %v3201 = vmul.f32 %v3009, 1.442695
        %v3202 = vpow.pop %v3201
        %v3203 = vmul.f32 %v3010, 1.442695
        %v3204 = vpow.pop %v3203
        %v3205 = vmul.f32 %v3011, 1.442695
        %v3206 = vpow.pop %v3205
        %v3207 = vmul.f32 %v3012, 1.442695
        %v3208 = vpow.pop %v3207
        %v3209 = vmul.f32 %v3013, 1.442695
        %v3210 = vpow.pop %v3209
        %v3211 = vmul.f32 %v3014, 1.442695
        %v3212 = vpow.pop %v3211
        %v3213 = vmul.f32 %v3015, 1.442695
        %v3214 = vpow.pop %v3213
        %v3215 = vmul.f32 %v3016, 1.442695
        %v3216 = vpow.pop %v3215
        %v3217 = vmul.f32 %v3017, 1.442695
        %v3218 = vpow.pop %v3217
        %v3219 = vmul.f32 %v3018, 1.442695
        %v3220 = vpow.pop %v3219
        %v3221 = vmul.f32 %v3019, 1.442695
        %v3222 = vpow.pop %v3221
        %v3223 = vmul.f32 %v3020, 1.442695
        %v3224 = vpow.pop %v3223
        %v3225 = vmul.f32 %v3021, 1.442695
        %v3226 = vpow.pop %v3225
        %v3227 = vmul.f32 %v3022, 1.442695
        %v3228 = vpow.pop %v3227
        %v3229 = vmul.f32 %v3023, 1.442695
        %v3230 = vpow.pop %v3229
        %v3231 = vmul.f32 %v3024, 1.442695
        %v3232 = vpow.pop %v3231
        %v3233 = vmul.f32 %v3025, 1.442695
        %v3234 = vpow.pop %v3233
        %v3235 = vmul.f32 %v3026, 1.442695
        %v3236 = vpow.pop %v3235
        %v3237 = vmul.f32 %v3027, 1.442695
        %v3238 = vpow.pop %v3237
        %v3239 = vmul.f32 %v3028, 1.442695
        %v3240 = vpow.pop %v3239
        %v3241 = vmul.f32 %v3029, 1.442695
        %v3242 = vpow.pop %v3241
        %v3243 = vmul.f32 %v3030, 1.442695
        %v3244 = vpow.pop %v3243
        %v3245 = vmul.f32 %v3031, 1.442695
        %v3246 = vpow.pop %v3245
        %v3247 = vmul.f32 %v3032, 1.442695
        %v3248 = vpow.pop %v3247
        %v3249 = vmul.f32 %v3033, 1.442695
        %v3250 = vpow.pop %v3249
        %v3251 = vmul.f32 %v3034, 1.442695
        %v3252 = vpow.pop %v3251
        %v3253 = vmul.f32 %v3035, 1.442695
        %v3254 = vpow.pop %v3253
        %v3255 = vmul.f32 %v3036, 1.442695
        %v3256 = vpow.pop %v3255
        %v3257 = vmul.f32 %v3037, 1.442695
        %v3258 = vpow.pop %v3257
        %v3259 = vmul.f32 %v3038, 1.442695
        %v3260 = vpow.pop %v3259
        %v3261 = vmul.f32 %v3039, 1.442695
        %v3262 = vpow.pop %v3261
        %v3263 = vmul.f32 %v3040, 1.442695
        %v3264 = vpow.pop %v3263
        %v3265 = vmul.f32 %v3041, 1.442695
        %v3266 = vpow.pop %v3265
        %v3267 = vmul.f32 %v3042, 1.442695
        %v3268 = vpow.pop %v3267
        %v3269 = vmul.f32 %v3043, 1.442695
        %v3270 = vpow.pop %v3269
        %v3271 = vmul.f32 %v3044, 1.442695
        %v3272 = vpow.pop %v3271
        %v3273 = vmul.f32 %v3045, 1.442695
        %v3274 = vpow.pop %v3273
        %v3275 = vmul.f32 %v3046, 1.442695
        %v3276 = vpow.pop %v3275
        %v3277 = vmul.f32 %v3047, 1.442695
        %v3278 = vpow.pop %v3277
        %v3279 = vmul.f32 %v3048, 1.442695
        %v3280 = vpow.pop %v3279
        %v3281 = vmul.f32 %v3049, 1.442695
        %v3282 = vpow.pop %v3281
        %v3283 = vmul.f32 %v3050, 1.442695
        %v3284 = vpow.pop %v3283
        %v3285 = vmul.f32 %v3051, 1.442695
        %v3286 = vpow.pop %v3285
        %v3287 = vmul.f32 %v3052, 1.442695
        %v3288 = vpow.pop %v3287
        %v3289 = vmul.f32 %v3053, 1.442695
        %v3290 = vpow.pop %v3289
        %v3291 = vmul.f32 %v3054, 1.442695
        %v3292 = vpow.pop %v3291
        %v3293 = vmul.f32 %v3055, 1.442695
        %v3294 = vpow.pop %v3293
        %v3295 = vmul.f32 %v3056, 1.442695
        %v3296 = vpow.pop %v3295
        %v3297 = vmul.f32 %v3057, 1.442695
        %v3298 = vpow.pop %v3297
        %v3299 = vmul.f32 %v3058, 1.442695
        %v3300 = vpow.pop %v3299
        %v3301 = vmul.f32 %v3059, 1.442695
        %v3302 = vpow.pop %v3301
        %v3303 = vmul.f32 %v3060, 1.442695
        %v3304 = vpow.pop %v3303
        %v3305 = vmul.f32 %v3061, 1.442695
        %v3306 = vpow.pop %v3305
        %v3307 = vmul.f32 %v3062, 1.442695
        %v3308 = vpow.pop %v3307
        %v3309 = vmul.f32 %v3063, 1.442695
        %v3310 = vpow.pop %v3309
        %v3311 = vmul.f32 %v3064, 1.442695
        %v3312 = vpow.pop %v3311
        %v3313 = vmul.f32 %v3065, 1.442695
        %v3314 = vpow.pop %v3313
        %v3315 = vmul.f32 %v3066, 1.442695
        %v3316 = vpow.pop %v3315
        %v3317 = vmul.f32 %v3067, 1.442695
        %v3318 = vpow.pop %v3317
        %v3319 = vmul.f32 %v3068, 1.442695
        %v3320 = vpow.pop %v3319
        %v3321 = vmul.f32 %v3069, 1.442695
        %v3322 = vpow.pop %v3321
        %v3323 = vmul.f32 %v3070, 1.442695
        %v3324 = vpow.pop %v3323
        %v3325 = vmul.f32 %v3071, 1.442695
        %v3326 = vpow.pop %v3325
        %v3327 = vmul.f32 %v3072, 1.442695
        %v3328 = vpow.pop %v3327
        %3329 = vadd.xlane.f32.xlu0 %v3074
        %v3330 = vpop.xlane.xlu0 %3329
        %3331 = vadd.xlane.f32.xlu0 %v3076
        %v3332 = vpop.xlane.xlu0 %3331
        %3333 = vadd.xlane.f32.xlu0 %v3078
        %v3334 = vpop.xlane.xlu0 %3333
        %3335 = vadd.xlane.f32.xlu0 %v3080
        %v3336 = vpop.xlane.xlu0 %3335
        %3337 = vadd.xlane.f32.xlu0 %v3082
        %v3338 = vpop.xlane.xlu0 %3337
        %3339 = vadd.xlane.f32.xlu0 %v3084
        %v3340 = vpop.xlane.xlu0 %3339
        %3341 = vadd.xlane.f32.xlu0 %v3086
        %v3342 = vpop.xlane.xlu0 %3341
        %3343 = vadd.xlane.f32.xlu0 %v3088
        %v3344 = vpop.xlane.xlu0 %3343
        %3345 = vadd.xlane.f32.xlu0 %v3090
        %v3346 = vpop.xlane.xlu0 %3345
        %3347 = vadd.xlane.f32.xlu0 %v3092
        %v3348 = vpop.xlane.xlu0 %3347
        %3349 = vadd.xlane.f32.xlu0 %v3094
        %v3350 = vpop.xlane.xlu0 %3349
        %3351 = vadd.xlane.f32.xlu0 %v3096
        %v3352 = vpop.xlane.xlu0 %3351
        %3353 = vadd.xlane.f32.xlu0 %v3098
        %v3354 = vpop.xlane.xlu0 %3353
        %3355 = vadd.xlane.f32.xlu0 %v3100
        %v3356 = vpop.xlane.xlu0 %3355
        %3357 = vadd.xlane.f32.xlu0 %v3102
        %v3358 = vpop.xlane.xlu0 %3357
        %3359 = vadd.xlane.f32.xlu0 %v3104
        %v3360 = vpop.xlane.xlu0 %3359
        %3361 = vadd.xlane.f32.xlu0 %v3106
        %v3362 = vpop.xlane.xlu0 %3361
        %3363 = vadd.xlane.f32.xlu0 %v3108
        %v3364 = vpop.xlane.xlu0 %3363
        %3365 = vadd.xlane.f32.xlu0 %v3110
        %v3366 = vpop.xlane.xlu0 %3365
        %3367 = vadd.xlane.f32.xlu0 %v3112
        %v3368 = vpop.xlane.xlu0 %3367
        %3369 = vadd.xlane.f32.xlu0 %v3114
        %v3370 = vpop.xlane.xlu0 %3369
        %3371 = vadd.xlane.f32.xlu0 %v3116
        %v3372 = vpop.xlane.xlu0 %3371
        %3373 = vadd.xlane.f32.xlu0 %v3118
        %v3374 = vpop.xlane.xlu0 %3373
        %3375 = vadd.xlane.f32.xlu0 %v3120
        %v3376 = vpop.xlane.xlu0 %3375
        %3377 = vadd.xlane.f32.xlu0 %v3122
        %v3378 = vpop.xlane.xlu0 %3377
        %3379 = vadd.xlane.f32.xlu0 %v3124
        %v3380 = vpop.xlane.xlu0 %3379
        %3381 = vadd.xlane.f32.xlu0 %v3126
        %v3382 = vpop.xlane.xlu0 %3381
        %3383 = vadd.xlane.f32.xlu0 %v3128
        %v3384 = vpop.xlane.xlu0 %3383
        %3385 = vadd.xlane.f32.xlu0 %v3130
        %v3386 = vpop.xlane.xlu0 %3385
        %3387 = vadd.xlane.f32.xlu0 %v3132
        %v3388 = vpop.xlane.xlu0 %3387
        %3389 = vadd.xlane.f32.xlu0 %v3134
        %v3390 = vpop.xlane.xlu0 %3389
        %3391 = vadd.xlane.f32.xlu0 %v3136
        %v3392 = vpop.xlane.xlu0 %3391
        %3393 = vadd.xlane.f32.xlu0 %v3138
        %v3394 = vpop.xlane.xlu0 %3393
        %3395 = vadd.xlane.f32.xlu0 %v3140
        %v3396 = vpop.xlane.xlu0 %3395
        %3397 = vadd.xlane.f32.xlu0 %v3142
        %v3398 = vpop.xlane.xlu0 %3397
        %3399 = vadd.xlane.f32.xlu0 %v3144
        %v3400 = vpop.xlane.xlu0 %3399
        %3401 = vadd.xlane.f32.xlu0 %v3146
        %v3402 = vpop.xlane.xlu0 %3401
        %3403 = vadd.xlane.f32.xlu0 %v3148
        %v3404 = vpop.xlane.xlu0 %3403
        %3405 = vadd.xlane.f32.xlu0 %v3150
        %v3406 = vpop.xlane.xlu0 %3405
        %3407 = vadd.xlane.f32.xlu0 %v3152
        %v3408 = vpop.xlane.xlu0 %3407
        %3409 = vadd.xlane.f32.xlu0 %v3154
        %v3410 = vpop.xlane.xlu0 %3409
        %3411 = vadd.xlane.f32.xlu0 %v3156
        %v3412 = vpop.xlane.xlu0 %3411
        %3413 = vadd.xlane.f32.xlu0 %v3158
        %v3414 = vpop.xlane.xlu0 %3413
        %3415 = vadd.xlane.f32.xlu0 %v3160
        %v3416 = vpop.xlane.xlu0 %3415
        %3417 = vadd.xlane.f32.xlu0 %v3162
        %v3418 = vpop.xlane.xlu0 %3417
        %3419 = vadd.xlane.f32.xlu0 %v3164
        %v3420 = vpop.xlane.xlu0 %3419
        %3421 = vadd.xlane.f32.xlu0 %v3166
        %v3422 = vpop.xlane.xlu0 %3421
        %3423 = vadd.xlane.f32.xlu0 %v3168
        %v3424 = vpop.xlane.xlu0 %3423
        %3425 = vadd.xlane.f32.xlu0 %v3170
        %v3426 = vpop.xlane.xlu0 %3425
        %3427 = vadd.xlane.f32.xlu0 %v3172
        %v3428 = vpop.xlane.xlu0 %3427
        %3429 = vadd.xlane.f32.xlu0 %v3174
        %v3430 = vpop.xlane.xlu0 %3429
        %3431 = vadd.xlane.f32.xlu0 %v3176
        %v3432 = vpop.xlane.xlu0 %3431
        %3433 = vadd.xlane.f32.xlu0 %v3178
        %v3434 = vpop.xlane.xlu0 %3433
        %3435 = vadd.xlane.f32.xlu0 %v3180
        %v3436 = vpop.xlane.xlu0 %3435
        %3437 = vadd.xlane.f32.xlu0 %v3182
        %v3438 = vpop.xlane.xlu0 %3437
        %3439 = vadd.xlane.f32.xlu0 %v3184
        %v3440 = vpop.xlane.xlu0 %3439
        %3441 = vadd.xlane.f32.xlu0 %v3186
        %v3442 = vpop.xlane.xlu0 %3441
        %3443 = vadd.xlane.f32.xlu0 %v3188
        %v3444 = vpop.xlane.xlu0 %3443
        %3445 = vadd.xlane.f32.xlu0 %v3190
        %v3446 = vpop.xlane.xlu0 %3445
        %3447 = vadd.xlane.f32.xlu0 %v3192
        %v3448 = vpop.xlane.xlu0 %3447
        %3449 = vadd.xlane.f32.xlu0 %v3194
        %v3450 = vpop.xlane.xlu0 %3449
        %3451 = vadd.xlane.f32.xlu0 %v3196
        %v3452 = vpop.xlane.xlu0 %3451
        %3453 = vadd.xlane.f32.xlu0 %v3198
        %v3454 = vpop.xlane.xlu0 %3453
        %3455 = vadd.xlane.f32.xlu0 %v3200
        %v3456 = vpop.xlane.xlu0 %3455
        %3457 = vadd.xlane.f32.xlu0 %v3202
        %v3458 = vpop.xlane.xlu0 %3457
        %3459 = vadd.xlane.f32.xlu0 %v3204
        %v3460 = vpop.xlane.xlu0 %3459
        %3461 = vadd.xlane.f32.xlu0 %v3206
        %v3462 = vpop.xlane.xlu0 %3461
        %3463 = vadd.xlane.f32.xlu0 %v3208
        %v3464 = vpop.xlane.xlu0 %3463
        %3465 = vadd.xlane.f32.xlu0 %v3210
        %v3466 = vpop.xlane.xlu0 %3465
        %3467 = vadd.xlane.f32.xlu0 %v3212
        %v3468 = vpop.xlane.xlu0 %3467
        %3469 = vadd.xlane.f32.xlu0 %v3214
        %v3470 = vpop.xlane.xlu0 %3469
        %3471 = vadd.xlane.f32.xlu0 %v3216
        %v3472 = vpop.xlane.xlu0 %3471
        %3473 = vadd.xlane.f32.xlu0 %v3218
        %v3474 = vpop.xlane.xlu0 %3473
        %3475 = vadd.xlane.f32.xlu0 %v3220
        %v3476 = vpop.xlane.xlu0 %3475
        %3477 = vadd.xlane.f32.xlu0 %v3222
        %v3478 = vpop.xlane.xlu0 %3477
        %3479 = vadd.xlane.f32.xlu0 %v3224
        %v3480 = vpop.xlane.xlu0 %3479
        %3481 = vadd.xlane.f32.xlu0 %v3226
        %v3482 = vpop.xlane.xlu0 %3481
        %3483 = vadd.xlane.f32.xlu0 %v3228
        %v3484 = vpop.xlane.xlu0 %3483
        %3485 = vadd.xlane.f32.xlu0 %v3230
        %v3486 = vpop.xlane.xlu0 %3485
        %3487 = vadd.xlane.f32.xlu0 %v3232
        %v3488 = vpop.xlane.xlu0 %3487
        %3489 = vadd.xlane.f32.xlu0 %v3234
        %v3490 = vpop.xlane.xlu0 %3489
        %3491 = vadd.xlane.f32.xlu0 %v3236
        %v3492 = vpop.xlane.xlu0 %3491
        %3493 = vadd.xlane.f32.xlu0 %v3238
        %v3494 = vpop.xlane.xlu0 %3493
        %3495 = vadd.xlane.f32.xlu0 %v3240
        %v3496 = vpop.xlane.xlu0 %3495
        %3497 = vadd.xlane.f32.xlu0 %v3242
        %v3498 = vpop.xlane.xlu0 %3497
        %3499 = vadd.xlane.f32.xlu0 %v3244
        %v3500 = vpop.xlane.xlu0 %3499
        %3501 = vadd.xlane.f32.xlu0 %v3246
        %v3502 = vpop.xlane.xlu0 %3501
        %3503 = vadd.xlane.f32.xlu0 %v3248
        %v3504 = vpop.xlane.xlu0 %3503
        %3505 = vadd.xlane.f32.xlu0 %v3250
        %v3506 = vpop.xlane.xlu0 %3505
        %3507 = vadd.xlane.f32.xlu0 %v3252
        %v3508 = vpop.xlane.xlu0 %3507
        %3509 = vadd.xlane.f32.xlu0 %v3254
        %v3510 = vpop.xlane.xlu0 %3509
        %3511 = vadd.xlane.f32.xlu0 %v3256
        %v3512 = vpop.xlane.xlu0 %3511
        %3513 = vadd.xlane.f32.xlu0 %v3258
        %v3514 = vpop.xlane.xlu0 %3513
        %3515 = vadd.xlane.f32.xlu0 %v3260
        %v3516 = vpop.xlane.xlu0 %3515
        %3517 = vadd.xlane.f32.xlu0 %v3262
        %v3518 = vpop.xlane.xlu0 %3517
        %3519 = vadd.xlane.f32.xlu0 %v3264
        %v3520 = vpop.xlane.xlu0 %3519
        %3521 = vadd.xlane.f32.xlu0 %v3266
        %v3522 = vpop.xlane.xlu0 %3521
        %3523 = vadd.xlane.f32.xlu0 %v3268
        %v3524 = vpop.xlane.xlu0 %3523
        %3525 = vadd.xlane.f32.xlu0 %v3270
        %v3526 = vpop.xlane.xlu0 %3525
        %3527 = vadd.xlane.f32.xlu0 %v3272
        %v3528 = vpop.xlane.xlu0 %3527
        %3529 = vadd.xlane.f32.xlu0 %v3274
        %v3530 = vpop.xlane.xlu0 %3529
        %3531 = vadd.xlane.f32.xlu0 %v3276
        %v3532 = vpop.xlane.xlu0 %3531
        %3533 = vadd.xlane.f32.xlu0 %v3278
        %v3534 = vpop.xlane.xlu0 %3533
        %3535 = vadd.xlane.f32.xlu0 %v3280
        %v3536 = vpop.xlane.xlu0 %3535
        %3537 = vadd.xlane.f32.xlu0 %v3282
        %v3538 = vpop.xlane.xlu0 %3537
        %3539 = vadd.xlane.f32.xlu0 %v3284
        %v3540 = vpop.xlane.xlu0 %3539
        %3541 = vadd.xlane.f32.xlu0 %v3286
        %v3542 = vpop.xlane.xlu0 %3541
        %3543 = vadd.xlane.f32.xlu0 %v3288
        %v3544 = vpop.xlane.xlu0 %3543
        %3545 = vadd.xlane.f32.xlu0 %v3290
        %v3546 = vpop.xlane.xlu0 %3545
        %3547 = vadd.xlane.f32.xlu0 %v3292
        %v3548 = vpop.xlane.xlu0 %3547
        %3549 = vadd.xlane.f32.xlu0 %v3294
        %v3550 = vpop.xlane.xlu0 %3549
        %3551 = vadd.xlane.f32.xlu0 %v3296
        %v3552 = vpop.xlane.xlu0 %3551
        %3553 = vadd.xlane.f32.xlu0 %v3298
        %v3554 = vpop.xlane.xlu0 %3553
        %3555 = vadd.xlane.f32.xlu0 %v3300
        %v3556 = vpop.xlane.xlu0 %3555
        %3557 = vadd.xlane.f32.xlu0 %v3302
        %v3558 = vpop.xlane.xlu0 %3557
        %3559 = vadd.xlane.f32.xlu0 %v3304
        %v3560 = vpop.xlane.xlu0 %3559
        %3561 = vadd.xlane.f32.xlu0 %v3306
        %v3562 = vpop.xlane.xlu0 %3561
        %3563 = vadd.xlane.f32.xlu0 %v3308
        %v3564 = vpop.xlane.xlu0 %3563
        %3565 = vadd.xlane.f32.xlu0 %v3310
        %v3566 = vpop.xlane.xlu0 %3565
        %3567 = vadd.xlane.f32.xlu0 %v3312
        %v3568 = vpop.xlane.xlu0 %3567
        %3569 = vadd.xlane.f32.xlu0 %v3314
        %v3570 = vpop.xlane.xlu0 %3569
        %3571 = vadd.xlane.f32.xlu0 %v3316
        %v3572 = vpop.xlane.xlu0 %3571
        %3573 = vadd.xlane.f32.xlu0 %v3318
        %v3574 = vpop.xlane.xlu0 %3573
        %3575 = vadd.xlane.f32.xlu0 %v3320
        %v3576 = vpop.xlane.xlu0 %3575
        %3577 = vadd.xlane.f32.xlu0 %v3322
        %v3578 = vpop.xlane.xlu0 %3577
        %3579 = vadd.xlane.f32.xlu0 %v3324
        %v3580 = vpop.xlane.xlu0 %3579
        %3581 = vadd.xlane.f32.xlu0 %v3326
        %v3582 = vpop.xlane.xlu0 %3581
        %3583 = vadd.xlane.f32.xlu0 %v3328
        %v3584 = vpop.xlane.xlu0 %3583
        %v3585 = vrcp.pop %v3330
        %v3586 = vrcp.pop %v3332
        %v3587 = vrcp.pop %v3334
        %v3588 = vrcp.pop %v3336
        %v3589 = vrcp.pop %v3338
        %v3590 = vrcp.pop %v3340
        %v3591 = vrcp.pop %v3342
        %v3592 = vrcp.pop %v3344
        %v3593 = vrcp.pop %v3346
        %v3594 = vrcp.pop %v3348
        %v3595 = vrcp.pop %v3350
        %v3596 = vrcp.pop %v3352
        %v3597 = vrcp.pop %v3354
        %v3598 = vrcp.pop %v3356
        %v3599 = vrcp.pop %v3358
        %v3600 = vrcp.pop %v3360
        %v3601 = vrcp.pop %v3362
        %v3602 = vrcp.pop %v3364
        %v3603 = vrcp.pop %v3366
        %v3604 = vrcp.pop %v3368
        %v3605 = vrcp.pop %v3370
        %v3606 = vrcp.pop %v3372
        %v3607 = vrcp.pop %v3374
        %v3608 = vrcp.pop %v3376
        %v3609 = vrcp.pop %v3378
        %v3610 = vrcp.pop %v3380
        %v3611 = vrcp.pop %v3382
        %v3612 = vrcp.pop %v3384
        %v3613 = vrcp.pop %v3386
        %v3614 = vrcp.pop %v3388
        %v3615 = vrcp.pop %v3390
        %v3616 = vrcp.pop %v3392
        %v3617 = vrcp.pop %v3394
        %v3618 = vrcp.pop %v3396
        %v3619 = vrcp.pop %v3398
        %v3620 = vrcp.pop %v3400
        %v3621 = vrcp.pop %v3402
        %v3622 = vrcp.pop %v3404
        %v3623 = vrcp.pop %v3406
        %v3624 = vrcp.pop %v3408
        %v3625 = vrcp.pop %v3410
        %v3626 = vrcp.pop %v3412
        %v3627 = vrcp.pop %v3414
        %v3628 = vrcp.pop %v3416
        %v3629 = vrcp.pop %v3418
        %v3630 = vrcp.pop %v3420
        %v3631 = vrcp.pop %v3422
        %v3632 = vrcp.pop %v3424
        %v3633 = vrcp.pop %v3426
        %v3634 = vrcp.pop %v3428
        %v3635 = vrcp.pop %v3430
        %v3636 = vrcp.pop %v3432
        %v3637 = vrcp.pop %v3434
        %v3638 = vrcp.pop %v3436
        %v3639 = vrcp.pop %v3438
        %v3640 = vrcp.pop %v3440
        %v3641 = vrcp.pop %v3442
        %v3642 = vrcp.pop %v3444
        %v3643 = vrcp.pop %v3446
        %v3644 = vrcp.pop %v3448
        %v3645 = vrcp.pop %v3450
        %v3646 = vrcp.pop %v3452
        %v3647 = vrcp.pop %v3454
        %v3648 = vrcp.pop %v3456
        %v3649 = vrcp.pop %v3458
        %v3650 = vrcp.pop %v3460
        %v3651 = vrcp.pop %v3462
        %v3652 = vrcp.pop %v3464
        %v3653 = vrcp.pop %v3466
        %v3654 = vrcp.pop %v3468
        %v3655 = vrcp.pop %v3470
        %v3656 = vrcp.pop %v3472
        %v3657 = vrcp.pop %v3474
        %v3658 = vrcp.pop %v3476
        %v3659 = vrcp.pop %v3478
        %v3660 = vrcp.pop %v3480
        %v3661 = vrcp.pop %v3482
        %v3662 = vrcp.pop %v3484
        %v3663 = vrcp.pop %v3486
        %v3664 = vrcp.pop %v3488
        %v3665 = vrcp.pop %v3490
        %v3666 = vrcp.pop %v3492
        %v3667 = vrcp.pop %v3494
        %v3668 = vrcp.pop %v3496
        %v3669 = vrcp.pop %v3498
        %v3670 = vrcp.pop %v3500
        %v3671 = vrcp.pop %v3502
        %v3672 = vrcp.pop %v3504
        %v3673 = vrcp.pop %v3506
        %v3674 = vrcp.pop %v3508
        %v3675 = vrcp.pop %v3510
        %v3676 = vrcp.pop %v3512
        %v3677 = vrcp.pop %v3514
        %v3678 = vrcp.pop %v3516
        %v3679 = vrcp.pop %v3518
        %v3680 = vrcp.pop %v3520
        %v3681 = vrcp.pop %v3522
        %v3682 = vrcp.pop %v3524
        %v3683 = vrcp.pop %v3526
        %v3684 = vrcp.pop %v3528
        %v3685 = vrcp.pop %v3530
        %v3686 = vrcp.pop %v3532
        %v3687 = vrcp.pop %v3534
        %v3688 = vrcp.pop %v3536
        %v3689 = vrcp.pop %v3538
        %v3690 = vrcp.pop %v3540
        %v3691 = vrcp.pop %v3542
        %v3692 = vrcp.pop %v3544
        %v3693 = vrcp.pop %v3546
        %v3694 = vrcp.pop %v3548
        %v3695 = vrcp.pop %v3550
        %v3696 = vrcp.pop %v3552
        %v3697 = vrcp.pop %v3554
        %v3698 = vrcp.pop %v3556
        %v3699 = vrcp.pop %v3558
        %v3700 = vrcp.pop %v3560
        %v3701 = vrcp.pop %v3562
        %v3702 = vrcp.pop %v3564
        %v3703 = vrcp.pop %v3566
        %v3704 = vrcp.pop %v3568
        %v3705 = vrcp.pop %v3570
        %v3706 = vrcp.pop %v3572
        %v3707 = vrcp.pop %v3574
        %v3708 = vrcp.pop %v3576
        %v3709 = vrcp.pop %v3578
        %v3710 = vrcp.pop %v3580
        %v3711 = vrcp.pop %v3582
        %v3712 = vrcp.pop %v3584
        %v3713 = vmul.f32 %v3074, %v3585
        %v3714 = vmul.f32 %v3076, %v3586
        %v3715 = vmul.f32 %v3078, %v3587
        %v3716 = vmul.f32 %v3080, %v3588
        %v3717 = vmul.f32 %v3082, %v3589
        %v3718 = vmul.f32 %v3084, %v3590
        %v3719 = vmul.f32 %v3086, %v3591
        %v3720 = vmul.f32 %v3088, %v3592
        %v3721 = vmul.f32 %v3090, %v3593
        %v3722 = vmul.f32 %v3092, %v3594
        %v3723 = vmul.f32 %v3094, %v3595
        %v3724 = vmul.f32 %v3096, %v3596
        %v3725 = vmul.f32 %v3098, %v3597
        %v3726 = vmul.f32 %v3100, %v3598
        %v3727 = vmul.f32 %v3102, %v3599
        %v3728 = vmul.f32 %v3104, %v3600
        %v3729 = vmul.f32 %v3106, %v3601
        %v3730 = vmul.f32 %v3108, %v3602
        %v3731 = vmul.f32 %v3110, %v3603
        %v3732 = vmul.f32 %v3112, %v3604
        %v3733 = vmul.f32 %v3114, %v3605
        %v3734 = vmul.f32 %v3116, %v3606
        %v3735 = vmul.f32 %v3118, %v3607
        %v3736 = vmul.f32 %v3120, %v3608
        %v3737 = vmul.f32 %v3122, %v3609
        %v3738 = vmul.f32 %v3124, %v3610
        %v3739 = vmul.f32 %v3126, %v3611
        %v3740 = vmul.f32 %v3128, %v3612
        %v3741 = vmul.f32 %v3130, %v3613
        %v3742 = vmul.f32 %v3132, %v3614
        %v3743 = vmul.f32 %v3134, %v3615
        %v3744 = vmul.f32 %v3136, %v3616
        %v3745 = vmul.f32 %v3138, %v3617
        %v3746 = vmul.f32 %v3140, %v3618
        %v3747 = vmul.f32 %v3142, %v3619
        %v3748 = vmul.f32 %v3144, %v3620
        %v3749 = vmul.f32 %v3146, %v3621
        %v3750 = vmul.f32 %v3148, %v3622
        %v3751 = vmul.f32 %v3150, %v3623
        %v3752 = vmul.f32 %v3152, %v3624
        %v3753 = vmul.f32 %v3154, %v3625
        %v3754 = vmul.f32 %v3156, %v3626
        %v3755 = vmul.f32 %v3158, %v3627
        %v3756 = vmul.f32 %v3160, %v3628
        %v3757 = vmul.f32 %v3162, %v3629
        %v3758 = vmul.f32 %v3164, %v3630
        %v3759 = vmul.f32 %v3166, %v3631
        %v3760 = vmul.f32 %v3168, %v3632
        %v3761 = vmul.f32 %v3170, %v3633
        %v3762 = vmul.f32 %v3172, %v3634
        %v3763 = vmul.f32 %v3174, %v3635
        %v3764 = vmul.f32 %v3176, %v3636
        %v3765 = vmul.f32 %v3178, %v3637
        %v3766 = vmul.f32 %v3180, %v3638
        %v3767 = vmul.f32 %v3182, %v3639
        %v3768 = vmul.f32 %v3184, %v3640
        %v3769 = vmul.f32 %v3186, %v3641
        %v3770 = vmul.f32 %v3188, %v3642
        %v3771 = vmul.f32 %v3190, %v3643
        %v3772 = vmul.f32 %v3192, %v3644
        %v3773 = vmul.f32 %v3194, %v3645
        %v3774 = vmul.f32 %v3196, %v3646
        %v3775 = vmul.f32 %v3198, %v3647
        %v3776 = vmul.f32 %v3200, %v3648
        %v3777 = vmul.f32 %v3202, %v3649
        %v3778 = vmul.f32 %v3204, %v3650
        %v3779 = vmul.f32 %v3206, %v3651
        %v3780 = vmul.f32 %v3208, %v3652
        %v3781 = vmul.f32 %v3210, %v3653
        %v3782 = vmul.f32 %v3212, %v3654
        %v3783 = vmul.f32 %v3214, %v3655
        %v3784 = vmul.f32 %v3216, %v3656
        %v3785 = vmul.f32 %v3218, %v3657
        %v3786 = vmul.f32 %v3220, %v3658
        %v3787 = vmul.f32 %v3222, %v3659
        %v3788 = vmul.f32 %v3224, %v3660
        %v3789 = vmul.f32 %v3226, %v3661
        %v3790 = vmul.f32 %v3228, %v3662
        %v3791 = vmul.f32 %v3230, %v3663
        %v3792 = vmul.f32 %v3232, %v3664
        %v3793 = vmul.f32 %v3234, %v3665
        %v3794 = vmul.f32 %v3236, %v3666
        %v3795 = vmul.f32 %v3238, %v3667
        %v3796 = vmul.f32 %v3240, %v3668
        %v3797 = vmul.f32 %v3242, %v3669
        %v3798 = vmul.f32 %v3244, %v3670
        %v3799 = vmul.f32 %v3246, %v3671
        %v3800 = vmul.f32 %v3248, %v3672
        %v3801 = vmul.f32 %v3250, %v3673
        %v3802 = vmul.f32 %v3252, %v3674
        %v3803 = vmul.f32 %v3254, %v3675
        %v3804 = vmul.f32 %v3256, %v3676
        %v3805 = vmul.f32 %v3258, %v3677
        %v3806 = vmul.f32 %v3260, %v3678
        %v3807 = vmul.f32 %v3262, %v3679
        %v3808 = vmul.f32 %v3264, %v3680
        %v3809 = vmul.f32 %v3266, %v3681
        %v3810 = vmul.f32 %v3268, %v3682
        %v3811 = vmul.f32 %v3270, %v3683
        %v3812 = vmul.f32 %v3272, %v3684
        %v3813 = vmul.f32 %v3274, %v3685
        %v3814 = vmul.f32 %v3276, %v3686
        %v3815 = vmul.f32 %v3278, %v3687
        %v3816 = vmul.f32 %v3280, %v3688
        %v3817 = vmul.f32 %v3282, %v3689
        %v3818 = vmul.f32 %v3284, %v3690
        %v3819 = vmul.f32 %v3286, %v3691
        %v3820 = vmul.f32 %v3288, %v3692
        %v3821 = vmul.f32 %v3290, %v3693
        %v3822 = vmul.f32 %v3292, %v3694
        %v3823 = vmul.f32 %v3294, %v3695
        %v3824 = vmul.f32 %v3296, %v3696
        %v3825 = vmul.f32 %v3298, %v3697
        %v3826 = vmul.f32 %v3300, %v3698
        %v3827 = vmul.f32 %v3302, %v3699
        %v3828 = vmul.f32 %v3304, %v3700
        %v3829 = vmul.f32 %v3306, %v3701
        %v3830 = vmul.f32 %v3308, %v3702
        %v3831 = vmul.f32 %v3310, %v3703
        %v3832 = vmul.f32 %v3312, %v3704
        %v3833 = vmul.f32 %v3314, %v3705
        %v3834 = vmul.f32 %v3316, %v3706
        %v3835 = vmul.f32 %v3318, %v3707
        %v3836 = vmul.f32 %v3320, %v3708
        %v3837 = vmul.f32 %v3322, %v3709
        %v3838 = vmul.f32 %v3324, %v3710
        %v3839 = vmul.f32 %v3326, %v3711
        %v3840 = vmul.f32 %v3328, %v3712
        %v3841 = vpack.c.bf16 %v3714, %v3713
        %v3842 = vpack.c.bf16 %v3716, %v3715
        %v3843 = vpack.c.bf16 %v3718, %v3717
        %v3844 = vpack.c.bf16 %v3720, %v3719
        %v3845 = vpack.c.bf16 %v3722, %v3721
        %v3846 = vpack.c.bf16 %v3724, %v3723
        %v3847 = vpack.c.bf16 %v3726, %v3725
        %v3848 = vpack.c.bf16 %v3728, %v3727
        %v3849 = vpack.c.bf16 %v3730, %v3729
        %v3850 = vpack.c.bf16 %v3732, %v3731
        %v3851 = vpack.c.bf16 %v3734, %v3733
        %v3852 = vpack.c.bf16 %v3736, %v3735
        %v3853 = vpack.c.bf16 %v3738, %v3737
        %v3854 = vpack.c.bf16 %v3740, %v3739
        %v3855 = vpack.c.bf16 %v3742, %v3741
        %v3856 = vpack.c.bf16 %v3744, %v3743
        %v3857 = vpack.c.bf16 %v3746, %v3745
        %v3858 = vpack.c.bf16 %v3748, %v3747
        %v3859 = vpack.c.bf16 %v3750, %v3749
        %v3860 = vpack.c.bf16 %v3752, %v3751
        %v3861 = vpack.c.bf16 %v3754, %v3753
        %v3862 = vpack.c.bf16 %v3756, %v3755
        %v3863 = vpack.c.bf16 %v3758, %v3757
        %v3864 = vpack.c.bf16 %v3760, %v3759
        %v3865 = vpack.c.bf16 %v3762, %v3761
        %v3866 = vpack.c.bf16 %v3764, %v3763
        %v3867 = vpack.c.bf16 %v3766, %v3765
        %v3868 = vpack.c.bf16 %v3768, %v3767
        %v3869 = vpack.c.bf16 %v3770, %v3769
        %v3870 = vpack.c.bf16 %v3772, %v3771
        %v3871 = vpack.c.bf16 %v3774, %v3773
        %v3872 = vpack.c.bf16 %v3776, %v3775
        %v3873 = vpack.c.bf16 %v3778, %v3777
        %v3874 = vpack.c.bf16 %v3780, %v3779
        %v3875 = vpack.c.bf16 %v3782, %v3781
        %v3876 = vpack.c.bf16 %v3784, %v3783
        %v3877 = vpack.c.bf16 %v3786, %v3785
        %v3878 = vpack.c.bf16 %v3788, %v3787
        %v3879 = vpack.c.bf16 %v3790, %v3789
        %v3880 = vpack.c.bf16 %v3792, %v3791
        %v3881 = vpack.c.bf16 %v3794, %v3793
        %v3882 = vpack.c.bf16 %v3796, %v3795
        %v3883 = vpack.c.bf16 %v3798, %v3797
        %v3884 = vpack.c.bf16 %v3800, %v3799
        %v3885 = vpack.c.bf16 %v3802, %v3801
        %v3886 = vpack.c.bf16 %v3804, %v3803
        %v3887 = vpack.c.bf16 %v3806, %v3805
        %v3888 = vpack.c.bf16 %v3808, %v3807
        %v3889 = vpack.c.bf16 %v3810, %v3809
        %v3890 = vpack.c.bf16 %v3812, %v3811
        %v3891 = vpack.c.bf16 %v3814, %v3813
        %v3892 = vpack.c.bf16 %v3816, %v3815
        %v3893 = vpack.c.bf16 %v3818, %v3817
        %v3894 = vpack.c.bf16 %v3820, %v3819
        %v3895 = vpack.c.bf16 %v3822, %v3821
        %v3896 = vpack.c.bf16 %v3824, %v3823
        %v3897 = vpack.c.bf16 %v3826, %v3825
        %v3898 = vpack.c.bf16 %v3828, %v3827
        %v3899 = vpack.c.bf16 %v3830, %v3829
        %v3900 = vpack.c.bf16 %v3832, %v3831
        %v3901 = vpack.c.bf16 %v3834, %v3833
        %v3902 = vpack.c.bf16 %v3836, %v3835
        %v3903 = vpack.c.bf16 %v3838, %v3837
        %v3904 = vpack.c.bf16 %v3840, %v3839
        %v3969 = vunpack.c.l.b16 %v3841
        %v3970 = vunpack.c.h.b16 %v3841
        %v3971 = vunpack.c.l.b16 %v3842
        %v3972 = vunpack.c.h.b16 %v3842
        %v3973 = vunpack.c.l.b16 %v3843
        %v3974 = vunpack.c.h.b16 %v3843
        %v3975 = vunpack.c.l.b16 %v3844
        %v3976 = vunpack.c.h.b16 %v3844
        %v3977 = vunpack.c.l.b16 %v3845
        %v3978 = vunpack.c.h.b16 %v3845
        %v3979 = vunpack.c.l.b16 %v3846
        %v3980 = vunpack.c.h.b16 %v3846
        %v3981 = vunpack.c.l.b16 %v3847
        %v3982 = vunpack.c.h.b16 %v3847
        %v3983 = vunpack.c.l.b16 %v3848
        %v3984 = vunpack.c.h.b16 %v3848
        %v3985 = vunpack.c.l.b16 %v3849
        %v3986 = vunpack.c.h.b16 %v3849
        %v3987 = vunpack.c.l.b16 %v3850
        %v3988 = vunpack.c.h.b16 %v3850
        %v3989 = vunpack.c.l.b16 %v3851
        %v3990 = vunpack.c.h.b16 %v3851
        %v3991 = vunpack.c.l.b16 %v3852
        %v3992 = vunpack.c.h.b16 %v3852
        %v3993 = vunpack.c.l.b16 %v3853
        %v3994 = vunpack.c.h.b16 %v3853
        %v3995 = vunpack.c.l.b16 %v3854
        %v3996 = vunpack.c.h.b16 %v3854
        %v3997 = vunpack.c.l.b16 %v3855
        %v3998 = vunpack.c.h.b16 %v3855
        %v3999 = vunpack.c.l.b16 %v3856
        %v4000 = vunpack.c.h.b16 %v3856
        %v4001 = vunpack.c.l.b16 %v3857
        %v4002 = vunpack.c.h.b16 %v3857
        %v4003 = vunpack.c.l.b16 %v3858
        %v4004 = vunpack.c.h.b16 %v3858
        %v4005 = vunpack.c.l.b16 %v3859
        %v4006 = vunpack.c.h.b16 %v3859
        %v4007 = vunpack.c.l.b16 %v3860
        %v4008 = vunpack.c.h.b16 %v3860
        %v4009 = vunpack.c.l.b16 %v3861
        %v4010 = vunpack.c.h.b16 %v3861
        %v4011 = vunpack.c.l.b16 %v3862
        %v4012 = vunpack.c.h.b16 %v3862
        %v4013 = vunpack.c.l.b16 %v3863
        %v4014 = vunpack.c.h.b16 %v3863
        %v4015 = vunpack.c.l.b16 %v3864
        %v4016 = vunpack.c.h.b16 %v3864
        %v4017 = vunpack.c.l.b16 %v3865
        %v4018 = vunpack.c.h.b16 %v3865
        %v4019 = vunpack.c.l.b16 %v3866
        %v4020 = vunpack.c.h.b16 %v3866
        %v4021 = vunpack.c.l.b16 %v3867
        %v4022 = vunpack.c.h.b16 %v3867
        %v4023 = vunpack.c.l.b16 %v3868
        %v4024 = vunpack.c.h.b16 %v3868
        %v4025 = vunpack.c.l.b16 %v3869
        %v4026 = vunpack.c.h.b16 %v3869
        %v4027 = vunpack.c.l.b16 %v3870
        %v4028 = vunpack.c.h.b16 %v3870
        %v4029 = vunpack.c.l.b16 %v3871
        %v4030 = vunpack.c.h.b16 %v3871
        %v4031 = vunpack.c.l.b16 %v3872
        %v4032 = vunpack.c.h.b16 %v3872
        %v4033 = vunpack.c.l.b16 %v3873
        %v4034 = vunpack.c.h.b16 %v3873
        %v4035 = vunpack.c.l.b16 %v3874
        %v4036 = vunpack.c.h.b16 %v3874
        %v4037 = vunpack.c.l.b16 %v3875
        %v4038 = vunpack.c.h.b16 %v3875
        %v4039 = vunpack.c.l.b16 %v3876
        %v4040 = vunpack.c.h.b16 %v3876
        %v4041 = vunpack.c.l.b16 %v3877
        %v4042 = vunpack.c.h.b16 %v3877
        %v4043 = vunpack.c.l.b16 %v3878
        %v4044 = vunpack.c.h.b16 %v3878
        %v4045 = vunpack.c.l.b16 %v3879
        %v4046 = vunpack.c.h.b16 %v3879
        %v4047 = vunpack.c.l.b16 %v3880
        %v4048 = vunpack.c.h.b16 %v3880
        %v4049 = vunpack.c.l.b16 %v3881
        %v4050 = vunpack.c.h.b16 %v3881
        %v4051 = vunpack.c.l.b16 %v3882
        %v4052 = vunpack.c.h.b16 %v3882
        %v4053 = vunpack.c.l.b16 %v3883
        %v4054 = vunpack.c.h.b16 %v3883
        %v4055 = vunpack.c.l.b16 %v3884
        %v4056 = vunpack.c.h.b16 %v3884
        %v4057 = vunpack.c.l.b16 %v3885
        %v4058 = vunpack.c.h.b16 %v3885
        %v4059 = vunpack.c.l.b16 %v3886
        %v4060 = vunpack.c.h.b16 %v3886
        %v4061 = vunpack.c.l.b16 %v3887
        %v4062 = vunpack.c.h.b16 %v3887
        %v4063 = vunpack.c.l.b16 %v3888
        %v4064 = vunpack.c.h.b16 %v3888
        %v4065 = vunpack.c.l.b16 %v3889
        %v4066 = vunpack.c.h.b16 %v3889
        %v4067 = vunpack.c.l.b16 %v3890
        %v4068 = vunpack.c.h.b16 %v3890
        %v4069 = vunpack.c.l.b16 %v3891
        %v4070 = vunpack.c.h.b16 %v3891
        %v4071 = vunpack.c.l.b16 %v3892
        %v4072 = vunpack.c.h.b16 %v3892
        %v4073 = vunpack.c.l.b16 %v3893
        %v4074 = vunpack.c.h.b16 %v3893
        %v4075 = vunpack.c.l.b16 %v3894
        %v4076 = vunpack.c.h.b16 %v3894
        %v4077 = vunpack.c.l.b16 %v3895
        %v4078 = vunpack.c.h.b16 %v3895
        %v4079 = vunpack.c.l.b16 %v3896
        %v4080 = vunpack.c.h.b16 %v3896
        %v4081 = vunpack.c.l.b16 %v3897
        %v4082 = vunpack.c.h.b16 %v3897
        %v4083 = vunpack.c.l.b16 %v3898
        %v4084 = vunpack.c.h.b16 %v3898
        %v4085 = vunpack.c.l.b16 %v3899
        %v4086 = vunpack.c.h.b16 %v3899
        %v4087 = vunpack.c.l.b16 %v3900
        %v4088 = vunpack.c.h.b16 %v3900
        %v4089 = vunpack.c.l.b16 %v3901
        %v4090 = vunpack.c.h.b16 %v3901
        %v4091 = vunpack.c.l.b16 %v3902
        %v4092 = vunpack.c.h.b16 %v3902
        %v4093 = vunpack.c.l.b16 %v3903
        %v4094 = vunpack.c.h.b16 %v3903
        %v4095 = vunpack.c.l.b16 %v3904
        %v4096 = vunpack.c.h.b16 %v3904
        %v4097 = vpack.c.b16 %v3969, %v3969
        %v4098 = vpack.c.b16 %v3970, %v3970
        %v4099 = vpack.c.b16 %v3971, %v3971
        %v4100 = vpack.c.b16 %v3972, %v3972
        %v4101 = vpack.c.b16 %v3973, %v3973
        %v4102 = vpack.c.b16 %v3974, %v3974
        %v4103 = vpack.c.b16 %v3975, %v3975
        %v4104 = vpack.c.b16 %v3976, %v3976
        %v4105 = vpack.c.b16 %v3977, %v3977
        %v4106 = vpack.c.b16 %v3978, %v3978
        %v4107 = vpack.c.b16 %v3979, %v3979
        %v4108 = vpack.c.b16 %v3980, %v3980
        %v4109 = vpack.c.b16 %v3981, %v3981
        %v4110 = vpack.c.b16 %v3982, %v3982
        %v4111 = vpack.c.b16 %v3983, %v3983
        %v4112 = vpack.c.b16 %v3984, %v3984
        %v4113 = vpack.c.b16 %v3985, %v3985
        %v4114 = vpack.c.b16 %v3986, %v3986
        %v4115 = vpack.c.b16 %v3987, %v3987
        %v4116 = vpack.c.b16 %v3988, %v3988
        %v4117 = vpack.c.b16 %v3989, %v3989
        %v4118 = vpack.c.b16 %v3990, %v3990
        %v4119 = vpack.c.b16 %v3991, %v3991
        %v4120 = vpack.c.b16 %v3992, %v3992
        %v4121 = vpack.c.b16 %v3993, %v3993
        %v4122 = vpack.c.b16 %v3994, %v3994
        %v4123 = vpack.c.b16 %v3995, %v3995
        %v4124 = vpack.c.b16 %v3996, %v3996
        %v4125 = vpack.c.b16 %v3997, %v3997
        %v4126 = vpack.c.b16 %v3998, %v3998
        %v4127 = vpack.c.b16 %v3999, %v3999
        %v4128 = vpack.c.b16 %v4000, %v4000
        %v4129 = vpack.c.b16 %v4001, %v4001
        %v4130 = vpack.c.b16 %v4002, %v4002
        %v4131 = vpack.c.b16 %v4003, %v4003
        %v4132 = vpack.c.b16 %v4004, %v4004
        %v4133 = vpack.c.b16 %v4005, %v4005
        %v4134 = vpack.c.b16 %v4006, %v4006
        %v4135 = vpack.c.b16 %v4007, %v4007
        %v4136 = vpack.c.b16 %v4008, %v4008
        %v4137 = vpack.c.b16 %v4009, %v4009
        %v4138 = vpack.c.b16 %v4010, %v4010
        %v4139 = vpack.c.b16 %v4011, %v4011
        %v4140 = vpack.c.b16 %v4012, %v4012
        %v4141 = vpack.c.b16 %v4013, %v4013
        %v4142 = vpack.c.b16 %v4014, %v4014
        %v4143 = vpack.c.b16 %v4015, %v4015
        %v4144 = vpack.c.b16 %v4016, %v4016
        %v4145 = vpack.c.b16 %v4017, %v4017
        %v4146 = vpack.c.b16 %v4018, %v4018
        %v4147 = vpack.c.b16 %v4019, %v4019
        %v4148 = vpack.c.b16 %v4020, %v4020
        %v4149 = vpack.c.b16 %v4021, %v4021
        %v4150 = vpack.c.b16 %v4022, %v4022
        %v4151 = vpack.c.b16 %v4023, %v4023
        %v4152 = vpack.c.b16 %v4024, %v4024
        %v4153 = vpack.c.b16 %v4025, %v4025
        %v4154 = vpack.c.b16 %v4026, %v4026
        %v4155 = vpack.c.b16 %v4027, %v4027
        %v4156 = vpack.c.b16 %v4028, %v4028
        %v4157 = vpack.c.b16 %v4029, %v4029
        %v4158 = vpack.c.b16 %v4030, %v4030
        %v4159 = vpack.c.b16 %v4031, %v4031
        %v4160 = vpack.c.b16 %v4032, %v4032
        %v4161 = vpack.c.b16 %v4033, %v4033
        %v4162 = vpack.c.b16 %v4034, %v4034
        %v4163 = vpack.c.b16 %v4035, %v4035
        %v4164 = vpack.c.b16 %v4036, %v4036
        %v4165 = vpack.c.b16 %v4037, %v4037
        %v4166 = vpack.c.b16 %v4038, %v4038
        %v4167 = vpack.c.b16 %v4039, %v4039
        %v4168 = vpack.c.b16 %v4040, %v4040
        %v4169 = vpack.c.b16 %v4041, %v4041
        %v4170 = vpack.c.b16 %v4042, %v4042
        %v4171 = vpack.c.b16 %v4043, %v4043
        %v4172 = vpack.c.b16 %v4044, %v4044
        %v4173 = vpack.c.b16 %v4045, %v4045
        %v4174 = vpack.c.b16 %v4046, %v4046
        %v4175 = vpack.c.b16 %v4047, %v4047
        %v4176 = vpack.c.b16 %v4048, %v4048
        %v4177 = vpack.c.b16 %v4049, %v4049
        %v4178 = vpack.c.b16 %v4050, %v4050
        %v4179 = vpack.c.b16 %v4051, %v4051
        %v4180 = vpack.c.b16 %v4052, %v4052
        %v4181 = vpack.c.b16 %v4053, %v4053
        %v4182 = vpack.c.b16 %v4054, %v4054
        %v4183 = vpack.c.b16 %v4055, %v4055
        %v4184 = vpack.c.b16 %v4056, %v4056
        %v4185 = vpack.c.b16 %v4057, %v4057
        %v4186 = vpack.c.b16 %v4058, %v4058
        %v4187 = vpack.c.b16 %v4059, %v4059
        %v4188 = vpack.c.b16 %v4060, %v4060
        %v4189 = vpack.c.b16 %v4061, %v4061
        %v4190 = vpack.c.b16 %v4062, %v4062
        %v4191 = vpack.c.b16 %v4063, %v4063
        %v4192 = vpack.c.b16 %v4064, %v4064
        %v4193 = vpack.c.b16 %v4065, %v4065
        %v4194 = vpack.c.b16 %v4066, %v4066
        %v4195 = vpack.c.b16 %v4067, %v4067
        %v4196 = vpack.c.b16 %v4068, %v4068
        %v4197 = vpack.c.b16 %v4069, %v4069
        %v4198 = vpack.c.b16 %v4070, %v4070
        %v4199 = vpack.c.b16 %v4071, %v4071
        %v4200 = vpack.c.b16 %v4072, %v4072
        %v4201 = vpack.c.b16 %v4073, %v4073
        %v4202 = vpack.c.b16 %v4074, %v4074
        %v4203 = vpack.c.b16 %v4075, %v4075
        %v4204 = vpack.c.b16 %v4076, %v4076
        %v4205 = vpack.c.b16 %v4077, %v4077
        %v4206 = vpack.c.b16 %v4078, %v4078
        %v4207 = vpack.c.b16 %v4079, %v4079
        %v4208 = vpack.c.b16 %v4080, %v4080
        %v4209 = vpack.c.b16 %v4081, %v4081
        %v4210 = vpack.c.b16 %v4082, %v4082
        %v4211 = vpack.c.b16 %v4083, %v4083
        %v4212 = vpack.c.b16 %v4084, %v4084
        %v4213 = vpack.c.b16 %v4085, %v4085
        %v4214 = vpack.c.b16 %v4086, %v4086
        %v4215 = vpack.c.b16 %v4087, %v4087
        %v4216 = vpack.c.b16 %v4088, %v4088
        %v4217 = vpack.c.b16 %v4089, %v4089
        %v4218 = vpack.c.b16 %v4090, %v4090
        %v4219 = vpack.c.b16 %v4091, %v4091
        %v4220 = vpack.c.b16 %v4092, %v4092
        %v4221 = vpack.c.b16 %v4093, %v4093
        %v4222 = vpack.c.b16 %v4094, %v4094
        %v4223 = vpack.c.b16 %v4095, %v4095
        %v4224 = vpack.c.b16 %v4096, %v4096
        %4353 = vst [vmem:[%s234] sm:$0xf] %v4097
        %4354 = vst [vmem:[%s234 + $0x4] sm:$0xf] %v4098
        %4355 = vst [vmem:[%s234 + $0x8] sm:$0xf] %v4099
        %4356 = vst [vmem:[%s234 + $0xc] sm:$0xf] %v4100
        %4357 = vst [vmem:[%s234 + $0x10] sm:$0xf] %v4101
        %4358 = vst [vmem:[%s234 + $0x14] sm:$0xf] %v4102
        %4359 = vst [vmem:[%s234 + $0x18] sm:$0xf] %v4103
        %4360 = vst [vmem:[%s234 + $0x1c] sm:$0xf] %v4104
        %4361 = vst [vmem:[%s234 + $0x20] sm:$0xf] %v4105
        %4362 = vst [vmem:[%s234 + $0x24] sm:$0xf] %v4106
        %4363 = vst [vmem:[%s234 + $0x28] sm:$0xf] %v4107
        %4364 = vst [vmem:[%s234 + $0x2c] sm:$0xf] %v4108
        %4365 = vst [vmem:[%s234 + $0x30] sm:$0xf] %v4109
        %4366 = vst [vmem:[%s234 + $0x34] sm:$0xf] %v4110
        %4367 = vst [vmem:[%s234 + $0x38] sm:$0xf] %v4111
        %4368 = vst [vmem:[%s234 + $0x3c] sm:$0xf] %v4112
        %4369 = vst [vmem:[%s234 + $0x40] sm:$0xf] %v4113
        %4370 = vst [vmem:[%s234 + $0x44] sm:$0xf] %v4114
        %4371 = vst [vmem:[%s234 + $0x48] sm:$0xf] %v4115
        %4372 = vst [vmem:[%s234 + $0x4c] sm:$0xf] %v4116
        %4373 = vst [vmem:[%s234 + $0x50] sm:$0xf] %v4117
        %4374 = vst [vmem:[%s234 + $0x54] sm:$0xf] %v4118
        %4375 = vst [vmem:[%s234 + $0x58] sm:$0xf] %v4119
        %4376 = vst [vmem:[%s234 + $0x5c] sm:$0xf] %v4120
        %4377 = vst [vmem:[%s234 + $0x60] sm:$0xf] %v4121
        %4378 = vst [vmem:[%s234 + $0x64] sm:$0xf] %v4122
        %4379 = vst [vmem:[%s234 + $0x68] sm:$0xf] %v4123
        %4380 = vst [vmem:[%s234 + $0x6c] sm:$0xf] %v4124
        %4381 = vst [vmem:[%s234 + $0x70] sm:$0xf] %v4125
        %4382 = vst [vmem:[%s234 + $0x74] sm:$0xf] %v4126
        %4383 = vst [vmem:[%s234 + $0x78] sm:$0xf] %v4127
        %4384 = vst [vmem:[%s234 + $0x7c] sm:$0xf] %v4128
        %4385 = vst [vmem:[%s234 + $0x80] sm:$0xf] %v4129
        %4386 = vst [vmem:[%s234 + $0x84] sm:$0xf] %v4130
        %4387 = vst [vmem:[%s234 + $0x88] sm:$0xf] %v4131
        %4388 = vst [vmem:[%s234 + $0x8c] sm:$0xf] %v4132
        %4389 = vst [vmem:[%s234 + $0x90] sm:$0xf] %v4133
        %4390 = vst [vmem:[%s234 + $0x94] sm:$0xf] %v4134
        %4391 = vst [vmem:[%s234 + $0x98] sm:$0xf] %v4135
        %4392 = vst [vmem:[%s234 + $0x9c] sm:$0xf] %v4136
        %4393 = vst [vmem:[%s234 + $0xa0] sm:$0xf] %v4137
        %4394 = vst [vmem:[%s234 + $0xa4] sm:$0xf] %v4138
        %4395 = vst [vmem:[%s234 + $0xa8] sm:$0xf] %v4139
        %4396 = vst [vmem:[%s234 + $0xac] sm:$0xf] %v4140
        %4397 = vst [vmem:[%s234 + $0xb0] sm:$0xf] %v4141
        %4398 = vst [vmem:[%s234 + $0xb4] sm:$0xf] %v4142
        %4399 = vst [vmem:[%s234 + $0xb8] sm:$0xf] %v4143
        %4400 = vst [vmem:[%s234 + $0xbc] sm:$0xf] %v4144
        %4401 = vst [vmem:[%s234 + $0xc0] sm:$0xf] %v4145
        %4402 = vst [vmem:[%s234 + $0xc4] sm:$0xf] %v4146
        %4403 = vst [vmem:[%s234 + $0xc8] sm:$0xf] %v4147
        %4404 = vst [vmem:[%s234 + $0xcc] sm:$0xf] %v4148
        %4405 = vst [vmem:[%s234 + $0xd0] sm:$0xf] %v4149
        %4406 = vst [vmem:[%s234 + $0xd4] sm:$0xf] %v4150
        %4407 = vst [vmem:[%s234 + $0xd8] sm:$0xf] %v4151
        %4408 = vst [vmem:[%s234 + $0xdc] sm:$0xf] %v4152
        %4409 = vst [vmem:[%s234 + $0xe0] sm:$0xf] %v4153
        %4410 = vst [vmem:[%s234 + $0xe4] sm:$0xf] %v4154
        %4411 = vst [vmem:[%s234 + $0xe8] sm:$0xf] %v4155
        %4412 = vst [vmem:[%s234 + $0xec] sm:$0xf] %v4156
        %4413 = vst [vmem:[%s234 + $0xf0] sm:$0xf] %v4157
        %4414 = vst [vmem:[%s234 + $0xf4] sm:$0xf] %v4158
        %4415 = vst [vmem:[%s234 + $0xf8] sm:$0xf] %v4159
        %4416 = vst [vmem:[%s234 + $0xfc] sm:$0xf] %v4160
        %4417 = vst [vmem:[%s234 + $0x100] sm:$0xf] %v4161
        %4418 = vst [vmem:[%s234 + $0x104] sm:$0xf] %v4162
        %4419 = vst [vmem:[%s234 + $0x108] sm:$0xf] %v4163
        %4420 = vst [vmem:[%s234 + $0x10c] sm:$0xf] %v4164
        %4421 = vst [vmem:[%s234 + $0x110] sm:$0xf] %v4165
        %4422 = vst [vmem:[%s234 + $0x114] sm:$0xf] %v4166
        %4423 = vst [vmem:[%s234 + $0x118] sm:$0xf] %v4167
        %4424 = vst [vmem:[%s234 + $0x11c] sm:$0xf] %v4168
        %4425 = vst [vmem:[%s234 + $0x120] sm:$0xf] %v4169
        %4426 = vst [vmem:[%s234 + $0x124] sm:$0xf] %v4170
        %4427 = vst [vmem:[%s234 + $0x128] sm:$0xf] %v4171
        %4428 = vst [vmem:[%s234 + $0x12c] sm:$0xf] %v4172
        %4429 = vst [vmem:[%s234 + $0x130] sm:$0xf] %v4173
        %4430 = vst [vmem:[%s234 + $0x134] sm:$0xf] %v4174
        %4431 = vst [vmem:[%s234 + $0x138] sm:$0xf] %v4175
        %4432 = vst [vmem:[%s234 + $0x13c] sm:$0xf] %v4176
        %4433 = vst [vmem:[%s234 + $0x140] sm:$0xf] %v4177
        %4434 = vst [vmem:[%s234 + $0x144] sm:$0xf] %v4178
        %4435 = vst [vmem:[%s234 + $0x148] sm:$0xf] %v4179
        %4436 = vst [vmem:[%s234 + $0x14c] sm:$0xf] %v4180
        %4437 = vst [vmem:[%s234 + $0x150] sm:$0xf] %v4181
        %4438 = vst [vmem:[%s234 + $0x154] sm:$0xf] %v4182
        %4439 = vst [vmem:[%s234 + $0x158] sm:$0xf] %v4183
        %4440 = vst [vmem:[%s234 + $0x15c] sm:$0xf] %v4184
        %4441 = vst [vmem:[%s234 + $0x160] sm:$0xf] %v4185
        %4442 = vst [vmem:[%s234 + $0x164] sm:$0xf] %v4186
        %4443 = vst [vmem:[%s234 + $0x168] sm:$0xf] %v4187
        %4444 = vst [vmem:[%s234 + $0x16c] sm:$0xf] %v4188
        %4445 = vst [vmem:[%s234 + $0x170] sm:$0xf] %v4189
        %4446 = vst [vmem:[%s234 + $0x174] sm:$0xf] %v4190
        %4447 = vst [vmem:[%s234 + $0x178] sm:$0xf] %v4191
        %4448 = vst [vmem:[%s234 + $0x17c] sm:$0xf] %v4192
        %4449 = vst [vmem:[%s234 + $0x180] sm:$0xf] %v4193
        %4450 = vst [vmem:[%s234 + $0x184] sm:$0xf] %v4194
        %4451 = vst [vmem:[%s234 + $0x188] sm:$0xf] %v4195
        %4452 = vst [vmem:[%s234 + $0x18c] sm:$0xf] %v4196
        %4453 = vst [vmem:[%s234 + $0x190] sm:$0xf] %v4197
        %4454 = vst [vmem:[%s234 + $0x194] sm:$0xf] %v4198
        %4455 = vst [vmem:[%s234 + $0x198] sm:$0xf] %v4199
        %4456 = vst [vmem:[%s234 + $0x19c] sm:$0xf] %v4200
        %4457 = vst [vmem:[%s234 + $0x1a0] sm:$0xf] %v4201
        %4458 = vst [vmem:[%s234 + $0x1a4] sm:$0xf] %v4202
        %4459 = vst [vmem:[%s234 + $0x1a8] sm:$0xf] %v4203
        %4460 = vst [vmem:[%s234 + $0x1ac] sm:$0xf] %v4204
        %4461 = vst [vmem:[%s234 + $0x1b0] sm:$0xf] %v4205
        %4462 = vst [vmem:[%s234 + $0x1b4] sm:$0xf] %v4206
        %4463 = vst [vmem:[%s234 + $0x1b8] sm:$0xf] %v4207
        %4464 = vst [vmem:[%s234 + $0x1bc] sm:$0xf] %v4208
        %4465 = vst [vmem:[%s234 + $0x1c0] sm:$0xf] %v4209
        %4466 = vst [vmem:[%s234 + $0x1c4] sm:$0xf] %v4210
        %4467 = vst [vmem:[%s234 + $0x1c8] sm:$0xf] %v4211
        %4468 = vst [vmem:[%s234 + $0x1cc] sm:$0xf] %v4212
        %4469 = vst [vmem:[%s234 + $0x1d0] sm:$0xf] %v4213
        %4470 = vst [vmem:[%s234 + $0x1d4] sm:$0xf] %v4214
        %4471 = vst [vmem:[%s234 + $0x1d8] sm:$0xf] %v4215
        %4472 = vst [vmem:[%s234 + $0x1dc] sm:$0xf] %v4216
        %4473 = vst [vmem:[%s234 + $0x1e0] sm:$0xf] %v4217
        %4474 = vst [vmem:[%s234 + $0x1e4] sm:$0xf] %v4218
        %4475 = vst [vmem:[%s234 + $0x1e8] sm:$0xf] %v4219
        %4476 = vst [vmem:[%s234 + $0x1ec] sm:$0xf] %v4220
        %4477 = vst [vmem:[%s234 + $0x1f0] sm:$0xf] %v4221
        %4478 = vst [vmem:[%s234 + $0x1f4] sm:$0xf] %v4222
        %4479 = vst [vmem:[%s234 + $0x1f8] sm:$0xf] %v4223
        %4480 = vst [vmem:[%s234 + $0x1fc] sm:$0xf] %v4224
        %s4481 = sand.u32 %s142, 1
        %s4482 = scalar_lea.sflag [#allocation3], %s4481
        %s4483 = sand.u32 %s142, 1
        %s4484 = smul.addr %s4483, 512
        %s4485 = scalar_lea.vmem [#allocation2], %s4484
        // Predicated region
        $region41: #{tpu_custom_call.1} parent=39 // pred_check
          %p4486 = pneg %p152
        $region42: #{tpu_custom_call.1} parent=39 // pred_check_branch
          %4488 = sbr.rel (%p4486) target = $region44
        $region43: #{tpu_custom_call.1} parent=39 // pred_region
          %s4489 = smul.u32 128, %s19
          %s4491 = ssub.s32 8192, 8192
          %4492 = vsyncadd %s4482, %s4491
          %s4493 = smul.addr %s4489, 64
          %s4494 = scalar_lea.hbm %s5, %s4493
          %s4495 = sshll.u32 %s4485, 4
          %s4496 = int_to_ptr.vmem [resolvable:$true] %s4495
          %4501 = dma.vmem_to_hbm [thread:$0]  %s4496, 8192, %s4494, %s4482, 64, 64, 4
        $region44: #{tpu_custom_call.1} parent=39 // pred_fallthru
          _
      $region40: #{tpu_custom_call.1} parent=5 // pred_fallthru
        _
      %p4502 = scmp.le.s32.totalorder 2, %s14
      // Predicated region
      $region45: #{tpu_custom_call.1} parent=5 // pred_check
        %p4503 = pneg %p4502
      $region46: #{tpu_custom_call.1} parent=5 // pred_check_branch
        %4505 = sbr.rel (%p4503) target = $region48
      $region47: #{tpu_custom_call.1} parent=5 // pred_region
        %s4506 = ssub.s32 %s14, 2
        // Predicated region
        $region49: #{tpu_custom_call.1} parent=47 // pred_check
          %p4507 = pneg %p158
        $region50: #{tpu_custom_call.1} parent=47 // pred_check_branch
          %4509 = sbr.rel (%p4507) target = $region52
        $region51: #{tpu_custom_call.1} parent=47 // pred_region
          %s4510 = sand.u32 %s143, 1
          %s4511 = scalar_lea.sflag [#allocation3], %s4510
          %s4512 = sand.u32 %s143, 1
          %s4513 = smul.addr %s4512, 512
          %s4514 = scalar_lea.vmem [#allocation2], %s4513
          %4515 = dma.done %s4511, 8192
        $region52: #{tpu_custom_call.1} parent=47 // pred_fallthru
          _
      $region48: #{tpu_custom_call.1} parent=5 // pred_fallthru
        _
    $region6: #{tpu_custom_call.1} parent=1 // loop_footer
      %s18 = sadd.s32 1, %s14
    $region7: #{tpu_custom_call.1} parent=1 // loop_footer_branch
      %13 = sbr.rel target = $region3
    $region8: #{tpu_custom_call.1} parent=1 // loop_exit
      _
    %4516 = vsyncpa [#allocation3], 1
    %s4517 = scalar_lea.sflag [#allocation3], 1
    %4518 = vsyncpa %s4517, 1

</llo_original>
